<compile_context>
chip_gen: v5e
topology: v5e:2x2
jax: 0.10.0
libtpu: 0.0.40
codegen_flags: <defaults>
</compile_context>

<pallas_src>
import functools

import jax
import jax.numpy as jnp
from jax.experimental import pallas as pl
from jax.experimental.pallas import tpu as pltpu


_LANE = 128                      # TPU lane width
_VMEM_BUDGET = 20 * 1024 * 1024  # working-set budget (conservative across v5e/v6e/v7x)
_VMEM_LIMIT = 48 * 1024 * 1024   # scoped VMEM limit handed to Mosaic (headroom on v7x)
_MAX_TILE_K = 2048
_MAX_TILE_HW = 1024


def _round_up(x: int, m: int) -> int:
    return (x + m - 1) // m * m


def _pick_tile_hw(hw: int, tile_k: int, coutp: int) -> int:
    """Largest power-of-two multiple of 16 rows whose working set fits the VMEM budget."""
    max_hw = min(_MAX_TILE_HW, _round_up(hw, 16))
    tile = 16
    cand = 32
    while cand <= max_hw:
        need = (2 * cand * tile_k * 2      # bf16 patch tile, double-buffered
                + 2 * cand * coutp * 2     # bf16 output tile, double-buffered
                + cand * coutp * 4         # f32 accumulator scratch
                + 2 * tile_k * coutp * 2   # bf16 weight tile, double-buffered
                + 2 * coutp * 4)           # f32 bias
        if need > _VMEM_BUDGET:
            break
        tile = cand
        cand *= 2
    return tile


# ----------------------------------------------------------------------------
# Pallas kernel: tiled (im2col-patches @ weight) + bias + optional ReLU
# ----------------------------------------------------------------------------
def _matmul_bias_act_kernel(x_ref, w_ref, b_ref, o_ref, acc_ref, *, apply_relu: bool):
    # x_ref: (1, tile_hw, tile_k) bf16   w_ref: (tile_k, Coutp) bf16
    # b_ref: (1, Coutp) f32              o_ref: (1, tile_hw, Coutp) bf16
    # acc_ref: (tile_hw, Coutp) f32 scratch, resident across the K grid axis.
    k = pl.program_id(2)

    @pl.when(k == 0)
    def _():
        acc_ref[...] = jnp.zeros_like(acc_ref)

    acc_ref[...] += jnp.dot(x_ref[0], w_ref[...], preferred_element_type=jnp.float32)

    @pl.when(k == pl.num_programs(2) - 1)
    def _():
        out = acc_ref[...] + b_ref[...]        # broadcast (1, Coutp) bias, f32
        if apply_relu:
            out = jnp.maximum(out, 0.0)
        o_ref[0] = out.astype(o_ref.dtype)


def _fused_matmul(patches, w, b, apply_relu):
    """patches: (B, HW, K), w: (K, Cout), b: (Cout,) -> (B, HW, Cout) bf16."""
    B, HW, K = patches.shape
    Cout = w.shape[-1]

    coutp = _round_up(Cout, _LANE)                  # lane-dense output (multiple of 128)
    tile_k = min(_MAX_TILE_K, _round_up(K, _LANE))  # MXU-friendly K tile
    kp = _round_up(K, tile_k)
    tile_hw = _pick_tile_hw(HW, tile_k, coutp)
    hwp = _round_up(HW, tile_hw)

    patches_p = jnp.pad(patches.astype(jnp.bfloat16),
                        ((0, 0), (0, hwp - HW), (0, kp - K)))
    w_p = jnp.pad(w.astype(jnp.bfloat16), ((0, kp - K), (0, coutp - Cout)))
    b_p = jnp.pad(b.astype(jnp.float32), ((0, coutp - Cout),)).reshape(1, coutp)

    grid = (B, hwp // tile_hw, kp // tile_k)
    kernel = functools.partial(_matmul_bias_act_kernel, apply_relu=apply_relu)

    cost = pl.CostEstimate(
        flops=2 * B * hwp * kp * coutp,
        transcendentals=0,
        bytes_accessed=(patches_p.size * 2 + w_p.size * 2 + b_p.size * 4
                        + B * hwp * coutp * 2),
    )

    out = pl.pallas_call(
        kernel,
        out_shape=jax.ShapeDtypeStruct((B, hwp, coutp), jnp.bfloat16),
        grid_spec=pltpu.PrefetchScalarGridSpec(
            num_scalar_prefetch=0,
            grid=grid,
            in_specs=[
                pl.BlockSpec((1, tile_hw, tile_k), lambda bi, ti, ki: (bi, ti, ki)),
                pl.BlockSpec((tile_k, coutp), lambda bi, ti, ki: (ki, 0)),
                pl.BlockSpec((1, coutp), lambda bi, ti, ki: (0, 0)),
            ],
            out_specs=pl.BlockSpec((1, tile_hw, coutp), lambda bi, ti, ki: (bi, ti, 0)),
            scratch_shapes=[pltpu.VMEM((tile_hw, coutp), jnp.float32)],
        ),
        compiler_params=pltpu.CompilerParams(
            dimension_semantics=("parallel", "parallel", "arbitrary"),
            vmem_limit_bytes=_VMEM_LIMIT,
        ),
        cost_estimate=cost,
    )(patches_p, w_p, b_p)

    return out[:, :HW, :Cout]   # strip row / lane padding


# ----------------------------------------------------------------------------
# Conv as im2col (glue, plain JAX) + fused Pallas matmul
# ----------------------------------------------------------------------------
def _im2col_3x3(x, stride):
    """x: (B, H, W, C) NHWC, 'same' padding=1, 3x3 window -> (B, Ho*Wo, 9C)."""
    B, H, W, C = x.shape
    Ho, Wo = H // stride, W // stride
    xp = jnp.pad(x, ((0, 0), (1, 1), (1, 1), (0, 0)))
    pieces = []
    for dy in range(3):
        for dx in range(3):
            pieces.append(
                xp[:,
                   dy: dy + stride * (Ho - 1) + 1: stride,
                   dx: dx + stride * (Wo - 1) + 1: stride,
                   :]
            )
    patches = jnp.concatenate(pieces, axis=-1)          # (B, Ho, Wo, 9C)
    return patches.reshape(B, Ho * Wo, 9 * C), Ho, Wo


def conv3x3(x, w, b, stride=1, relu=True):
    """x: (B, H, W, Cin) NHWC bf16; w: (3, 3, Cin, Cout) f32; b: (Cout,) f32 -> bf16."""
    Cout = w.shape[-1]
    patches, Ho, Wo = _im2col_3x3(x, stride)
    K = patches.shape[-1]
    out = _fused_matmul(patches, w.reshape(K, Cout), b, relu)
    return out.reshape(x.shape[0], Ho, Wo, Cout)


def upsample2(x):
    return jnp.repeat(jnp.repeat(x, 2, axis=1), 2, axis=2)


# ----------------------------------------------------------------------------
# Synthetic UNet-style PretrainedModel (segmentation task, no final activation)
# ----------------------------------------------------------------------------
def _init_conv(key, cin, cout):
    fan_in = 9 * cin
    w = jax.random.normal(key, (3, 3, cin, cout), jnp.float32) * (2.0 / fan_in) ** 0.5
    b = jnp.zeros((cout,), jnp.float32)
    return w, b


def init_pretrained_model_params(key, in_channels, num_classes, hidden_dim=16):
    c1, c2, c3 = hidden_dim, hidden_dim * 2, hidden_dim * 4
    keys = jax.random.split(key, 6)
    return {
        "enc1": _init_conv(keys[0], in_channels, c1),   # full res
        "enc2": _init_conv(keys[1], c1, c2),            # stride-2 down
        "enc3": _init_conv(keys[2], c2, c3),            # stride-2 down
        "dec2": _init_conv(keys[3], c3 + c2, c2),       # up + skip
        "dec1": _init_conv(keys[4], c2 + c1, c1),       # up + skip
        "head": _init_conv(keys[5], c1, num_classes),   # segmentation head
    }


def pretrained_model_forward(params, x_nchw):
    """Forward pass. Input NCHW (B, C, H, W) -> {'logits': (B, num_classes, H, W)}."""
    x = jnp.transpose(x_nchw, (0, 2, 3, 1)).astype(jnp.bfloat16)   # NCHW -> NHWC, bf16

    e1 = conv3x3(x, *params["enc1"], stride=1, relu=True)          # (B, H,   W,   c1)
    e2 = conv3x3(e1, *params["enc2"], stride=2, relu=True)         # (B, H/2, W/2, c2)
    e3 = conv3x3(e2, *params["enc3"], stride=2, relu=True)         # (B, H/4, W/4, c3)

    # TODO(synk): fuse upsample+concat into the conv kernel via split-K weights to
    #             avoid materializing the full-resolution decoder inputs in HBM.
    d2 = conv3x3(jnp.concatenate([upsample2(e3), e2], axis=-1),
                 *params["dec2"], stride=1, relu=True)             # (B, H/2, W/2, c2)
    d1 = conv3x3(jnp.concatenate([upsample2(d2), e1], axis=-1),
                 *params["dec1"], stride=1, relu=True)             # (B, H,   W,   c1)

    logits = conv3x3(d1, *params["head"], stride=1, relu=False)    # (B, H, W, classes)
    logits = jnp.transpose(logits, (0, 3, 1, 2)).astype(jnp.float32)   # NHWC -> NCHW
    return {"logits": logits}


if __name__ == "__main__":
    B, C_IN, H, W = 2, 4, 16, 16
    NUM_CLASSES = 3
    HIDDEN_DIM = 8

    key = jax.random.PRNGKey(0)
    k_params, k_input = jax.random.split(key)

    params = init_pretrained_model_params(k_params, C_IN, NUM_CLASSES, HIDDEN_DIM)
    x = jax.random.normal(k_input, (B, C_IN, H, W), jnp.float32)   # NCHW input

    fwd = jax.jit(pretrained_model_forward)
    out = fwd(params, x)
    logits = jax.block_until_ready(out["logits"])

    assert logits.shape == (B, NUM_CLASSES, H, W), logits.shape
    assert logits.dtype == jnp.float32
    assert bool(jnp.all(jnp.isfinite(logits)))
    print("KERNEL_OK")
</pallas_src>

<mosaic_0001>
module attributes {stable_mosaic.version = 11 : i64} {
  func.func @_matmul_bias_act_kernel(%arg0: i32, %arg1: i32, %arg2: i32, %arg3: memref<1x256x128xbf16, #tpu.memory_space<vmem>>, %arg4: memref<128x128xbf16, #tpu.memory_space<vmem>>, %arg5: memref<1x128xf32, #tpu.memory_space<vmem>>, %arg6: memref<1x256x128xbf16, #tpu.memory_space<vmem>>, %arg7: memref<256x128xf32, #tpu.memory_space<vmem>>) attributes {dimension_semantics = [#tpu.dimension_semantics<parallel>, #tpu.dimension_semantics<parallel>, #tpu.dimension_semantics<arbitrary>], iteration_bounds = array<i64: 2, 1, 1>, scalar_prefetch = 0 : i64, scratch_operands = 1 : i64, tpu.core_type = #tpu.core_type<tc>, window_params = [{transform_indices = @transform_0, window_bounds = array<i64: 1, 256, 128>}, {transform_indices = @transform_1, window_bounds = array<i64: 128, 128>}, {pipeline_mode = #tpu.pipeline_mode<synchronous>, transform_indices = @transform_2, window_bounds = array<i64: 1, 128>}, {transform_indices = @transform_3, window_bounds = array<i64: 1, 256, 128>}]} {
    %c0_i32 = arith.constant 0 : i32
    %0 = arith.cmpi eq, %arg2, %c0_i32 : i32
    %1 = arith.extui %0 : i1 to i32
    %c0_i32_0 = arith.constant 0 : i32
    %2 = arith.cmpi ne, %1, %c0_i32_0 : i32
    scf.if %2 {
      %cst_11 = arith.constant 0.000000e+00 : f32
      %13 = vector.broadcast %cst_11 : f32 to vector<256x128xf32>
      %c0_12 = arith.constant 0 : index
      %c0_13 = arith.constant 0 : index
      %14 = vector.load %arg7[%c0_12, %c0_13] : memref<256x128xf32, #tpu.memory_space<vmem>>, vector<256x128xf32>
      tpu.vector_store %arg7[%c0_12, %c0_13], %13 {strides = array<i32>} : memref<256x128xf32, #tpu.memory_space<vmem>>, vector<256x128xf32>,
    } else {
    }
    %c0 = arith.constant 0 : index
    %c0_1 = arith.constant 0 : index
    %3 = vector.load %arg7[%c0, %c0_1] : memref<256x128xf32, #tpu.memory_space<vmem>>, vector<256x128xf32>
    %c0_2 = arith.constant 0 : index
    %c0_3 = arith.constant 0 : index
    %c0_4 = arith.constant 0 : index
    %4 = vector.load %arg3[%c0_2, %c0_3, %c0_4] : memref<1x256x128xbf16, #tpu.memory_space<vmem>>, vector<1x256x128xbf16>
    %5 = vector.shape_cast %4 : vector<1x256x128xbf16> to vector<256x128xbf16>
    %c0_5 = arith.constant 0 : index
    %c0_6 = arith.constant 0 : index
    %6 = vector.load %arg4[%c0_5, %c0_6] : memref<128x128xbf16, #tpu.memory_space<vmem>>, vector<128x128xbf16>
    %cst = arith.constant dense<0.000000e+00> : vector<256x128xf32>
    %7 = tpu.matmul %5, %6, %cst {dimension_numbers = #tpu.dot_dimension_numbers<[1], [0], [0], [1], [0, 0, 1, 1], [], []>} : vector<256x128xbf16>, vector<128x128xbf16>, vector<256x128xf32> -> vector<256x128xf32>
    %8 = arith.addf %3, %7 : vector<256x128xf32>
    %c0_7 = arith.constant 0 : index
    %c0_8 = arith.constant 0 : index
    %9 = vector.load %arg7[%c0_7, %c0_8] : memref<256x128xf32, #tpu.memory_space<vmem>>, vector<256x128xf32>
    tpu.vector_store %arg7[%c0_7, %c0_8], %8 {strides = array<i32>} : memref<256x128xf32, #tpu.memory_space<vmem>>, vector<256x128xf32>,
    %c0_i32_9 = arith.constant 0 : i32
    %10 = arith.cmpi eq, %arg2, %c0_i32_9 : i32
    %11 = arith.extui %10 : i1 to i32
    %c0_i32_10 = arith.constant 0 : i32
    %12 = arith.cmpi ne, %11, %c0_i32_10 : i32
    scf.if %12 {
      %c0_11 = arith.constant 0 : index
      %c0_12 = arith.constant 0 : index
      %13 = vector.load %arg7[%c0_11, %c0_12] : memref<256x128xf32, #tpu.memory_space<vmem>>, vector<256x128xf32>
      %c0_13 = arith.constant 0 : index
      %c0_14 = arith.constant 0 : index
      %14 = vector.load %arg5[%c0_13, %c0_14] : memref<1x128xf32, #tpu.memory_space<vmem>>, vector<1x128xf32>
      %15 = vector.broadcast %14 : vector<1x128xf32> to vector<256x128xf32>
      %16 = arith.addf %13, %15 : vector<256x128xf32>
      %cst_15 = arith.constant 0.000000e+00 : f32
      %17 = vector.broadcast %cst_15 : f32 to vector<256x128xf32>
      %18 = arith.maximumf %16, %17 : vector<256x128xf32>
      %19 = arith.truncf %18 : vector<256x128xf32> to vector<256x128xbf16>
      %c0_16 = arith.constant 0 : index
      %c0_17 = arith.constant 0 : index
      %c0_18 = arith.constant 0 : index
      %20 = vector.load %arg6[%c0_16, %c0_17, %c0_18] : memref<1x256x128xbf16, #tpu.memory_space<vmem>>, vector<1x256x128xbf16>
      %21 = vector.shape_cast %20 : vector<1x256x128xbf16> to vector<256x128xbf16>
      %22 = vector.shape_cast %19 : vector<256x128xbf16> to vector<1x256x128xbf16>
      tpu.vector_store %arg6[%c0_16, %c0_17, %c0_18], %22 {strides = array<i32>} : memref<1x256x128xbf16, #tpu.memory_space<vmem>>, vector<1x256x128xbf16>,
    } else {
    }
    return
  }
  func.func @transform_0(%arg0: i32, %arg1: i32, %arg2: i32) -> (i32, i32, i32) {
    %c0_i32 = arith.constant 0 : i32
    return %arg0, %arg1, %arg2 : i32, i32, i32
  }
  func.func @transform_1(%arg0: i32, %arg1: i32, %arg2: i32) -> (i32, i32) {
    %c0_i32 = arith.constant 0 : i32
    %c0_i32_0 = arith.constant 0 : i32
    return %arg2, %c0_i32 : i32, i32
  }
  func.func @transform_2(%arg0: i32, %arg1: i32, %arg2: i32) -> (i32, i32) {
    %c0_i32 = arith.constant 0 : i32
    %c0_i32_0 = arith.constant 0 : i32
    %c0_i32_1 = arith.constant 0 : i32
    return %c0_i32, %c0_i32_0 : i32, i32
  }
  func.func @transform_3(%arg0: i32, %arg1: i32, %arg2: i32) -> (i32, i32, i32) {
    %c0_i32 = arith.constant 0 : i32
    %c0_i32_0 = arith.constant 0 : i32
    return %arg0, %arg1, %c0_i32 : i32, i32, i32
  }
}

module attributes {stable_mosaic.version = 11 : i64} {
  func.func @_matmul_bias_act_kernel(%arg0: i32, %arg1: i32, %arg2: i32, %arg3: memref<1x64x128xbf16, #tpu.memory_space<vmem>>, %arg4: memref<128x128xbf16, #tpu.memory_space<vmem>>, %arg5: memref<1x128xf32, #tpu.memory_space<vmem>>, %arg6: memref<1x64x128xbf16, #tpu.memory_space<vmem>>, %arg7: memref<64x128xf32, #tpu.memory_space<vmem>>) attributes {dimension_semantics = [#tpu.dimension_semantics<parallel>, #tpu.dimension_semantics<parallel>, #tpu.dimension_semantics<arbitrary>], iteration_bounds = array<i64: 2, 1, 1>, scalar_prefetch = 0 : i64, scratch_operands = 1 : i64, tpu.core_type = #tpu.core_type<tc>, window_params = [{transform_indices = @transform_0, window_bounds = array<i64: 1, 64, 128>}, {transform_indices = @transform_1, window_bounds = array<i64: 128, 128>}, {pipeline_mode = #tpu.pipeline_mode<synchronous>, transform_indices = @transform_2, window_bounds = array<i64: 1, 128>}, {transform_indices = @transform_3, window_bounds = array<i64: 1, 64, 128>}]} {
    %c0_i32 = arith.constant 0 : i32
    %0 = arith.cmpi eq, %arg2, %c0_i32 : i32
    %1 = arith.extui %0 : i1 to i32
    %c0_i32_0 = arith.constant 0 : i32
    %2 = arith.cmpi ne, %1, %c0_i32_0 : i32
    scf.if %2 {
      %cst_11 = arith.constant 0.000000e+00 : f32
      %13 = vector.broadcast %cst_11 : f32 to vector<64x128xf32>
      %c0_12 = arith.constant 0 : index
      %c0_13 = arith.constant 0 : index
      %14 = vector.load %arg7[%c0_12, %c0_13] : memref<64x128xf32, #tpu.memory_space<vmem>>, vector<64x128xf32>
      tpu.vector_store %arg7[%c0_12, %c0_13], %13 {strides = array<i32>} : memref<64x128xf32, #tpu.memory_space<vmem>>, vector<64x128xf32>,
    } else {
    }
    %c0 = arith.constant 0 : index
    %c0_1 = arith.constant 0 : index
    %3 = vector.load %arg7[%c0, %c0_1] : memref<64x128xf32, #tpu.memory_space<vmem>>, vector<64x128xf32>
    %c0_2 = arith.constant 0 : index
    %c0_3 = arith.constant 0 : index
    %c0_4 = arith.constant 0 : index
    %4 = vector.load %arg3[%c0_2, %c0_3, %c0_4] : memref<1x64x128xbf16, #tpu.memory_space<vmem>>, vector<1x64x128xbf16>
    %5 = vector.shape_cast %4 : vector<1x64x128xbf16> to vector<64x128xbf16>
    %c0_5 = arith.constant 0 : index
    %c0_6 = arith.constant 0 : index
    %6 = vector.load %arg4[%c0_5, %c0_6] : memref<128x128xbf16, #tpu.memory_space<vmem>>, vector<128x128xbf16>
    %cst = arith.constant dense<0.000000e+00> : vector<64x128xf32>
    %7 = tpu.matmul %5, %6, %cst {dimension_numbers = #tpu.dot_dimension_numbers<[1], [0], [0], [1], [0, 0, 1, 1], [], []>} : vector<64x128xbf16>, vector<128x128xbf16>, vector<64x128xf32> -> vector<64x128xf32>
    %8 = arith.addf %3, %7 : vector<64x128xf32>
    %c0_7 = arith.constant 0 : index
    %c0_8 = arith.constant 0 : index
    %9 = vector.load %arg7[%c0_7, %c0_8] : memref<64x128xf32, #tpu.memory_space<vmem>>, vector<64x128xf32>
    tpu.vector_store %arg7[%c0_7, %c0_8], %8 {strides = array<i32>} : memref<64x128xf32, #tpu.memory_space<vmem>>, vector<64x128xf32>,
    %c0_i32_9 = arith.constant 0 : i32
    %10 = arith.cmpi eq, %arg2, %c0_i32_9 : i32
    %11 = arith.extui %10 : i1 to i32
    %c0_i32_10 = arith.constant 0 : i32
    %12 = arith.cmpi ne, %11, %c0_i32_10 : i32
    scf.if %12 {
      %c0_11 = arith.constant 0 : index
      %c0_12 = arith.constant 0 : index
      %13 = vector.load %arg7[%c0_11, %c0_12] : memref<64x128xf32, #tpu.memory_space<vmem>>, vector<64x128xf32>
      %c0_13 = arith.constant 0 : index
      %c0_14 = arith.constant 0 : index
      %14 = vector.load %arg5[%c0_13, %c0_14] : memref<1x128xf32, #tpu.memory_space<vmem>>, vector<1x128xf32>
      %15 = vector.broadcast %14 : vector<1x128xf32> to vector<64x128xf32>
      %16 = arith.addf %13, %15 : vector<64x128xf32>
      %cst_15 = arith.constant 0.000000e+00 : f32
      %17 = vector.broadcast %cst_15 : f32 to vector<64x128xf32>
      %18 = arith.maximumf %16, %17 : vector<64x128xf32>
      %19 = arith.truncf %18 : vector<64x128xf32> to vector<64x128xbf16>
      %c0_16 = arith.constant 0 : index
      %c0_17 = arith.constant 0 : index
      %c0_18 = arith.constant 0 : index
      %20 = vector.load %arg6[%c0_16, %c0_17, %c0_18] : memref<1x64x128xbf16, #tpu.memory_space<vmem>>, vector<1x64x128xbf16>
      %21 = vector.shape_cast %20 : vector<1x64x128xbf16> to vector<64x128xbf16>
      %22 = vector.shape_cast %19 : vector<64x128xbf16> to vector<1x64x128xbf16>
      tpu.vector_store %arg6[%c0_16, %c0_17, %c0_18], %22 {strides = array<i32>} : memref<1x64x128xbf16, #tpu.memory_space<vmem>>, vector<1x64x128xbf16>,
    } else {
    }
    return
  }
  func.func @transform_0(%arg0: i32, %arg1: i32, %arg2: i32) -> (i32, i32, i32) {
    %c0_i32 = arith.constant 0 : i32
    return %arg0, %arg1, %arg2 : i32, i32, i32
  }
  func.func @transform_1(%arg0: i32, %arg1: i32, %arg2: i32) -> (i32, i32) {
    %c0_i32 = arith.constant 0 : i32
    %c0_i32_0 = arith.constant 0 : i32
    return %arg2, %c0_i32 : i32, i32
  }
  func.func @transform_2(%arg0: i32, %arg1: i32, %arg2: i32) -> (i32, i32) {
    %c0_i32 = arith.constant 0 : i32
    %c0_i32_0 = arith.constant 0 : i32
    %c0_i32_1 = arith.constant 0 : i32
    return %c0_i32, %c0_i32_0 : i32, i32
  }
  func.func @transform_3(%arg0: i32, %arg1: i32, %arg2: i32) -> (i32, i32, i32) {
    %c0_i32 = arith.constant 0 : i32
    %c0_i32_0 = arith.constant 0 : i32
    return %arg0, %arg1, %c0_i32 : i32, i32, i32
  }
}

module attributes {stable_mosaic.version = 11 : i64} {
  func.func @_matmul_bias_act_kernel(%arg0: i32, %arg1: i32, %arg2: i32, %arg3: memref<1x16x256xbf16, #tpu.memory_space<vmem>>, %arg4: memref<256x128xbf16, #tpu.memory_space<vmem>>, %arg5: memref<1x128xf32, #tpu.memory_space<vmem>>, %arg6: memref<1x16x128xbf16, #tpu.memory_space<vmem>>, %arg7: memref<16x128xf32, #tpu.memory_space<vmem>>) attributes {dimension_semantics = [#tpu.dimension_semantics<parallel>, #tpu.dimension_semantics<parallel>, #tpu.dimension_semantics<arbitrary>], iteration_bounds = array<i64: 2, 1, 1>, scalar_prefetch = 0 : i64, scratch_operands = 1 : i64, tpu.core_type = #tpu.core_type<tc>, window_params = [{transform_indices = @transform_0, window_bounds = array<i64: 1, 16, 256>}, {transform_indices = @transform_1, window_bounds = array<i64: 256, 128>}, {pipeline_mode = #tpu.pipeline_mode<synchronous>, transform_indices = @transform_2, window_bounds = array<i64: 1, 128>}, {transform_indices = @transform_3, window_bounds = array<i64: 1, 16, 128>}]} {
    %c0_i32 = arith.constant 0 : i32
    %0 = arith.cmpi eq, %arg2, %c0_i32 : i32
    %1 = arith.extui %0 : i1 to i32
    %c0_i32_0 = arith.constant 0 : i32
    %2 = arith.cmpi ne, %1, %c0_i32_0 : i32
    scf.if %2 {
      %cst_11 = arith.constant 0.000000e+00 : f32
      %13 = vector.broadcast %cst_11 : f32 to vector<16x128xf32>
      %c0_12 = arith.constant 0 : index
      %c0_13 = arith.constant 0 : index
      %14 = vector.load %arg7[%c0_12, %c0_13] : memref<16x128xf32, #tpu.memory_space<vmem>>, vector<16x128xf32>
      tpu.vector_store %arg7[%c0_12, %c0_13], %13 {strides = array<i32>} : memref<16x128xf32, #tpu.memory_space<vmem>>, vector<16x128xf32>,
    } else {
    }
    %c0 = arith.constant 0 : index
    %c0_1 = arith.constant 0 : index
    %3 = vector.load %arg7[%c0, %c0_1] : memref<16x128xf32, #tpu.memory_space<vmem>>, vector<16x128xf32>
    %c0_2 = arith.constant 0 : index
    %c0_3 = arith.constant 0 : index
    %c0_4 = arith.constant 0 : index
    %4 = vector.load %arg3[%c0_2, %c0_3, %c0_4] : memref<1x16x256xbf16, #tpu.memory_space<vmem>>, vector<1x16x256xbf16>
    %5 = vector.shape_cast %4 : vector<1x16x256xbf16> to vector<16x256xbf16>
    %c0_5 = arith.constant 0 : index
    %c0_6 = arith.constant 0 : index
    %6 = vector.load %arg4[%c0_5, %c0_6] : memref<256x128xbf16, #tpu.memory_space<vmem>>, vector<256x128xbf16>
    %cst = arith.constant dense<0.000000e+00> : vector<16x128xf32>
    %7 = tpu.matmul %5, %6, %cst {dimension_numbers = #tpu.dot_dimension_numbers<[1], [0], [0], [1], [0, 0, 1, 1], [], []>} : vector<16x256xbf16>, vector<256x128xbf16>, vector<16x128xf32> -> vector<16x128xf32>
    %8 = arith.addf %3, %7 : vector<16x128xf32>
    %c0_7 = arith.constant 0 : index
    %c0_8 = arith.constant 0 : index
    %9 = vector.load %arg7[%c0_7, %c0_8] : memref<16x128xf32, #tpu.memory_space<vmem>>, vector<16x128xf32>
    tpu.vector_store %arg7[%c0_7, %c0_8], %8 {strides = array<i32>} : memref<16x128xf32, #tpu.memory_space<vmem>>, vector<16x128xf32>,
    %c0_i32_9 = arith.constant 0 : i32
    %10 = arith.cmpi eq, %arg2, %c0_i32_9 : i32
    %11 = arith.extui %10 : i1 to i32
    %c0_i32_10 = arith.constant 0 : i32
    %12 = arith.cmpi ne, %11, %c0_i32_10 : i32
    scf.if %12 {
      %c0_11 = arith.constant 0 : index
      %c0_12 = arith.constant 0 : index
      %13 = vector.load %arg7[%c0_11, %c0_12] : memref<16x128xf32, #tpu.memory_space<vmem>>, vector<16x128xf32>
      %c0_13 = arith.constant 0 : index
      %c0_14 = arith.constant 0 : index
      %14 = vector.load %arg5[%c0_13, %c0_14] : memref<1x128xf32, #tpu.memory_space<vmem>>, vector<1x128xf32>
      %15 = vector.broadcast %14 : vector<1x128xf32> to vector<16x128xf32>
      %16 = arith.addf %13, %15 : vector<16x128xf32>
      %cst_15 = arith.constant 0.000000e+00 : f32
      %17 = vector.broadcast %cst_15 : f32 to vector<16x128xf32>
      %18 = arith.maximumf %16, %17 : vector<16x128xf32>
      %19 = arith.truncf %18 : vector<16x128xf32> to vector<16x128xbf16>
      %c0_16 = arith.constant 0 : index
      %c0_17 = arith.constant 0 : index
      %c0_18 = arith.constant 0 : index
      %20 = vector.load %arg6[%c0_16, %c0_17, %c0_18] : memref<1x16x128xbf16, #tpu.memory_space<vmem>>, vector<1x16x128xbf16>
      %21 = vector.shape_cast %20 : vector<1x16x128xbf16> to vector<16x128xbf16>
      %22 = vector.shape_cast %19 : vector<16x128xbf16> to vector<1x16x128xbf16>
      tpu.vector_store %arg6[%c0_16, %c0_17, %c0_18], %22 {strides = array<i32>} : memref<1x16x128xbf16, #tpu.memory_space<vmem>>, vector<1x16x128xbf16>,
    } else {
    }
    return
  }
  func.func @transform_0(%arg0: i32, %arg1: i32, %arg2: i32) -> (i32, i32, i32) {
    %c0_i32 = arith.constant 0 : i32
    return %arg0, %arg1, %arg2 : i32, i32, i32
  }
  func.func @transform_1(%arg0: i32, %arg1: i32, %arg2: i32) -> (i32, i32) {
    %c0_i32 = arith.constant 0 : i32
    %c0_i32_0 = arith.constant 0 : i32
    return %arg2, %c0_i32 : i32, i32
  }
  func.func @transform_2(%arg0: i32, %arg1: i32, %arg2: i32) -> (i32, i32) {
    %c0_i32 = arith.constant 0 : i32
    %c0_i32_0 = arith.constant 0 : i32
    %c0_i32_1 = arith.constant 0 : i32
    return %c0_i32, %c0_i32_0 : i32, i32
  }
  func.func @transform_3(%arg0: i32, %arg1: i32, %arg2: i32) -> (i32, i32, i32) {
    %c0_i32 = arith.constant 0 : i32
    %c0_i32_0 = arith.constant 0 : i32
    return %arg0, %arg1, %c0_i32 : i32, i32, i32
  }
}

module attributes {stable_mosaic.version = 11 : i64} {
  func.func @_matmul_bias_act_kernel(%arg0: i32, %arg1: i32, %arg2: i32, %arg3: memref<1x64x512xbf16, #tpu.memory_space<vmem>>, %arg4: memref<512x128xbf16, #tpu.memory_space<vmem>>, %arg5: memref<1x128xf32, #tpu.memory_space<vmem>>, %arg6: memref<1x64x128xbf16, #tpu.memory_space<vmem>>, %arg7: memref<64x128xf32, #tpu.memory_space<vmem>>) attributes {dimension_semantics = [#tpu.dimension_semantics<parallel>, #tpu.dimension_semantics<parallel>, #tpu.dimension_semantics<arbitrary>], iteration_bounds = array<i64: 2, 1, 1>, scalar_prefetch = 0 : i64, scratch_operands = 1 : i64, tpu.core_type = #tpu.core_type<tc>, window_params = [{transform_indices = @transform_0, window_bounds = array<i64: 1, 64, 512>}, {transform_indices = @transform_1, window_bounds = array<i64: 512, 128>}, {pipeline_mode = #tpu.pipeline_mode<synchronous>, transform_indices = @transform_2, window_bounds = array<i64: 1, 128>}, {transform_indices = @transform_3, window_bounds = array<i64: 1, 64, 128>}]} {
    %c0_i32 = arith.constant 0 : i32
    %0 = arith.cmpi eq, %arg2, %c0_i32 : i32
    %1 = arith.extui %0 : i1 to i32
    %c0_i32_0 = arith.constant 0 : i32
    %2 = arith.cmpi ne, %1, %c0_i32_0 : i32
    scf.if %2 {
      %cst_11 = arith.constant 0.000000e+00 : f32
      %13 = vector.broadcast %cst_11 : f32 to vector<64x128xf32>
      %c0_12 = arith.constant 0 : index
      %c0_13 = arith.constant 0 : index
      %14 = vector.load %arg7[%c0_12, %c0_13] : memref<64x128xf32, #tpu.memory_space<vmem>>, vector<64x128xf32>
      tpu.vector_store %arg7[%c0_12, %c0_13], %13 {strides = array<i32>} : memref<64x128xf32, #tpu.memory_space<vmem>>, vector<64x128xf32>,
    } else {
    }
    %c0 = arith.constant 0 : index
    %c0_1 = arith.constant 0 : index
    %3 = vector.load %arg7[%c0, %c0_1] : memref<64x128xf32, #tpu.memory_space<vmem>>, vector<64x128xf32>
    %c0_2 = arith.constant 0 : index
    %c0_3 = arith.constant 0 : index
    %c0_4 = arith.constant 0 : index
    %4 = vector.load %arg3[%c0_2, %c0_3, %c0_4] : memref<1x64x512xbf16, #tpu.memory_space<vmem>>, vector<1x64x512xbf16>
    %5 = vector.shape_cast %4 : vector<1x64x512xbf16> to vector<64x512xbf16>
    %c0_5 = arith.constant 0 : index
    %c0_6 = arith.constant 0 : index
    %6 = vector.load %arg4[%c0_5, %c0_6] : memref<512x128xbf16, #tpu.memory_space<vmem>>, vector<512x128xbf16>
    %cst = arith.constant dense<0.000000e+00> : vector<64x128xf32>
    %7 = tpu.matmul %5, %6, %cst {dimension_numbers = #tpu.dot_dimension_numbers<[1], [0], [0], [1], [0, 0, 1, 1], [], []>} : vector<64x512xbf16>, vector<512x128xbf16>, vector<64x128xf32> -> vector<64x128xf32>
    %8 = arith.addf %3, %7 : vector<64x128xf32>
    %c0_7 = arith.constant 0 : index
    %c0_8 = arith.constant 0 : index
    %9 = vector.load %arg7[%c0_7, %c0_8] : memref<64x128xf32, #tpu.memory_space<vmem>>, vector<64x128xf32>
    tpu.vector_store %arg7[%c0_7, %c0_8], %8 {strides = array<i32>} : memref<64x128xf32, #tpu.memory_space<vmem>>, vector<64x128xf32>,
    %c0_i32_9 = arith.constant 0 : i32
    %10 = arith.cmpi eq, %arg2, %c0_i32_9 : i32
    %11 = arith.extui %10 : i1 to i32
    %c0_i32_10 = arith.constant 0 : i32
    %12 = arith.cmpi ne, %11, %c0_i32_10 : i32
    scf.if %12 {
      %c0_11 = arith.constant 0 : index
      %c0_12 = arith.constant 0 : index
      %13 = vector.load %arg7[%c0_11, %c0_12] : memref<64x128xf32, #tpu.memory_space<vmem>>, vector<64x128xf32>
      %c0_13 = arith.constant 0 : index
      %c0_14 = arith.constant 0 : index
      %14 = vector.load %arg5[%c0_13, %c0_14] : memref<1x128xf32, #tpu.memory_space<vmem>>, vector<1x128xf32>
      %15 = vector.broadcast %14 : vector<1x128xf32> to vector<64x128xf32>
      %16 = arith.addf %13, %15 : vector<64x128xf32>
      %cst_15 = arith.constant 0.000000e+00 : f32
      %17 = vector.broadcast %cst_15 : f32 to vector<64x128xf32>
      %18 = arith.maximumf %16, %17 : vector<64x128xf32>
      %19 = arith.truncf %18 : vector<64x128xf32> to vector<64x128xbf16>
      %c0_16 = arith.constant 0 : index
      %c0_17 = arith.constant 0 : index
      %c0_18 = arith.constant 0 : index
      %20 = vector.load %arg6[%c0_16, %c0_17, %c0_18] : memref<1x64x128xbf16, #tpu.memory_space<vmem>>, vector<1x64x128xbf16>
      %21 = vector.shape_cast %20 : vector<1x64x128xbf16> to vector<64x128xbf16>
      %22 = vector.shape_cast %19 : vector<64x128xbf16> to vector<1x64x128xbf16>
      tpu.vector_store %arg6[%c0_16, %c0_17, %c0_18], %22 {strides = array<i32>} : memref<1x64x128xbf16, #tpu.memory_space<vmem>>, vector<1x64x128xbf16>,
    } else {
    }
    return
  }
  func.func @transform_0(%arg0: i32, %arg1: i32, %arg2: i32) -> (i32, i32, i32) {
    %c0_i32 = arith.constant 0 : i32
    return %arg0, %arg1, %arg2 : i32, i32, i32
  }
  func.func @transform_1(%arg0: i32, %arg1: i32, %arg2: i32) -> (i32, i32) {
    %c0_i32 = arith.constant 0 : i32
    %c0_i32_0 = arith.constant 0 : i32
    return %arg2, %c0_i32 : i32, i32
  }
  func.func @transform_2(%arg0: i32, %arg1: i32, %arg2: i32) -> (i32, i32) {
    %c0_i32 = arith.constant 0 : i32
    %c0_i32_0 = arith.constant 0 : i32
    %c0_i32_1 = arith.constant 0 : i32
    return %c0_i32, %c0_i32_0 : i32, i32
  }
  func.func @transform_3(%arg0: i32, %arg1: i32, %arg2: i32) -> (i32, i32, i32) {
    %c0_i32 = arith.constant 0 : i32
    %c0_i32_0 = arith.constant 0 : i32
    return %arg0, %arg1, %c0_i32 : i32, i32, i32
  }
}

module attributes {stable_mosaic.version = 11 : i64} {
  func.func @_matmul_bias_act_kernel(%arg0: i32, %arg1: i32, %arg2: i32, %arg3: memref<1x256x256xbf16, #tpu.memory_space<vmem>>, %arg4: memref<256x128xbf16, #tpu.memory_space<vmem>>, %arg5: memref<1x128xf32, #tpu.memory_space<vmem>>, %arg6: memref<1x256x128xbf16, #tpu.memory_space<vmem>>, %arg7: memref<256x128xf32, #tpu.memory_space<vmem>>) attributes {dimension_semantics = [#tpu.dimension_semantics<parallel>, #tpu.dimension_semantics<parallel>, #tpu.dimension_semantics<arbitrary>], iteration_bounds = array<i64: 2, 1, 1>, scalar_prefetch = 0 : i64, scratch_operands = 1 : i64, tpu.core_type = #tpu.core_type<tc>, window_params = [{transform_indices = @transform_0, window_bounds = array<i64: 1, 256, 256>}, {transform_indices = @transform_1, window_bounds = array<i64: 256, 128>}, {pipeline_mode = #tpu.pipeline_mode<synchronous>, transform_indices = @transform_2, window_bounds = array<i64: 1, 128>}, {transform_indices = @transform_3, window_bounds = array<i64: 1, 256, 128>}]} {
    %c0_i32 = arith.constant 0 : i32
    %0 = arith.cmpi eq, %arg2, %c0_i32 : i32
    %1 = arith.extui %0 : i1 to i32
    %c0_i32_0 = arith.constant 0 : i32
    %2 = arith.cmpi ne, %1, %c0_i32_0 : i32
    scf.if %2 {
      %cst_11 = arith.constant 0.000000e+00 : f32
      %13 = vector.broadcast %cst_11 : f32 to vector<256x128xf32>
      %c0_12 = arith.constant 0 : index
      %c0_13 = arith.constant 0 : index
      %14 = vector.load %arg7[%c0_12, %c0_13] : memref<256x128xf32, #tpu.memory_space<vmem>>, vector<256x128xf32>
      tpu.vector_store %arg7[%c0_12, %c0_13], %13 {strides = array<i32>} : memref<256x128xf32, #tpu.memory_space<vmem>>, vector<256x128xf32>,
    } else {
    }
    %c0 = arith.constant 0 : index
    %c0_1 = arith.constant 0 : index
    %3 = vector.load %arg7[%c0, %c0_1] : memref<256x128xf32, #tpu.memory_space<vmem>>, vector<256x128xf32>
    %c0_2 = arith.constant 0 : index
    %c0_3 = arith.constant 0 : index
    %c0_4 = arith.constant 0 : index
    %4 = vector.load %arg3[%c0_2, %c0_3, %c0_4] : memref<1x256x256xbf16, #tpu.memory_space<vmem>>, vector<1x256x256xbf16>
    %5 = vector.shape_cast %4 : vector<1x256x256xbf16> to vector<256x256xbf16>
    %c0_5 = arith.constant 0 : index
    %c0_6 = arith.constant 0 : index
    %6 = vector.load %arg4[%c0_5, %c0_6] : memref<256x128xbf16, #tpu.memory_space<vmem>>, vector<256x128xbf16>
    %cst = arith.constant dense<0.000000e+00> : vector<256x128xf32>
    %7 = tpu.matmul %5, %6, %cst {dimension_numbers = #tpu.dot_dimension_numbers<[1], [0], [0], [1], [0, 0, 1, 1], [], []>} : vector<256x256xbf16>, vector<256x128xbf16>, vector<256x128xf32> -> vector<256x128xf32>
    %8 = arith.addf %3, %7 : vector<256x128xf32>
    %c0_7 = arith.constant 0 : index
    %c0_8 = arith.constant 0 : index
    %9 = vector.load %arg7[%c0_7, %c0_8] : memref<256x128xf32, #tpu.memory_space<vmem>>, vector<256x128xf32>
    tpu.vector_store %arg7[%c0_7, %c0_8], %8 {strides = array<i32>} : memref<256x128xf32, #tpu.memory_space<vmem>>, vector<256x128xf32>,
    %c0_i32_9 = arith.constant 0 : i32
    %10 = arith.cmpi eq, %arg2, %c0_i32_9 : i32
    %11 = arith.extui %10 : i1 to i32
    %c0_i32_10 = arith.constant 0 : i32
    %12 = arith.cmpi ne, %11, %c0_i32_10 : i32
    scf.if %12 {
      %c0_11 = arith.constant 0 : index
      %c0_12 = arith.constant 0 : index
      %13 = vector.load %arg7[%c0_11, %c0_12] : memref<256x128xf32, #tpu.memory_space<vmem>>, vector<256x128xf32>
      %c0_13 = arith.constant 0 : index
      %c0_14 = arith.constant 0 : index
      %14 = vector.load %arg5[%c0_13, %c0_14] : memref<1x128xf32, #tpu.memory_space<vmem>>, vector<1x128xf32>
      %15 = vector.broadcast %14 : vector<1x128xf32> to vector<256x128xf32>
      %16 = arith.addf %13, %15 : vector<256x128xf32>
      %cst_15 = arith.constant 0.000000e+00 : f32
      %17 = vector.broadcast %cst_15 : f32 to vector<256x128xf32>
      %18 = arith.maximumf %16, %17 : vector<256x128xf32>
      %19 = arith.truncf %18 : vector<256x128xf32> to vector<256x128xbf16>
      %c0_16 = arith.constant 0 : index
      %c0_17 = arith.constant 0 : index
      %c0_18 = arith.constant 0 : index
      %20 = vector.load %arg6[%c0_16, %c0_17, %c0_18] : memref<1x256x128xbf16, #tpu.memory_space<vmem>>, vector<1x256x128xbf16>
      %21 = vector.shape_cast %20 : vector<1x256x128xbf16> to vector<256x128xbf16>
      %22 = vector.shape_cast %19 : vector<256x128xbf16> to vector<1x256x128xbf16>
      tpu.vector_store %arg6[%c0_16, %c0_17, %c0_18], %22 {strides = array<i32>} : memref<1x256x128xbf16, #tpu.memory_space<vmem>>, vector<1x256x128xbf16>,
    } else {
    }
    return
  }
  func.func @transform_0(%arg0: i32, %arg1: i32, %arg2: i32) -> (i32, i32, i32) {
    %c0_i32 = arith.constant 0 : i32
    return %arg0, %arg1, %arg2 : i32, i32, i32
  }
  func.func @transform_1(%arg0: i32, %arg1: i32, %arg2: i32) -> (i32, i32) {
    %c0_i32 = arith.constant 0 : i32
    %c0_i32_0 = arith.constant 0 : i32
    return %arg2, %c0_i32 : i32, i32
  }
  func.func @transform_2(%arg0: i32, %arg1: i32, %arg2: i32) -> (i32, i32) {
    %c0_i32 = arith.constant 0 : i32
    %c0_i32_0 = arith.constant 0 : i32
    %c0_i32_1 = arith.constant 0 : i32
    return %c0_i32, %c0_i32_0 : i32, i32
  }
  func.func @transform_3(%arg0: i32, %arg1: i32, %arg2: i32) -> (i32, i32, i32) {
    %c0_i32 = arith.constant 0 : i32
    %c0_i32_0 = arith.constant 0 : i32
    return %arg0, %arg1, %c0_i32 : i32, i32, i32
  }
}

module attributes {stable_mosaic.version = 11 : i64} {
  func.func @_matmul_bias_act_kernel(%arg0: i32, %arg1: i32, %arg2: i32, %arg3: memref<1x256x128xbf16, #tpu.memory_space<vmem>>, %arg4: memref<128x128xbf16, #tpu.memory_space<vmem>>, %arg5: memref<1x128xf32, #tpu.memory_space<vmem>>, %arg6: memref<1x256x128xbf16, #tpu.memory_space<vmem>>, %arg7: memref<256x128xf32, #tpu.memory_space<vmem>>) attributes {dimension_semantics = [#tpu.dimension_semantics<parallel>, #tpu.dimension_semantics<parallel>, #tpu.dimension_semantics<arbitrary>], iteration_bounds = array<i64: 2, 1, 1>, scalar_prefetch = 0 : i64, scratch_operands = 1 : i64, tpu.core_type = #tpu.core_type<tc>, window_params = [{transform_indices = @transform_0, window_bounds = array<i64: 1, 256, 128>}, {transform_indices = @transform_1, window_bounds = array<i64: 128, 128>}, {pipeline_mode = #tpu.pipeline_mode<synchronous>, transform_indices = @transform_2, window_bounds = array<i64: 1, 128>}, {transform_indices = @transform_3, window_bounds = array<i64: 1, 256, 128>}]} {
    %c0_i32 = arith.constant 0 : i32
    %0 = arith.cmpi eq, %arg2, %c0_i32 : i32
    %1 = arith.extui %0 : i1 to i32
    %c0_i32_0 = arith.constant 0 : i32
    %2 = arith.cmpi ne, %1, %c0_i32_0 : i32
    scf.if %2 {
      %cst_11 = arith.constant 0.000000e+00 : f32
      %13 = vector.broadcast %cst_11 : f32 to vector<256x128xf32>
      %c0_12 = arith.constant 0 : index
      %c0_13 = arith.constant 0 : index
      %14 = vector.load %arg7[%c0_12, %c0_13] : memref<256x128xf32, #tpu.memory_space<vmem>>, vector<256x128xf32>
      tpu.vector_store %arg7[%c0_12, %c0_13], %13 {strides = array<i32>} : memref<256x128xf32, #tpu.memory_space<vmem>>, vector<256x128xf32>,
    } else {
    }
    %c0 = arith.constant 0 : index
    %c0_1 = arith.constant 0 : index
    %3 = vector.load %arg7[%c0, %c0_1] : memref<256x128xf32, #tpu.memory_space<vmem>>, vector<256x128xf32>
    %c0_2 = arith.constant 0 : index
    %c0_3 = arith.constant 0 : index
    %c0_4 = arith.constant 0 : index
    %4 = vector.load %arg3[%c0_2, %c0_3, %c0_4] : memref<1x256x128xbf16, #tpu.memory_space<vmem>>, vector<1x256x128xbf16>
    %5 = vector.shape_cast %4 : vector<1x256x128xbf16> to vector<256x128xbf16>
    %c0_5 = arith.constant 0 : index
    %c0_6 = arith.constant 0 : index
    %6 = vector.load %arg4[%c0_5, %c0_6] : memref<128x128xbf16, #tpu.memory_space<vmem>>, vector<128x128xbf16>
    %cst = arith.constant dense<0.000000e+00> : vector<256x128xf32>
    %7 = tpu.matmul %5, %6, %cst {dimension_numbers = #tpu.dot_dimension_numbers<[1], [0], [0], [1], [0, 0, 1, 1], [], []>} : vector<256x128xbf16>, vector<128x128xbf16>, vector<256x128xf32> -> vector<256x128xf32>
    %8 = arith.addf %3, %7 : vector<256x128xf32>
    %c0_7 = arith.constant 0 : index
    %c0_8 = arith.constant 0 : index
    %9 = vector.load %arg7[%c0_7, %c0_8] : memref<256x128xf32, #tpu.memory_space<vmem>>, vector<256x128xf32>
    tpu.vector_store %arg7[%c0_7, %c0_8], %8 {strides = array<i32>} : memref<256x128xf32, #tpu.memory_space<vmem>>, vector<256x128xf32>,
    %c0_i32_9 = arith.constant 0 : i32
    %10 = arith.cmpi eq, %arg2, %c0_i32_9 : i32
    %11 = arith.extui %10 : i1 to i32
    %c0_i32_10 = arith.constant 0 : i32
    %12 = arith.cmpi ne, %11, %c0_i32_10 : i32
    scf.if %12 {
      %c0_11 = arith.constant 0 : index
      %c0_12 = arith.constant 0 : index
      %13 = vector.load %arg7[%c0_11, %c0_12] : memref<256x128xf32, #tpu.memory_space<vmem>>, vector<256x128xf32>
      %c0_13 = arith.constant 0 : index
      %c0_14 = arith.constant 0 : index
      %14 = vector.load %arg5[%c0_13, %c0_14] : memref<1x128xf32, #tpu.memory_space<vmem>>, vector<1x128xf32>
      %15 = vector.broadcast %14 : vector<1x128xf32> to vector<256x128xf32>
      %16 = arith.addf %13, %15 : vector<256x128xf32>
      %17 = arith.truncf %16 : vector<256x128xf32> to vector<256x128xbf16>
      %c0_15 = arith.constant 0 : index
      %c0_16 = arith.constant 0 : index
      %c0_17 = arith.constant 0 : index
      %18 = vector.load %arg6[%c0_15, %c0_16, %c0_17] : memref<1x256x128xbf16, #tpu.memory_space<vmem>>, vector<1x256x128xbf16>
      %19 = vector.shape_cast %18 : vector<1x256x128xbf16> to vector<256x128xbf16>
      %20 = vector.shape_cast %17 : vector<256x128xbf16> to vector<1x256x128xbf16>
      tpu.vector_store %arg6[%c0_15, %c0_16, %c0_17], %20 {strides = array<i32>} : memref<1x256x128xbf16, #tpu.memory_space<vmem>>, vector<1x256x128xbf16>,
    } else {
    }
    return
  }
  func.func @transform_0(%arg0: i32, %arg1: i32, %arg2: i32) -> (i32, i32, i32) {
    %c0_i32 = arith.constant 0 : i32
    return %arg0, %arg1, %arg2 : i32, i32, i32
  }
  func.func @transform_1(%arg0: i32, %arg1: i32, %arg2: i32) -> (i32, i32) {
    %c0_i32 = arith.constant 0 : i32
    %c0_i32_0 = arith.constant 0 : i32
    return %arg2, %c0_i32 : i32, i32
  }
  func.func @transform_2(%arg0: i32, %arg1: i32, %arg2: i32) -> (i32, i32) {
    %c0_i32 = arith.constant 0 : i32
    %c0_i32_0 = arith.constant 0 : i32
    %c0_i32_1 = arith.constant 0 : i32
    return %c0_i32, %c0_i32_0 : i32, i32
  }
  func.func @transform_3(%arg0: i32, %arg1: i32, %arg2: i32) -> (i32, i32, i32) {
    %c0_i32 = arith.constant 0 : i32
    %c0_i32_0 = arith.constant 0 : i32
    return %arg0, %arg1, %c0_i32 : i32, i32, i32
  }
}

</mosaic_0001>

<llo_original>
// kernel: pretrained_model_forward.6
$region0: #{pretrained_model_forward.6}
  #allocation0 [shape = 'u32[]', space=smem, size = 0x4, offset = 0x4, fixed_abs, tag = 'smem constant byte address 0x4 - core index']
  #allocation1 [shape = 'u32[72,128]{1,0:T(1,128)}', space=vmem, size = 0x9000, scoped, tag = 'internal scratch']
  #allocation2 [shape = 'f32[256,128]{1,0:T(8,128)}', space=vmem, size = 0x20000, scoped, tag = 'scratch operand']
  %s0 = inlined_call_operand.vmem [shape: bf16[2,256,128], index: 0, kind: input, shape index: {}]
  %s1 = inlined_call_operand.vmem [shape: bf16[128,128], index: 1, kind: input, shape index: {}]
  %s2 = inlined_call_operand.vmem [shape: f32[1,128], index: 2, kind: input, shape index: {}]
  %s3 = inlined_call_operand.vmem [shape: bf16[2,256,128], index: 3, kind: output, shape index: {}]
  %s4 = sld [smem:[#allocation0]]
  $region53: #{pretrained_model_forward.6} parent=0
    _
  %s6 = ssub.s32 1, %s4
  %s7 = scalar_select 0, %s6, %s4
  loop: start=0, step=1, limit=4
  $region2: #{pretrained_model_forward.6} parent=0 // loop_pre_header
    _
  $region3: #{pretrained_model_forward.6} parent=0 // loop_header
    %s9 = sphi 0, %s13
    %p10 = scmp.ge.s32.totalorder %s9, 4
    %s16 = sphi 0, %s35
    %s17 = sphi 0, %s31
    %s18 = sphi 0, %s27
    %s19 = sphi 0, %s16
    %s20 = sphi 0, %s17
    %s21 = sphi 0, %s18
    %s22 = sphi 0, %s19
    %s23 = sphi 0, %s20
    %s24 = sphi 0, %s21
    %s42 = sphi 0, %s44
    %s45 = sphi 0, %s42
    %s46 = sphi 0, %s45
    %s62 = sphi 0, %s46
    %s68 = sphi 0, %s70
    %s71 = sphi 0, %s68
    %s72 = sphi 0, %s71
    %s88 = sphi 0, %s72
    %s92 = sphi 0, %s92
    %s94 = sphi 0, %s92
    %s95 = sphi 0, %s94
    %s109 = sphi 0, %s95
    %s117 = sphi 0, %s119
    %s120 = sphi 0, %s117
    %s121 = sphi 0, %s120
    %s137 = sphi 0, %s121
  $region4: #{pretrained_model_forward.6} parent=0 // loop_header_branch
    %12 = sbr.rel (%p10) target = $region8
  $region5: #{pretrained_model_forward.6} parent=0 // loop_body
    %s14 = ssub.s32 %s9, 1
    %s15 = ssub.s32 %s9, 2
    %s25 = sadd.s32 1, %s18
    %p26 = scmp.ge.s32.totalorder %s25, 1
    %s27 = scalar_select %p26, 0, %s25
    %s28 = sadd.s32 1, %s17
    %s29 = scalar_select %p26, %s28, %s17
    %p30 = scmp.ge.s32.totalorder %s29, 1
    %s31 = scalar_select %p30, 0, %s29
    %s32 = sadd.s32 1, %s16
    %s33 = scalar_select %p30, %s32, %s16
    %p34 = scmp.ge.s32.totalorder %s33, 2
    %s35 = scalar_select %p34, 0, %s33
    %s36 = ssub.s32 %s16, %s35
    %s37 = ssub.s32 %s17, %s31
    %s38 = sor.u32 %s36, %s37
    %s39 = ssub.s32 %s18, %s27
    %s40 = sor.u32 %s38, %s39
    %p41 = scmp.eq.s32.totalorder %s40, 0
    %s43 = sadd.s32 %s42, 1
    %s44 = scalar_select %p41, %s42, %s43
    %p47 = pneg %p41
    %p48 = scmp.eq.s32.totalorder %s9, 1
    %p49 = por %p47, %p48
    %p50 = scmp.ne.s32.totalorder %s42, %s45
    %p51 = scmp.eq.s32.totalorder %s9, 0
    %p52 = por %p50, %p51
    %p53 = scmp.ne.s32.totalorder %s42, %s45
    %p54 = scmp.eq.s32.totalorder %s14, 1
    %p55 = por %p53, %p54
    %p56 = scmp.ne.s32.totalorder %s45, %s46
    %p57 = scmp.eq.s32.totalorder %s14, 0
    %p58 = por %p56, %p57
    %p59 = scmp.ne.s32.totalorder %s45, %s46
    %p60 = scmp.eq.s32.totalorder %s15, 1
    %p61 = por %p59, %p60
    %p63 = scmp.ne.s32.totalorder %s46, %s62
    %p64 = scmp.eq.s32.totalorder %s15, 0
    %p65 = por %p63, %p64
    %s66 = ssub.s32 %s18, %s27
    %p67 = scmp.eq.s32.totalorder %s66, 0
    %s69 = sadd.s32 %s68, 1
    %s70 = scalar_select %p67, %s68, %s69
    %p73 = pneg %p67
    %p74 = scmp.eq.s32.totalorder %s9, 1
    %p75 = por %p73, %p74
    %p76 = scmp.ne.s32.totalorder %s68, %s71
    %p77 = scmp.eq.s32.totalorder %s9, 0
    %p78 = por %p76, %p77
    %p79 = scmp.ne.s32.totalorder %s68, %s71
    %p80 = scmp.eq.s32.totalorder %s14, 1
    %p81 = por %p79, %p80
    %p82 = scmp.ne.s32.totalorder %s71, %s72
    %p83 = scmp.eq.s32.totalorder %s14, 0
    %p84 = por %p82, %p83
    %p85 = scmp.ne.s32.totalorder %s71, %s72
    %p86 = scmp.eq.s32.totalorder %s15, 1
    %p87 = por %p85, %p86
    %p89 = scmp.ne.s32.totalorder %s72, %s88
    %p90 = scmp.eq.s32.totalorder %s15, 0
    %p91 = por %p89, %p90
    %s93 = sadd.s32 %s92, 1
    %p96 = scmp.eq.s32.totalorder %s9, 1
    %p97 = scmp.ne.s32.totalorder %s92, %s94
    %p98 = scmp.eq.s32.totalorder %s9, 0
    %p99 = por %p97, %p98
    %p100 = scmp.ne.s32.totalorder %s92, %s94
    %p101 = scmp.eq.s32.totalorder %s14, 1
    %p102 = por %p100, %p101
    %p103 = scmp.ne.s32.totalorder %s94, %s95
    %p104 = scmp.eq.s32.totalorder %s14, 0
    %p105 = por %p103, %p104
    %p106 = scmp.ne.s32.totalorder %s94, %s95
    %p107 = scmp.eq.s32.totalorder %s15, 1
    %p108 = por %p106, %p107
    %p110 = scmp.ne.s32.totalorder %s95, %s109
    %p111 = scmp.eq.s32.totalorder %s15, 0
    %p112 = por %p110, %p111
    %s113 = ssub.s32 %s16, %s35
    %s114 = ssub.s32 %s17, %s31
    %s115 = sor.u32 %s113, %s114
    %p116 = scmp.eq.s32.totalorder %s115, 0
    %s118 = sadd.s32 %s117, 1
    %s119 = scalar_select %p116, %s117, %s118
    %p122 = pneg %p116
    %p123 = scmp.eq.s32.totalorder %s9, 1
    %p124 = por %p122, %p123
    %p125 = scmp.ne.s32.totalorder %s117, %s120
    %p126 = scmp.eq.s32.totalorder %s9, 0
    %p127 = por %p125, %p126
    %p128 = scmp.ne.s32.totalorder %s117, %s120
    %p129 = scmp.eq.s32.totalorder %s14, 1
    %p130 = por %p128, %p129
    %p131 = scmp.ne.s32.totalorder %s120, %s121
    %p132 = scmp.eq.s32.totalorder %s14, 0
    %p133 = por %p131, %p132
    %p134 = scmp.ne.s32.totalorder %s120, %s121
    %p135 = scmp.eq.s32.totalorder %s15, 1
    %p136 = por %p134, %p135
    %p138 = scmp.ne.s32.totalorder %s121, %s137
    %p139 = scmp.eq.s32.totalorder %s15, 0
    %p140 = por %p138, %p139
    %p141 = scmp.le.s32.totalorder 1, %s9
    %p142 = scmp.lt.s32.totalorder %s9, 3
    %p143 = pnand %p141, %p142
    %p144 = pneg %p143
    // Predicated region
    $region9: #{pretrained_model_forward.6} parent=5 // pred_check
      _
    $region10: #{pretrained_model_forward.6} parent=5 // pred_check_branch
      %146 = sbr.rel (%p143) target = $region12
    $region11: #{pretrained_model_forward.6} parent=5 // pred_region
      %s147 = ssub.s32 %s9, 1
      // Predicated region
      $region13: #{pretrained_model_forward.6} parent=11 // pred_check
        %p148 = pneg %p84
      $region14: #{pretrained_model_forward.6} parent=11 // pred_check_branch
        %150 = sbr.rel (%p148) target = $region16
      $region15: #{pretrained_model_forward.6} parent=11 // pred_region
        %s151 = smul.u32 16, %s21
        %p152 = scmp.lt.s32.totalorder %s151, 15
        %s153 = scalar_select %p152, %s151, 15
        %s154 = smul.addr %s153, 4
        %s155 = scalar_lea.vmem %s1, %s154
        %s156 = smul.u32 16, %s21
      $region16: #{pretrained_model_forward.6} parent=11 // pred_fallthru
        _
      // Predicated region
      $region17: #{pretrained_model_forward.6} parent=11 // pred_check
        %p157 = pneg %p105
      $region18: #{pretrained_model_forward.6} parent=11 // pred_check_branch
        %159 = sbr.rel (%p157) target = $region20
      $region19: #{pretrained_model_forward.6} parent=11 // pred_region
        _
      $region20: #{pretrained_model_forward.6} parent=11 // pred_fallthru
        _
    $region12: #{pretrained_model_forward.6} parent=5 // pred_fallthru
      _
    %p160 = scmp.lt.s32.totalorder %s9, 2
    // Predicated region
    $region21: #{pretrained_model_forward.6} parent=5 // pred_check
      %p161 = pneg %p160
    $region22: #{pretrained_model_forward.6} parent=5 // pred_check_branch
      %163 = sbr.rel (%p161) target = $region24
    $region23: #{pretrained_model_forward.6} parent=5 // pred_region
      // Predicated region
      $region25: #{pretrained_model_forward.6} parent=23 // pred_check
        %p164 = pneg %p52
      $region26: #{pretrained_model_forward.6} parent=23 // pred_check_branch
        %166 = sbr.rel (%p164) target = $region28
      $region27: #{pretrained_model_forward.6} parent=23 // pred_region
        %s167 = smul.u32 32, %s17
        %p168 = scmp.lt.s32.totalorder %s16, 1
        %s169 = scalar_select %p168, %s16, 1
        %p170 = scmp.lt.s32.totalorder %s167, 31
        %s171 = scalar_select %p170, %s167, 31
        %p172 = scmp.lt.s32.totalorder %s18, 0
        %s173 = scalar_select %p172, %s18, 0
        %s174 = sadd.s32 %s173, %s171
        %s175 = smul.addr %s169, 32
        %s176 = sadd.s32 %s174, %s175
        %s177 = smul.addr %s176, 4
        %s178 = scalar_lea.vmem %s0, %s177
        %s179 = smul.u32 32, %s17
      $region28: #{pretrained_model_forward.6} parent=23 // pred_fallthru
        _
    $region24: #{pretrained_model_forward.6} parent=5 // pred_fallthru
      _
    %p180 = scmp.le.s32.totalorder 1, %s9
    %p181 = scmp.lt.s32.totalorder %s9, 3
    %p182 = pnand %p180, %p181
    %p183 = pneg %p182
    // Predicated region
    $region29: #{pretrained_model_forward.6} parent=5 // pred_check
      _
    $region30: #{pretrained_model_forward.6} parent=5 // pred_check_branch
      %185 = sbr.rel (%p182) target = $region32
    $region31: #{pretrained_model_forward.6} parent=5 // pred_region
      %s186 = ssub.s32 %s9, 1
      %s187 = smul.u32 32, %s20
      %p188 = scmp.lt.s32.totalorder %s19, 1
      %s189 = scalar_select %p188, %s19, 1
      %p190 = scmp.lt.s32.totalorder %s187, 31
      %s191 = scalar_select %p190, %s187, 31
      %p192 = scmp.lt.s32.totalorder %s21, 0
      %s193 = scalar_select %p192, %s21, 0
      %s194 = sadd.s32 %s193, %s191
      %s195 = smul.addr %s189, 32
      %s196 = sadd.s32 %s194, %s195
      %s197 = smul.addr %s196, 4
      %s198 = scalar_lea.vmem %s0, %s197
      %p199 = pneg %p58
      %p200 = pneg %p55
      %s201 = smul.u32 16, %s21
      %p202 = scmp.lt.s32.totalorder %s201, 15
      %s203 = scalar_select %p202, %s201, 15
      %s204 = smul.addr %s203, 4
      %s205 = scalar_lea.vmem %s1, %s204
      %p206 = pneg %p84
      %p207 = pneg %p81
      %p208 = pneg %p105
      %p209 = pneg %p102
      %p210 = pneg %p133
      %p211 = pneg %p130
      %s212 = smul.u32 32, %s20
      %p213 = scmp.lt.s32.totalorder %s19, 1
      %s214 = scalar_select %p213, %s19, 1
      %p215 = scmp.lt.s32.totalorder %s212, 31
      %s216 = scalar_select %p215, %s212, 31
      %s217 = smul.addr %s214, 32
      %s218 = sadd.s32 %s216, %s217
      %s219 = smul.addr %s218, 4
      %s220 = scalar_lea.vmem %s3, %s219
      %s221 = smul.u32 32, %s20
      %p222 = scmp.lt.s32.totalorder %s19, 1
      %s223 = scalar_select %p222, %s19, 1
      %p224 = scmp.lt.s32.totalorder %s221, 31
      %s225 = scalar_select %p224, %s221, 31
      %p226 = scmp.lt.s32.totalorder %s21, 0
      %s227 = scalar_select %p226, %s21, 0
      %s228 = sadd.s32 %s227, %s225
      %s229 = smul.addr %s223, 32
      %s230 = sadd.s32 %s228, %s229
      %s231 = smul.addr %s230, 4
      %s232 = scalar_lea.vmem %s0, %s231
      %s233 = smul.u32 32, %s20
      %s234 = smul.u32 16, %s21
      %p235 = scmp.lt.s32.totalorder %s234, 15
      %s236 = scalar_select %p235, %s234, 15
      %s237 = smul.addr %s236, 4
      %s238 = scalar_lea.vmem %s1, %s237
      %s239 = smul.u32 16, %s21
      %s240 = smul.u32 32, %s20
      %p241 = scmp.lt.s32.totalorder %s19, 1
      %s242 = scalar_select %p241, %s19, 1
      %p243 = scmp.lt.s32.totalorder %s240, 31
      %s244 = scalar_select %p243, %s240, 31
      %s245 = smul.addr %s242, 32
      %s246 = sadd.s32 %s244, %s245
      %s247 = smul.addr %s246, 4
      %s248 = scalar_lea.vmem %s3, %s247
      %s249 = smul.u32 32, %s20
      %p250 = scmp.eq.s32.totalorder %s21, 0
      // Predicated region
      $region33: #{pretrained_model_forward.6} parent=31 // pred_check
        %p251 = pneg %p250
      $region34: #{pretrained_model_forward.6} parent=31 // pred_check_branch
        %253 = sbr.rel (%p251) target = $region36
      $region35: #{pretrained_model_forward.6} parent=31 // pred_region
        %254 = vst [vmem:[#allocation2] sm:$0xff] 0.0
        %255 = vst [vmem:[#allocation2 + $0x8] sm:$0xff] 0.0
        %256 = vst [vmem:[#allocation2 + $0x10] sm:$0xff] 0.0
        %257 = vst [vmem:[#allocation2 + $0x18] sm:$0xff] 0.0
        %258 = vst [vmem:[#allocation2 + $0x20] sm:$0xff] 0.0
        %259 = vst [vmem:[#allocation2 + $0x28] sm:$0xff] 0.0
        %260 = vst [vmem:[#allocation2 + $0x30] sm:$0xff] 0.0
        %261 = vst [vmem:[#allocation2 + $0x38] sm:$0xff] 0.0
        %262 = vst [vmem:[#allocation2 + $0x40] sm:$0xff] 0.0
        %263 = vst [vmem:[#allocation2 + $0x48] sm:$0xff] 0.0
        %264 = vst [vmem:[#allocation2 + $0x50] sm:$0xff] 0.0
        %265 = vst [vmem:[#allocation2 + $0x58] sm:$0xff] 0.0
        %266 = vst [vmem:[#allocation2 + $0x60] sm:$0xff] 0.0
        %267 = vst [vmem:[#allocation2 + $0x68] sm:$0xff] 0.0
        %268 = vst [vmem:[#allocation2 + $0x70] sm:$0xff] 0.0
        %269 = vst [vmem:[#allocation2 + $0x78] sm:$0xff] 0.0
        %270 = vst [vmem:[#allocation2 + $0x80] sm:$0xff] 0.0
        %271 = vst [vmem:[#allocation2 + $0x88] sm:$0xff] 0.0
        %272 = vst [vmem:[#allocation2 + $0x90] sm:$0xff] 0.0
        %273 = vst [vmem:[#allocation2 + $0x98] sm:$0xff] 0.0
        %274 = vst [vmem:[#allocation2 + $0xa0] sm:$0xff] 0.0
        %275 = vst [vmem:[#allocation2 + $0xa8] sm:$0xff] 0.0
        %276 = vst [vmem:[#allocation2 + $0xb0] sm:$0xff] 0.0
        %277 = vst [vmem:[#allocation2 + $0xb8] sm:$0xff] 0.0
        %278 = vst [vmem:[#allocation2 + $0xc0] sm:$0xff] 0.0
        %279 = vst [vmem:[#allocation2 + $0xc8] sm:$0xff] 0.0
        %280 = vst [vmem:[#allocation2 + $0xd0] sm:$0xff] 0.0
        %281 = vst [vmem:[#allocation2 + $0xd8] sm:$0xff] 0.0
        %282 = vst [vmem:[#allocation2 + $0xe0] sm:$0xff] 0.0
        %283 = vst [vmem:[#allocation2 + $0xe8] sm:$0xff] 0.0
        %284 = vst [vmem:[#allocation2 + $0xf0] sm:$0xff] 0.0
        %285 = vst [vmem:[#allocation2 + $0xf8] sm:$0xff] 0.0
      $region36: #{pretrained_model_forward.6} parent=31 // pred_fallthru
        _
      %v286 = vld [vmem:[#allocation2] sm:$0xff]
      %v287 = vld [vmem:[#allocation2 + $0x8] sm:$0xff]
      %v288 = vld [vmem:[#allocation2 + $0x10] sm:$0xff]
      %v289 = vld [vmem:[#allocation2 + $0x18] sm:$0xff]
      %v290 = vld [vmem:[#allocation2 + $0x20] sm:$0xff]
      %v291 = vld [vmem:[#allocation2 + $0x28] sm:$0xff]
      %v292 = vld [vmem:[#allocation2 + $0x30] sm:$0xff]
      %v293 = vld [vmem:[#allocation2 + $0x38] sm:$0xff]
      %v294 = vld [vmem:[#allocation2 + $0x40] sm:$0xff]
      %v295 = vld [vmem:[#allocation2 + $0x48] sm:$0xff]
      %v296 = vld [vmem:[#allocation2 + $0x50] sm:$0xff]
      %v297 = vld [vmem:[#allocation2 + $0x58] sm:$0xff]
      %v298 = vld [vmem:[#allocation2 + $0x60] sm:$0xff]
      %v299 = vld [vmem:[#allocation2 + $0x68] sm:$0xff]
      %v300 = vld [vmem:[#allocation2 + $0x70] sm:$0xff]
      %v301 = vld [vmem:[#allocation2 + $0x78] sm:$0xff]
      %v302 = vld [vmem:[#allocation2 + $0x80] sm:$0xff]
      %v303 = vld [vmem:[#allocation2 + $0x88] sm:$0xff]
      %v304 = vld [vmem:[#allocation2 + $0x90] sm:$0xff]
      %v305 = vld [vmem:[#allocation2 + $0x98] sm:$0xff]
      %v306 = vld [vmem:[#allocation2 + $0xa0] sm:$0xff]
      %v307 = vld [vmem:[#allocation2 + $0xa8] sm:$0xff]
      %v308 = vld [vmem:[#allocation2 + $0xb0] sm:$0xff]
      %v309 = vld [vmem:[#allocation2 + $0xb8] sm:$0xff]
      %v310 = vld [vmem:[#allocation2 + $0xc0] sm:$0xff]
      %v311 = vld [vmem:[#allocation2 + $0xc8] sm:$0xff]
      %v312 = vld [vmem:[#allocation2 + $0xd0] sm:$0xff]
      %v313 = vld [vmem:[#allocation2 + $0xd8] sm:$0xff]
      %v314 = vld [vmem:[#allocation2 + $0xe0] sm:$0xff]
      %v315 = vld [vmem:[#allocation2 + $0xe8] sm:$0xff]
      %v316 = vld [vmem:[#allocation2 + $0xf0] sm:$0xff]
      %v317 = vld [vmem:[#allocation2 + $0xf8] sm:$0xff]
      %v318 = vld [vmem:[%s232] sm:$0xf]
      %v319 = vld [vmem:[%s232 + $0x4] sm:$0xf]
      %v320 = vld [vmem:[%s232 + $0x8] sm:$0xf]
      %v321 = vld [vmem:[%s232 + $0xc] sm:$0xf]
      %v322 = vld [vmem:[%s232 + $0x10] sm:$0xf]
      %v323 = vld [vmem:[%s232 + $0x14] sm:$0xf]
      %v324 = vld [vmem:[%s232 + $0x18] sm:$0xf]
      %v325 = vld [vmem:[%s232 + $0x1c] sm:$0xf]
      %v326 = vld [vmem:[%s232 + $0x20] sm:$0xf]
      %v327 = vld [vmem:[%s232 + $0x24] sm:$0xf]
      %v328 = vld [vmem:[%s232 + $0x28] sm:$0xf]
      %v329 = vld [vmem:[%s232 + $0x2c] sm:$0xf]
      %v330 = vld [vmem:[%s232 + $0x30] sm:$0xf]
      %v331 = vld [vmem:[%s232 + $0x34] sm:$0xf]
      %v332 = vld [vmem:[%s232 + $0x38] sm:$0xf]
      %v333 = vld [vmem:[%s232 + $0x3c] sm:$0xf]
      %v334 = vld [vmem:[%s232 + $0x40] sm:$0xf]
      %v335 = vld [vmem:[%s232 + $0x44] sm:$0xf]
      %v336 = vld [vmem:[%s232 + $0x48] sm:$0xf]
      %v337 = vld [vmem:[%s232 + $0x4c] sm:$0xf]
      %v338 = vld [vmem:[%s232 + $0x50] sm:$0xf]
      %v339 = vld [vmem:[%s232 + $0x54] sm:$0xf]
      %v340 = vld [vmem:[%s232 + $0x58] sm:$0xf]
      %v341 = vld [vmem:[%s232 + $0x5c] sm:$0xf]
      %v342 = vld [vmem:[%s232 + $0x60] sm:$0xf]
      %v343 = vld [vmem:[%s232 + $0x64] sm:$0xf]
      %v344 = vld [vmem:[%s232 + $0x68] sm:$0xf]
      %v345 = vld [vmem:[%s232 + $0x6c] sm:$0xf]
      %v346 = vld [vmem:[%s232 + $0x70] sm:$0xf]
      %v347 = vld [vmem:[%s232 + $0x74] sm:$0xf]
      %v348 = vld [vmem:[%s232 + $0x78] sm:$0xf]
      %v349 = vld [vmem:[%s232 + $0x7c] sm:$0xf]
      %v350 = vld [vmem:[%s238] sm:$0xf]
      %v351 = vld [vmem:[%s238 + $0x4] sm:$0xf]
      %v352 = vld [vmem:[%s238 + $0x8] sm:$0xf]
      %v353 = vld [vmem:[%s238 + $0xc] sm:$0xf]
      %v354 = vld [vmem:[%s238 + $0x10] sm:$0xf]
      %v355 = vld [vmem:[%s238 + $0x14] sm:$0xf]
      %v356 = vld [vmem:[%s238 + $0x18] sm:$0xf]
      %v357 = vld [vmem:[%s238 + $0x1c] sm:$0xf]
      %v358 = vld [vmem:[%s238 + $0x20] sm:$0xf]
      %v359 = vld [vmem:[%s238 + $0x24] sm:$0xf]
      %v360 = vld [vmem:[%s238 + $0x28] sm:$0xf]
      %v361 = vld [vmem:[%s238 + $0x2c] sm:$0xf]
      %v362 = vld [vmem:[%s238 + $0x30] sm:$0xf]
      %v363 = vld [vmem:[%s238 + $0x34] sm:$0xf]
      %v364 = vld [vmem:[%s238 + $0x38] sm:$0xf]
      %v365 = vld [vmem:[%s238 + $0x3c] sm:$0xf]
      %v398 = vunpack.c.l.b16 %v318
      %v399 = vunpack.c.l.b16 %v319
      %v400 = vunpack.c.l.b16 %v320
      %v401 = vunpack.c.l.b16 %v321
      %v402 = vunpack.c.l.b16 %v322
      %v403 = vunpack.c.l.b16 %v323
      %v404 = vunpack.c.l.b16 %v324
      %v405 = vunpack.c.l.b16 %v325
      %v406 = vunpack.c.l.b16 %v326
      %v407 = vunpack.c.l.b16 %v327
      %v408 = vunpack.c.l.b16 %v328
      %v409 = vunpack.c.l.b16 %v329
      %v410 = vunpack.c.l.b16 %v330
      %v411 = vunpack.c.l.b16 %v331
      %v412 = vunpack.c.l.b16 %v332
      %v413 = vunpack.c.l.b16 %v333
      %v414 = vunpack.c.l.b16 %v334
      %v415 = vunpack.c.l.b16 %v335
      %v416 = vunpack.c.l.b16 %v336
      %v417 = vunpack.c.l.b16 %v337
      %v418 = vunpack.c.l.b16 %v338
      %v419 = vunpack.c.l.b16 %v339
      %v420 = vunpack.c.l.b16 %v340
      %v421 = vunpack.c.l.b16 %v341
      %v422 = vunpack.c.l.b16 %v342
      %v423 = vunpack.c.l.b16 %v343
      %v424 = vunpack.c.l.b16 %v344
      %v425 = vunpack.c.l.b16 %v345
      %v426 = vunpack.c.l.b16 %v346
      %v427 = vunpack.c.l.b16 %v347
      %v428 = vunpack.c.l.b16 %v348
      %v429 = vunpack.c.l.b16 %v349
      %v430 = vpack.c.b16 %v399, %v398
      %v431 = vpack.c.b16 %v401, %v400
      %v432 = vpack.c.b16 %v403, %v402
      %v433 = vpack.c.b16 %v405, %v404
      %v434 = vpack.c.b16 %v407, %v406
      %v435 = vpack.c.b16 %v409, %v408
      %v436 = vpack.c.b16 %v411, %v410
      %v437 = vpack.c.b16 %v413, %v412
      %v438 = vpack.c.b16 %v415, %v414
      %v439 = vpack.c.b16 %v417, %v416
      %v440 = vpack.c.b16 %v419, %v418
      %v441 = vpack.c.b16 %v421, %v420
      %v442 = vpack.c.b16 %v423, %v422
      %v443 = vpack.c.b16 %v425, %v424
      %v444 = vpack.c.b16 %v427, %v426
      %v445 = vpack.c.b16 %v429, %v428
      %v478 = vunpack.c.l.b16 %v350
      %v479 = vunpack.c.l.b16 %v351
      %v480 = vunpack.c.l.b16 %v352
      %v481 = vunpack.c.l.b16 %v353
      %v482 = vunpack.c.l.b16 %v354
      %v483 = vunpack.c.l.b16 %v355
      %v484 = vunpack.c.l.b16 %v356
      %v485 = vunpack.c.l.b16 %v357
      %v486 = vunpack.c.l.b16 %v358
      %v487 = vunpack.c.l.b16 %v359
      %v488 = vunpack.c.l.b16 %v360
      %v489 = vunpack.c.l.b16 %v361
      %v490 = vunpack.c.l.b16 %v362
      %v491 = vunpack.c.l.b16 %v363
      %v492 = vunpack.c.l.b16 %v364
      %v493 = vunpack.c.l.b16 %v365
      %v494 = vpack.c.b16 %v479, %v478
      %v495 = vpack.c.b16 %v481, %v480
      %v496 = vpack.c.b16 %v483, %v482
      %v497 = vpack.c.b16 %v485, %v484
      %v498 = vpack.c.b16 %v487, %v486
      %v499 = vpack.c.b16 %v489, %v488
      %v500 = vpack.c.b16 %v491, %v490
      %v501 = vpack.c.b16 %v493, %v492
      %510 = vmatpush.bf16.msra.mxu0 %v501
      %511 = vmatpush.bf16.msra.mxu0 %v500
      %512 = vmatpush.bf16.msra.mxu0 %v499
      %513 = vmatpush.bf16.msra.mxu0 %v498
      %514 = vmatpush.bf16.msra.mxu0 %v497
      %515 = vmatpush.bf16.msra.mxu0 %v496
      %516 = vmatpush.bf16.msra.mxu0 %v495
      %517 = vmatpush.bf16.msra.mxu0 %v494
      %518 = vmatmul.bf16.gmra.mxu0 %v430
      %v519 = vpop.f32.mrf.mxu0
      %v520 = vadd.f32 0.0, %v519
      %v521 = vpop.f32.mrf.mxu0
      %v522 = vadd.f32 0.0, %v521
      %523 = vmatmul.bf16.gmra.mxu0 %v431
      %v524 = vpop.f32.mrf.mxu0
      %v525 = vadd.f32 0.0, %v524
      %v526 = vpop.f32.mrf.mxu0
      %v527 = vadd.f32 0.0, %v526
      %528 = vmatmul.bf16.gmra.mxu0 %v432
      %v529 = vpop.f32.mrf.mxu0
      %v530 = vadd.f32 0.0, %v529
      %v531 = vpop.f32.mrf.mxu0
      %v532 = vadd.f32 0.0, %v531
      %533 = vmatmul.bf16.gmra.mxu0 %v433
      %v534 = vpop.f32.mrf.mxu0
      %v535 = vadd.f32 0.0, %v534
      %v536 = vpop.f32.mrf.mxu0
      %v537 = vadd.f32 0.0, %v536
      %538 = vmatmul.bf16.gmra.mxu0 %v434
      %v539 = vpop.f32.mrf.mxu0
      %v540 = vadd.f32 0.0, %v539
      %v541 = vpop.f32.mrf.mxu0
      %v542 = vadd.f32 0.0, %v541
      %543 = vmatmul.bf16.gmra.mxu0 %v435
      %v544 = vpop.f32.mrf.mxu0
      %v545 = vadd.f32 0.0, %v544
      %v546 = vpop.f32.mrf.mxu0
      %v547 = vadd.f32 0.0, %v546
      %548 = vmatmul.bf16.gmra.mxu0 %v436
      %v549 = vpop.f32.mrf.mxu0
      %v550 = vadd.f32 0.0, %v549
      %v551 = vpop.f32.mrf.mxu0
      %v552 = vadd.f32 0.0, %v551
      %553 = vmatmul.bf16.gmra.mxu0 %v437
      %v554 = vpop.f32.mrf.mxu0
      %v555 = vadd.f32 0.0, %v554
      %v556 = vpop.f32.mrf.mxu0
      %v557 = vadd.f32 0.0, %v556
      %558 = vmatmul.bf16.gmra.mxu0 %v438
      %v559 = vpop.f32.mrf.mxu0
      %v560 = vadd.f32 0.0, %v559
      %v561 = vpop.f32.mrf.mxu0
      %v562 = vadd.f32 0.0, %v561
      %563 = vmatmul.bf16.gmra.mxu0 %v439
      %v564 = vpop.f32.mrf.mxu0
      %v565 = vadd.f32 0.0, %v564
      %v566 = vpop.f32.mrf.mxu0
      %v567 = vadd.f32 0.0, %v566
      %568 = vmatmul.bf16.gmra.mxu0 %v440
      %v569 = vpop.f32.mrf.mxu0
      %v570 = vadd.f32 0.0, %v569
      %v571 = vpop.f32.mrf.mxu0
      %v572 = vadd.f32 0.0, %v571
      %573 = vmatmul.bf16.gmra.mxu0 %v441
      %v574 = vpop.f32.mrf.mxu0
      %v575 = vadd.f32 0.0, %v574
      %v576 = vpop.f32.mrf.mxu0
      %v577 = vadd.f32 0.0, %v576
      %578 = vmatmul.bf16.gmra.mxu0 %v442
      %v579 = vpop.f32.mrf.mxu0
      %v580 = vadd.f32 0.0, %v579
      %v581 = vpop.f32.mrf.mxu0
      %v582 = vadd.f32 0.0, %v581
      %583 = vmatmul.bf16.gmra.mxu0 %v443
      %v584 = vpop.f32.mrf.mxu0
      %v585 = vadd.f32 0.0, %v584
      %v586 = vpop.f32.mrf.mxu0
      %v587 = vadd.f32 0.0, %v586
      %588 = vmatmul.bf16.gmra.mxu0 %v444
      %v589 = vpop.f32.mrf.mxu0
      %v590 = vadd.f32 0.0, %v589
      %v591 = vpop.f32.mrf.mxu0
      %v592 = vadd.f32 0.0, %v591
      %593 = vmatmul.bf16.gmra.mxu0 %v445
      %v594 = vpop.f32.mrf.mxu0
      %v595 = vadd.f32 0.0, %v594
      %v596 = vpop.f32.mrf.mxu0
      %v597 = vadd.f32 0.0, %v596
      %598 = vdwg.mxu0
      %v599 = vadd.f32 %v286, %v520
      %v600 = vadd.f32 %v287, %v522
      %v601 = vadd.f32 %v288, %v525
      %v602 = vadd.f32 %v289, %v527
      %v603 = vadd.f32 %v290, %v530
      %v604 = vadd.f32 %v291, %v532
      %v605 = vadd.f32 %v292, %v535
      %v606 = vadd.f32 %v293, %v537
      %v607 = vadd.f32 %v294, %v540
      %v608 = vadd.f32 %v295, %v542
      %v609 = vadd.f32 %v296, %v545
      %v610 = vadd.f32 %v297, %v547
      %v611 = vadd.f32 %v298, %v550
      %v612 = vadd.f32 %v299, %v552
      %v613 = vadd.f32 %v300, %v555
      %v614 = vadd.f32 %v301, %v557
      %v615 = vadd.f32 %v302, %v560
      %v616 = vadd.f32 %v303, %v562
      %v617 = vadd.f32 %v304, %v565
      %v618 = vadd.f32 %v305, %v567
      %v619 = vadd.f32 %v306, %v570
      %v620 = vadd.f32 %v307, %v572
      %v621 = vadd.f32 %v308, %v575
      %v622 = vadd.f32 %v309, %v577
      %v623 = vadd.f32 %v310, %v580
      %v624 = vadd.f32 %v311, %v582
      %v625 = vadd.f32 %v312, %v585
      %v626 = vadd.f32 %v313, %v587
      %v627 = vadd.f32 %v314, %v590
      %v628 = vadd.f32 %v315, %v592
      %v629 = vadd.f32 %v316, %v595
      %v630 = vadd.f32 %v317, %v597
      %631 = vst [vmem:[#allocation2] sm:$0xff] %v599
      %632 = vst [vmem:[#allocation2 + $0x8] sm:$0xff] %v600
      %633 = vst [vmem:[#allocation2 + $0x10] sm:$0xff] %v601
      %634 = vst [vmem:[#allocation2 + $0x18] sm:$0xff] %v602
      %635 = vst [vmem:[#allocation2 + $0x20] sm:$0xff] %v603
      %636 = vst [vmem:[#allocation2 + $0x28] sm:$0xff] %v604
      %637 = vst [vmem:[#allocation2 + $0x30] sm:$0xff] %v605
      %638 = vst [vmem:[#allocation2 + $0x38] sm:$0xff] %v606
      %639 = vst [vmem:[#allocation2 + $0x40] sm:$0xff] %v607
      %640 = vst [vmem:[#allocation2 + $0x48] sm:$0xff] %v608
      %641 = vst [vmem:[#allocation2 + $0x50] sm:$0xff] %v609
      %642 = vst [vmem:[#allocation2 + $0x58] sm:$0xff] %v610
      %643 = vst [vmem:[#allocation2 + $0x60] sm:$0xff] %v611
      %644 = vst [vmem:[#allocation2 + $0x68] sm:$0xff] %v612
      %645 = vst [vmem:[#allocation2 + $0x70] sm:$0xff] %v613
      %646 = vst [vmem:[#allocation2 + $0x78] sm:$0xff] %v614
      %647 = vst [vmem:[#allocation2 + $0x80] sm:$0xff] %v615
      %648 = vst [vmem:[#allocation2 + $0x88] sm:$0xff] %v616
      %649 = vst [vmem:[#allocation2 + $0x90] sm:$0xff] %v617
      %650 = vst [vmem:[#allocation2 + $0x98] sm:$0xff] %v618
      %651 = vst [vmem:[#allocation2 + $0xa0] sm:$0xff] %v619
      %652 = vst [vmem:[#allocation2 + $0xa8] sm:$0xff] %v620
      %653 = vst [vmem:[#allocation2 + $0xb0] sm:$0xff] %v621
      %654 = vst [vmem:[#allocation2 + $0xb8] sm:$0xff] %v622
      %655 = vst [vmem:[#allocation2 + $0xc0] sm:$0xff] %v623
      %656 = vst [vmem:[#allocation2 + $0xc8] sm:$0xff] %v624
      %657 = vst [vmem:[#allocation2 + $0xd0] sm:$0xff] %v625
      %658 = vst [vmem:[#allocation2 + $0xd8] sm:$0xff] %v626
      %659 = vst [vmem:[#allocation2 + $0xe0] sm:$0xff] %v627
      %660 = vst [vmem:[#allocation2 + $0xe8] sm:$0xff] %v628
      %661 = vst [vmem:[#allocation2 + $0xf0] sm:$0xff] %v629
      %662 = vst [vmem:[#allocation2 + $0xf8] sm:$0xff] %v630
      // Predicated region
      $region37: #{pretrained_model_forward.6} parent=31 // pred_check
        %p663 = pneg %p250
      $region38: #{pretrained_model_forward.6} parent=31 // pred_check_branch
        %665 = sbr.rel (%p663) target = $region40
      $region39: #{pretrained_model_forward.6} parent=31 // pred_region
        %v666 = vld [vmem:[#allocation2] sm:$0xff]
        %v667 = vld [vmem:[#allocation2 + $0x8] sm:$0xff]
        %v668 = vld [vmem:[#allocation2 + $0x10] sm:$0xff]
        %v669 = vld [vmem:[#allocation2 + $0x18] sm:$0xff]
        %v670 = vld [vmem:[#allocation2 + $0x20] sm:$0xff]
        %v671 = vld [vmem:[#allocation2 + $0x28] sm:$0xff]
        %v672 = vld [vmem:[#allocation2 + $0x30] sm:$0xff]
        %v673 = vld [vmem:[#allocation2 + $0x38] sm:$0xff]
        %v674 = vld [vmem:[#allocation2 + $0x40] sm:$0xff]
        %v675 = vld [vmem:[#allocation2 + $0x48] sm:$0xff]
        %v676 = vld [vmem:[#allocation2 + $0x50] sm:$0xff]
        %v677 = vld [vmem:[#allocation2 + $0x58] sm:$0xff]
        %v678 = vld [vmem:[#allocation2 + $0x60] sm:$0xff]
        %v679 = vld [vmem:[#allocation2 + $0x68] sm:$0xff]
        %v680 = vld [vmem:[#allocation2 + $0x70] sm:$0xff]
        %v681 = vld [vmem:[#allocation2 + $0x78] sm:$0xff]
        %v682 = vld [vmem:[#allocation2 + $0x80] sm:$0xff]
        %v683 = vld [vmem:[#allocation2 + $0x88] sm:$0xff]
        %v684 = vld [vmem:[#allocation2 + $0x90] sm:$0xff]
        %v685 = vld [vmem:[#allocation2 + $0x98] sm:$0xff]
        %v686 = vld [vmem:[#allocation2 + $0xa0] sm:$0xff]
        %v687 = vld [vmem:[#allocation2 + $0xa8] sm:$0xff]
        %v688 = vld [vmem:[#allocation2 + $0xb0] sm:$0xff]
        %v689 = vld [vmem:[#allocation2 + $0xb8] sm:$0xff]
        %v690 = vld [vmem:[#allocation2 + $0xc0] sm:$0xff]
        %v691 = vld [vmem:[#allocation2 + $0xc8] sm:$0xff]
        %v692 = vld [vmem:[#allocation2 + $0xd0] sm:$0xff]
        %v693 = vld [vmem:[#allocation2 + $0xd8] sm:$0xff]
        %v694 = vld [vmem:[#allocation2 + $0xe0] sm:$0xff]
        %v695 = vld [vmem:[#allocation2 + $0xe8] sm:$0xff]
        %v696 = vld [vmem:[#allocation2 + $0xf0] sm:$0xff]
        %v697 = vld [vmem:[#allocation2 + $0xf8] sm:$0xff]
        %v698 = vld [vmem:[%s2] sm:$0x1]
        %v700 = vperm.slane %v698, 0
        %v702 = vadd.f32 %v666, %v700
        %v703 = vadd.f32 %v667, %v700
        %v704 = vadd.f32 %v668, %v700
        %v705 = vadd.f32 %v669, %v700
        %v706 = vadd.f32 %v670, %v700
        %v707 = vadd.f32 %v671, %v700
        %v708 = vadd.f32 %v672, %v700
        %v709 = vadd.f32 %v673, %v700
        %v710 = vadd.f32 %v674, %v700
        %v711 = vadd.f32 %v675, %v700
        %v712 = vadd.f32 %v676, %v700
        %v713 = vadd.f32 %v677, %v700
        %v714 = vadd.f32 %v678, %v700
        %v715 = vadd.f32 %v679, %v700
        %v716 = vadd.f32 %v680, %v700
        %v717 = vadd.f32 %v681, %v700
        %v718 = vadd.f32 %v682, %v700
        %v719 = vadd.f32 %v683, %v700
        %v720 = vadd.f32 %v684, %v700
        %v721 = vadd.f32 %v685, %v700
        %v722 = vadd.f32 %v686, %v700
        %v723 = vadd.f32 %v687, %v700
        %v724 = vadd.f32 %v688, %v700
        %v725 = vadd.f32 %v689, %v700
        %v726 = vadd.f32 %v690, %v700
        %v727 = vadd.f32 %v691, %v700
        %v728 = vadd.f32 %v692, %v700
        %v729 = vadd.f32 %v693, %v700
        %v730 = vadd.f32 %v694, %v700
        %v731 = vadd.f32 %v695, %v700
        %v732 = vadd.f32 %v696, %v700
        %v733 = vadd.f32 %v697, %v700
        %v734 = vmax.f32 %v702, 0.0
        %v735 = vmax.f32 %v703, 0.0
        %v736 = vmax.f32 %v704, 0.0
        %v737 = vmax.f32 %v705, 0.0
        %v738 = vmax.f32 %v706, 0.0
        %v739 = vmax.f32 %v707, 0.0
        %v740 = vmax.f32 %v708, 0.0
        %v741 = vmax.f32 %v709, 0.0
        %v742 = vmax.f32 %v710, 0.0
        %v743 = vmax.f32 %v711, 0.0
        %v744 = vmax.f32 %v712, 0.0
        %v745 = vmax.f32 %v713, 0.0
        %v746 = vmax.f32 %v714, 0.0
        %v747 = vmax.f32 %v715, 0.0
        %v748 = vmax.f32 %v716, 0.0
        %v749 = vmax.f32 %v717, 0.0
        %v750 = vmax.f32 %v718, 0.0
        %v751 = vmax.f32 %v719, 0.0
        %v752 = vmax.f32 %v720, 0.0
        %v753 = vmax.f32 %v721, 0.0
        %v754 = vmax.f32 %v722, 0.0
        %v755 = vmax.f32 %v723, 0.0
        %v756 = vmax.f32 %v724, 0.0
        %v757 = vmax.f32 %v725, 0.0
        %v758 = vmax.f32 %v726, 0.0
        %v759 = vmax.f32 %v727, 0.0
        %v760 = vmax.f32 %v728, 0.0
        %v761 = vmax.f32 %v729, 0.0
        %v762 = vmax.f32 %v730, 0.0
        %v763 = vmax.f32 %v731, 0.0
        %v764 = vmax.f32 %v732, 0.0
        %v765 = vmax.f32 %v733, 0.0
        %v766 = vpack.c.bf16 %v734, %v734
        %v767 = vpack.c.bf16 %v735, %v735
        %v768 = vpack.c.bf16 %v736, %v736
        %v769 = vpack.c.bf16 %v737, %v737
        %v770 = vpack.c.bf16 %v738, %v738
        %v771 = vpack.c.bf16 %v739, %v739
        %v772 = vpack.c.bf16 %v740, %v740
        %v773 = vpack.c.bf16 %v741, %v741
        %v774 = vpack.c.bf16 %v742, %v742
        %v775 = vpack.c.bf16 %v743, %v743
        %v776 = vpack.c.bf16 %v744, %v744
        %v777 = vpack.c.bf16 %v745, %v745
        %v778 = vpack.c.bf16 %v746, %v746
        %v779 = vpack.c.bf16 %v747, %v747
        %v780 = vpack.c.bf16 %v748, %v748
        %v781 = vpack.c.bf16 %v749, %v749
        %v782 = vpack.c.bf16 %v750, %v750
        %v783 = vpack.c.bf16 %v751, %v751
        %v784 = vpack.c.bf16 %v752, %v752
        %v785 = vpack.c.bf16 %v753, %v753
        %v786 = vpack.c.bf16 %v754, %v754
        %v787 = vpack.c.bf16 %v755, %v755
        %v788 = vpack.c.bf16 %v756, %v756
        %v789 = vpack.c.bf16 %v757, %v757
        %v790 = vpack.c.bf16 %v758, %v758
        %v791 = vpack.c.bf16 %v759, %v759
        %v792 = vpack.c.bf16 %v760, %v760
        %v793 = vpack.c.bf16 %v761, %v761
        %v794 = vpack.c.bf16 %v762, %v762
        %v795 = vpack.c.bf16 %v763, %v763
        %v796 = vpack.c.bf16 %v764, %v764
        %v797 = vpack.c.bf16 %v765, %v765
        %798 = vst [vmem:[%s248] sm:$0xf] %v766
        %799 = vst [vmem:[%s248 + $0x4] sm:$0xf] %v767
        %800 = vst [vmem:[%s248 + $0x8] sm:$0xf] %v768
        %801 = vst [vmem:[%s248 + $0xc] sm:$0xf] %v769
        %802 = vst [vmem:[%s248 + $0x10] sm:$0xf] %v770
        %803 = vst [vmem:[%s248 + $0x14] sm:$0xf] %v771
        %804 = vst [vmem:[%s248 + $0x18] sm:$0xf] %v772
        %805 = vst [vmem:[%s248 + $0x1c] sm:$0xf] %v773
        %806 = vst [vmem:[%s248 + $0x20] sm:$0xf] %v774
        %807 = vst [vmem:[%s248 + $0x24] sm:$0xf] %v775
        %808 = vst [vmem:[%s248 + $0x28] sm:$0xf] %v776
        %809 = vst [vmem:[%s248 + $0x2c] sm:$0xf] %v777
        %810 = vst [vmem:[%s248 + $0x30] sm:$0xf] %v778
        %811 = vst [vmem:[%s248 + $0x34] sm:$0xf] %v779
        %812 = vst [vmem:[%s248 + $0x38] sm:$0xf] %v780
        %813 = vst [vmem:[%s248 + $0x3c] sm:$0xf] %v781
        %814 = vst [vmem:[%s248 + $0x40] sm:$0xf] %v782
        %815 = vst [vmem:[%s248 + $0x44] sm:$0xf] %v783
        %816 = vst [vmem:[%s248 + $0x48] sm:$0xf] %v784
        %817 = vst [vmem:[%s248 + $0x4c] sm:$0xf] %v785
        %818 = vst [vmem:[%s248 + $0x50] sm:$0xf] %v786
        %819 = vst [vmem:[%s248 + $0x54] sm:$0xf] %v787
        %820 = vst [vmem:[%s248 + $0x58] sm:$0xf] %v788
        %821 = vst [vmem:[%s248 + $0x5c] sm:$0xf] %v789
        %822 = vst [vmem:[%s248 + $0x60] sm:$0xf] %v790
        %823 = vst [vmem:[%s248 + $0x64] sm:$0xf] %v791
        %824 = vst [vmem:[%s248 + $0x68] sm:$0xf] %v792
        %825 = vst [vmem:[%s248 + $0x6c] sm:$0xf] %v793
        %826 = vst [vmem:[%s248 + $0x70] sm:$0xf] %v794
        %827 = vst [vmem:[%s248 + $0x74] sm:$0xf] %v795
        %828 = vst [vmem:[%s248 + $0x78] sm:$0xf] %v796
        %829 = vst [vmem:[%s248 + $0x7c] sm:$0xf] %v797
      $region40: #{pretrained_model_forward.6} parent=31 // pred_fallthru
        _
      %s830 = smul.u32 32, %s20
      %p831 = scmp.lt.s32.totalorder %s19, 1
      %s832 = scalar_select %p831, %s19, 1
      %p833 = scmp.lt.s32.totalorder %s830, 31
      %s834 = scalar_select %p833, %s830, 31
      %s835 = smul.addr %s832, 32
      %s836 = sadd.s32 %s834, %s835
      %s837 = smul.addr %s836, 4
      %s838 = scalar_lea.vmem %s3, %s837
      // Predicated region
      $region41: #{pretrained_model_forward.6} parent=31 // pred_check
        %p839 = pneg %p130
      $region42: #{pretrained_model_forward.6} parent=31 // pred_check_branch
        %841 = sbr.rel (%p839) target = $region44
      $region43: #{pretrained_model_forward.6} parent=31 // pred_region
        %s842 = smul.u32 32, %s20
      $region44: #{pretrained_model_forward.6} parent=31 // pred_fallthru
        _
    $region32: #{pretrained_model_forward.6} parent=5 // pred_fallthru
      _
    %p843 = scmp.le.s32.totalorder 2, %s9
    // Predicated region
    $region45: #{pretrained_model_forward.6} parent=5 // pred_check
      %p844 = pneg %p843
    $region46: #{pretrained_model_forward.6} parent=5 // pred_check_branch
      %846 = sbr.rel (%p844) target = $region48
    $region47: #{pretrained_model_forward.6} parent=5 // pred_region
      %s847 = ssub.s32 %s9, 2
      // Predicated region
      $region49: #{pretrained_model_forward.6} parent=47 // pred_check
        %p848 = pneg %p136
      $region50: #{pretrained_model_forward.6} parent=47 // pred_check_branch
        %850 = sbr.rel (%p848) target = $region52
      $region51: #{pretrained_model_forward.6} parent=47 // pred_region
        %s851 = smul.u32 32, %s23
        %p852 = scmp.lt.s32.totalorder %s22, 1
        %s853 = scalar_select %p852, %s22, 1
        %p854 = scmp.lt.s32.totalorder %s851, 31
        %s855 = scalar_select %p854, %s851, 31
        %s856 = smul.addr %s853, 32
        %s857 = sadd.s32 %s855, %s856
        %s858 = smul.addr %s857, 4
        %s859 = scalar_lea.vmem %s3, %s858
      $region52: #{pretrained_model_forward.6} parent=47 // pred_fallthru
        _
    $region48: #{pretrained_model_forward.6} parent=5 // pred_fallthru
      _
  $region6: #{pretrained_model_forward.6} parent=0 // loop_footer
    %s13 = sadd.s32 1, %s9
  $region7: #{pretrained_model_forward.6} parent=0 // loop_footer_branch
    %8 = sbr.rel target = $region3
  $region8: #{pretrained_model_forward.6} parent=0 // loop_exit
    _

// kernel: pretrained_model_forward.7
$region0: #{pretrained_model_forward.7}
  #allocation0 [shape = 'u32[]', space=smem, size = 0x4, offset = 0x4, fixed_abs, tag = 'smem constant byte address 0x4 - core index']
  #allocation1 [shape = 'u32[72,128]{1,0:T(1,128)}', space=vmem, size = 0x9000, scoped, tag = 'internal scratch']
  #allocation2 [shape = 'f32[64,128]{1,0:T(8,128)}', space=vmem, size = 0x8000, scoped, tag = 'scratch operand']
  %s0 = inlined_call_operand.vmem [shape: bf16[2,64,128], index: 0, kind: input, shape index: {}]
  %s1 = inlined_call_operand.vmem [shape: bf16[128,128], index: 1, kind: input, shape index: {}]
  %s2 = inlined_call_operand.vmem [shape: f32[1,128], index: 2, kind: input, shape index: {}]
  %s3 = inlined_call_operand.vmem [shape: bf16[2,64,128], index: 3, kind: output, shape index: {}]
  %s4 = sld [smem:[#allocation0]]
  $region53: #{pretrained_model_forward.7} parent=0
    _
  %s6 = ssub.s32 1, %s4
  %s7 = scalar_select 0, %s6, %s4
  loop: start=0, step=1, limit=4
  $region2: #{pretrained_model_forward.7} parent=0 // loop_pre_header
    _
  $region3: #{pretrained_model_forward.7} parent=0 // loop_header
    %s9 = sphi 0, %s13
    %p10 = scmp.ge.s32.totalorder %s9, 4
    %s16 = sphi 0, %s35
    %s17 = sphi 0, %s31
    %s18 = sphi 0, %s27
    %s19 = sphi 0, %s16
    %s20 = sphi 0, %s17
    %s21 = sphi 0, %s18
    %s22 = sphi 0, %s19
    %s23 = sphi 0, %s20
    %s24 = sphi 0, %s21
    %s42 = sphi 0, %s44
    %s45 = sphi 0, %s42
    %s46 = sphi 0, %s45
    %s62 = sphi 0, %s46
    %s68 = sphi 0, %s70
    %s71 = sphi 0, %s68
    %s72 = sphi 0, %s71
    %s88 = sphi 0, %s72
    %s92 = sphi 0, %s92
    %s94 = sphi 0, %s92
    %s95 = sphi 0, %s94
    %s109 = sphi 0, %s95
    %s117 = sphi 0, %s119
    %s120 = sphi 0, %s117
    %s121 = sphi 0, %s120
    %s137 = sphi 0, %s121
  $region4: #{pretrained_model_forward.7} parent=0 // loop_header_branch
    %12 = sbr.rel (%p10) target = $region8
  $region5: #{pretrained_model_forward.7} parent=0 // loop_body
    %s14 = ssub.s32 %s9, 1
    %s15 = ssub.s32 %s9, 2
    %s25 = sadd.s32 1, %s18
    %p26 = scmp.ge.s32.totalorder %s25, 1
    %s27 = scalar_select %p26, 0, %s25
    %s28 = sadd.s32 1, %s17
    %s29 = scalar_select %p26, %s28, %s17
    %p30 = scmp.ge.s32.totalorder %s29, 1
    %s31 = scalar_select %p30, 0, %s29
    %s32 = sadd.s32 1, %s16
    %s33 = scalar_select %p30, %s32, %s16
    %p34 = scmp.ge.s32.totalorder %s33, 2
    %s35 = scalar_select %p34, 0, %s33
    %s36 = ssub.s32 %s16, %s35
    %s37 = ssub.s32 %s17, %s31
    %s38 = sor.u32 %s36, %s37
    %s39 = ssub.s32 %s18, %s27
    %s40 = sor.u32 %s38, %s39
    %p41 = scmp.eq.s32.totalorder %s40, 0
    %s43 = sadd.s32 %s42, 1
    %s44 = scalar_select %p41, %s42, %s43
    %p47 = pneg %p41
    %p48 = scmp.eq.s32.totalorder %s9, 1
    %p49 = por %p47, %p48
    %p50 = scmp.ne.s32.totalorder %s42, %s45
    %p51 = scmp.eq.s32.totalorder %s9, 0
    %p52 = por %p50, %p51
    %p53 = scmp.ne.s32.totalorder %s42, %s45
    %p54 = scmp.eq.s32.totalorder %s14, 1
    %p55 = por %p53, %p54
    %p56 = scmp.ne.s32.totalorder %s45, %s46
    %p57 = scmp.eq.s32.totalorder %s14, 0
    %p58 = por %p56, %p57
    %p59 = scmp.ne.s32.totalorder %s45, %s46
    %p60 = scmp.eq.s32.totalorder %s15, 1
    %p61 = por %p59, %p60
    %p63 = scmp.ne.s32.totalorder %s46, %s62
    %p64 = scmp.eq.s32.totalorder %s15, 0
    %p65 = por %p63, %p64
    %s66 = ssub.s32 %s18, %s27
    %p67 = scmp.eq.s32.totalorder %s66, 0
    %s69 = sadd.s32 %s68, 1
    %s70 = scalar_select %p67, %s68, %s69
    %p73 = pneg %p67
    %p74 = scmp.eq.s32.totalorder %s9, 1
    %p75 = por %p73, %p74
    %p76 = scmp.ne.s32.totalorder %s68, %s71
    %p77 = scmp.eq.s32.totalorder %s9, 0
    %p78 = por %p76, %p77
    %p79 = scmp.ne.s32.totalorder %s68, %s71
    %p80 = scmp.eq.s32.totalorder %s14, 1
    %p81 = por %p79, %p80
    %p82 = scmp.ne.s32.totalorder %s71, %s72
    %p83 = scmp.eq.s32.totalorder %s14, 0
    %p84 = por %p82, %p83
    %p85 = scmp.ne.s32.totalorder %s71, %s72
    %p86 = scmp.eq.s32.totalorder %s15, 1
    %p87 = por %p85, %p86
    %p89 = scmp.ne.s32.totalorder %s72, %s88
    %p90 = scmp.eq.s32.totalorder %s15, 0
    %p91 = por %p89, %p90
    %s93 = sadd.s32 %s92, 1
    %p96 = scmp.eq.s32.totalorder %s9, 1
    %p97 = scmp.ne.s32.totalorder %s92, %s94
    %p98 = scmp.eq.s32.totalorder %s9, 0
    %p99 = por %p97, %p98
    %p100 = scmp.ne.s32.totalorder %s92, %s94
    %p101 = scmp.eq.s32.totalorder %s14, 1
    %p102 = por %p100, %p101
    %p103 = scmp.ne.s32.totalorder %s94, %s95
    %p104 = scmp.eq.s32.totalorder %s14, 0
    %p105 = por %p103, %p104
    %p106 = scmp.ne.s32.totalorder %s94, %s95
    %p107 = scmp.eq.s32.totalorder %s15, 1
    %p108 = por %p106, %p107
    %p110 = scmp.ne.s32.totalorder %s95, %s109
    %p111 = scmp.eq.s32.totalorder %s15, 0
    %p112 = por %p110, %p111
    %s113 = ssub.s32 %s16, %s35
    %s114 = ssub.s32 %s17, %s31
    %s115 = sor.u32 %s113, %s114
    %p116 = scmp.eq.s32.totalorder %s115, 0
    %s118 = sadd.s32 %s117, 1
    %s119 = scalar_select %p116, %s117, %s118
    %p122 = pneg %p116
    %p123 = scmp.eq.s32.totalorder %s9, 1
    %p124 = por %p122, %p123
    %p125 = scmp.ne.s32.totalorder %s117, %s120
    %p126 = scmp.eq.s32.totalorder %s9, 0
    %p127 = por %p125, %p126
    %p128 = scmp.ne.s32.totalorder %s117, %s120
    %p129 = scmp.eq.s32.totalorder %s14, 1
    %p130 = por %p128, %p129
    %p131 = scmp.ne.s32.totalorder %s120, %s121
    %p132 = scmp.eq.s32.totalorder %s14, 0
    %p133 = por %p131, %p132
    %p134 = scmp.ne.s32.totalorder %s120, %s121
    %p135 = scmp.eq.s32.totalorder %s15, 1
    %p136 = por %p134, %p135
    %p138 = scmp.ne.s32.totalorder %s121, %s137
    %p139 = scmp.eq.s32.totalorder %s15, 0
    %p140 = por %p138, %p139
    %p141 = scmp.le.s32.totalorder 1, %s9
    %p142 = scmp.lt.s32.totalorder %s9, 3
    %p143 = pnand %p141, %p142
    %p144 = pneg %p143
    // Predicated region
    $region9: #{pretrained_model_forward.7} parent=5 // pred_check
      _
    $region10: #{pretrained_model_forward.7} parent=5 // pred_check_branch
      %146 = sbr.rel (%p143) target = $region12
    $region11: #{pretrained_model_forward.7} parent=5 // pred_region
      %s147 = ssub.s32 %s9, 1
      // Predicated region
      $region13: #{pretrained_model_forward.7} parent=11 // pred_check
        %p148 = pneg %p84
      $region14: #{pretrained_model_forward.7} parent=11 // pred_check_branch
        %150 = sbr.rel (%p148) target = $region16
      $region15: #{pretrained_model_forward.7} parent=11 // pred_region
        %s151 = smul.u32 16, %s21
        %p152 = scmp.lt.s32.totalorder %s151, 15
        %s153 = scalar_select %p152, %s151, 15
        %s154 = smul.addr %s153, 4
        %s155 = scalar_lea.vmem %s1, %s154
        %s156 = smul.u32 16, %s21
      $region16: #{pretrained_model_forward.7} parent=11 // pred_fallthru
        _
      // Predicated region
      $region17: #{pretrained_model_forward.7} parent=11 // pred_check
        %p157 = pneg %p105
      $region18: #{pretrained_model_forward.7} parent=11 // pred_check_branch
        %159 = sbr.rel (%p157) target = $region20
      $region19: #{pretrained_model_forward.7} parent=11 // pred_region
        _
      $region20: #{pretrained_model_forward.7} parent=11 // pred_fallthru
        _
    $region12: #{pretrained_model_forward.7} parent=5 // pred_fallthru
      _
    %p160 = scmp.lt.s32.totalorder %s9, 2
    // Predicated region
    $region21: #{pretrained_model_forward.7} parent=5 // pred_check
      %p161 = pneg %p160
    $region22: #{pretrained_model_forward.7} parent=5 // pred_check_branch
      %163 = sbr.rel (%p161) target = $region24
    $region23: #{pretrained_model_forward.7} parent=5 // pred_region
      // Predicated region
      $region25: #{pretrained_model_forward.7} parent=23 // pred_check
        %p164 = pneg %p52
      $region26: #{pretrained_model_forward.7} parent=23 // pred_check_branch
        %166 = sbr.rel (%p164) target = $region28
      $region27: #{pretrained_model_forward.7} parent=23 // pred_region
        %s167 = smul.u32 8, %s17
        %p168 = scmp.lt.s32.totalorder %s16, 1
        %s169 = scalar_select %p168, %s16, 1
        %p170 = scmp.lt.s32.totalorder %s167, 7
        %s171 = scalar_select %p170, %s167, 7
        %p172 = scmp.lt.s32.totalorder %s18, 0
        %s173 = scalar_select %p172, %s18, 0
        %s174 = sadd.s32 %s173, %s171
        %s175 = smul.addr %s169, 8
        %s176 = sadd.s32 %s174, %s175
        %s177 = smul.addr %s176, 4
        %s178 = scalar_lea.vmem %s0, %s177
        %s179 = smul.u32 8, %s17
      $region28: #{pretrained_model_forward.7} parent=23 // pred_fallthru
        _
    $region24: #{pretrained_model_forward.7} parent=5 // pred_fallthru
      _
    %p180 = scmp.le.s32.totalorder 1, %s9
    %p181 = scmp.lt.s32.totalorder %s9, 3
    %p182 = pnand %p180, %p181
    %p183 = pneg %p182
    // Predicated region
    $region29: #{pretrained_model_forward.7} parent=5 // pred_check
      _
    $region30: #{pretrained_model_forward.7} parent=5 // pred_check_branch
      %185 = sbr.rel (%p182) target = $region32
    $region31: #{pretrained_model_forward.7} parent=5 // pred_region
      %s186 = ssub.s32 %s9, 1
      %s187 = smul.u32 8, %s20
      %p188 = scmp.lt.s32.totalorder %s19, 1
      %s189 = scalar_select %p188, %s19, 1
      %p190 = scmp.lt.s32.totalorder %s187, 7
      %s191 = scalar_select %p190, %s187, 7
      %p192 = scmp.lt.s32.totalorder %s21, 0
      %s193 = scalar_select %p192, %s21, 0
      %s194 = sadd.s32 %s193, %s191
      %s195 = smul.addr %s189, 8
      %s196 = sadd.s32 %s194, %s195
      %s197 = smul.addr %s196, 4
      %s198 = scalar_lea.vmem %s0, %s197
      %p199 = pneg %p58
      %p200 = pneg %p55
      %s201 = smul.u32 16, %s21
      %p202 = scmp.lt.s32.totalorder %s201, 15
      %s203 = scalar_select %p202, %s201, 15
      %s204 = smul.addr %s203, 4
      %s205 = scalar_lea.vmem %s1, %s204
      %p206 = pneg %p84
      %p207 = pneg %p81
      %p208 = pneg %p105
      %p209 = pneg %p102
      %p210 = pneg %p133
      %p211 = pneg %p130
      %s212 = smul.u32 8, %s20
      %p213 = scmp.lt.s32.totalorder %s19, 1
      %s214 = scalar_select %p213, %s19, 1
      %p215 = scmp.lt.s32.totalorder %s212, 7
      %s216 = scalar_select %p215, %s212, 7
      %s217 = smul.addr %s214, 8
      %s218 = sadd.s32 %s216, %s217
      %s219 = smul.addr %s218, 4
      %s220 = scalar_lea.vmem %s3, %s219
      %s221 = smul.u32 8, %s20
      %p222 = scmp.lt.s32.totalorder %s19, 1
      %s223 = scalar_select %p222, %s19, 1
      %p224 = scmp.lt.s32.totalorder %s221, 7
      %s225 = scalar_select %p224, %s221, 7
      %p226 = scmp.lt.s32.totalorder %s21, 0
      %s227 = scalar_select %p226, %s21, 0
      %s228 = sadd.s32 %s227, %s225
      %s229 = smul.addr %s223, 8
      %s230 = sadd.s32 %s228, %s229
      %s231 = smul.addr %s230, 4
      %s232 = scalar_lea.vmem %s0, %s231
      %s233 = smul.u32 8, %s20
      %s234 = smul.u32 16, %s21
      %p235 = scmp.lt.s32.totalorder %s234, 15
      %s236 = scalar_select %p235, %s234, 15
      %s237 = smul.addr %s236, 4
      %s238 = scalar_lea.vmem %s1, %s237
      %s239 = smul.u32 16, %s21
      %s240 = smul.u32 8, %s20
      %p241 = scmp.lt.s32.totalorder %s19, 1
      %s242 = scalar_select %p241, %s19, 1
      %p243 = scmp.lt.s32.totalorder %s240, 7
      %s244 = scalar_select %p243, %s240, 7
      %s245 = smul.addr %s242, 8
      %s246 = sadd.s32 %s244, %s245
      %s247 = smul.addr %s246, 4
      %s248 = scalar_lea.vmem %s3, %s247
      %s249 = smul.u32 8, %s20
      %p250 = scmp.eq.s32.totalorder %s21, 0
      // Predicated region
      $region33: #{pretrained_model_forward.7} parent=31 // pred_check
        %p251 = pneg %p250
      $region34: #{pretrained_model_forward.7} parent=31 // pred_check_branch
        %253 = sbr.rel (%p251) target = $region36
      $region35: #{pretrained_model_forward.7} parent=31 // pred_region
        %254 = vst [vmem:[#allocation2] sm:$0xff] 0.0
        %255 = vst [vmem:[#allocation2 + $0x8] sm:$0xff] 0.0
        %256 = vst [vmem:[#allocation2 + $0x10] sm:$0xff] 0.0
        %257 = vst [vmem:[#allocation2 + $0x18] sm:$0xff] 0.0
        %258 = vst [vmem:[#allocation2 + $0x20] sm:$0xff] 0.0
        %259 = vst [vmem:[#allocation2 + $0x28] sm:$0xff] 0.0
        %260 = vst [vmem:[#allocation2 + $0x30] sm:$0xff] 0.0
        %261 = vst [vmem:[#allocation2 + $0x38] sm:$0xff] 0.0
      $region36: #{pretrained_model_forward.7} parent=31 // pred_fallthru
        _
      %v262 = vld [vmem:[#allocation2] sm:$0xff]
      %v263 = vld [vmem:[#allocation2 + $0x8] sm:$0xff]
      %v264 = vld [vmem:[#allocation2 + $0x10] sm:$0xff]
      %v265 = vld [vmem:[#allocation2 + $0x18] sm:$0xff]
      %v266 = vld [vmem:[#allocation2 + $0x20] sm:$0xff]
      %v267 = vld [vmem:[#allocation2 + $0x28] sm:$0xff]
      %v268 = vld [vmem:[#allocation2 + $0x30] sm:$0xff]
      %v269 = vld [vmem:[#allocation2 + $0x38] sm:$0xff]
      %v270 = vld [vmem:[%s232] sm:$0xf]
      %v271 = vld [vmem:[%s232 + $0x4] sm:$0xf]
      %v272 = vld [vmem:[%s232 + $0x8] sm:$0xf]
      %v273 = vld [vmem:[%s232 + $0xc] sm:$0xf]
      %v274 = vld [vmem:[%s232 + $0x10] sm:$0xf]
      %v275 = vld [vmem:[%s232 + $0x14] sm:$0xf]
      %v276 = vld [vmem:[%s232 + $0x18] sm:$0xf]
      %v277 = vld [vmem:[%s232 + $0x1c] sm:$0xf]
      %v278 = vld [vmem:[%s238] sm:$0xf]
      %v279 = vld [vmem:[%s238 + $0x4] sm:$0xf]
      %v280 = vld [vmem:[%s238 + $0x8] sm:$0xf]
      %v281 = vld [vmem:[%s238 + $0xc] sm:$0xf]
      %v282 = vld [vmem:[%s238 + $0x10] sm:$0xf]
      %v283 = vld [vmem:[%s238 + $0x14] sm:$0xf]
      %v284 = vld [vmem:[%s238 + $0x18] sm:$0xf]
      %v285 = vld [vmem:[%s238 + $0x1c] sm:$0xf]
      %v286 = vld [vmem:[%s238 + $0x20] sm:$0xf]
      %v287 = vld [vmem:[%s238 + $0x24] sm:$0xf]
      %v288 = vld [vmem:[%s238 + $0x28] sm:$0xf]
      %v289 = vld [vmem:[%s238 + $0x2c] sm:$0xf]
      %v290 = vld [vmem:[%s238 + $0x30] sm:$0xf]
      %v291 = vld [vmem:[%s238 + $0x34] sm:$0xf]
      %v292 = vld [vmem:[%s238 + $0x38] sm:$0xf]
      %v293 = vld [vmem:[%s238 + $0x3c] sm:$0xf]
      %v302 = vunpack.c.l.b16 %v270
      %v303 = vunpack.c.l.b16 %v271
      %v304 = vunpack.c.l.b16 %v272
      %v305 = vunpack.c.l.b16 %v273
      %v306 = vunpack.c.l.b16 %v274
      %v307 = vunpack.c.l.b16 %v275
      %v308 = vunpack.c.l.b16 %v276
      %v309 = vunpack.c.l.b16 %v277
      %v310 = vpack.c.b16 %v303, %v302
      %v311 = vpack.c.b16 %v305, %v304
      %v312 = vpack.c.b16 %v307, %v306
      %v313 = vpack.c.b16 %v309, %v308
      %v334 = vunpack.c.l.b16 %v278
      %v335 = vunpack.c.l.b16 %v279
      %v336 = vunpack.c.l.b16 %v280
      %v337 = vunpack.c.l.b16 %v281
      %v338 = vunpack.c.l.b16 %v282
      %v339 = vunpack.c.l.b16 %v283
      %v340 = vunpack.c.l.b16 %v284
      %v341 = vunpack.c.l.b16 %v285
      %v342 = vunpack.c.l.b16 %v286
      %v343 = vunpack.c.l.b16 %v287
      %v344 = vunpack.c.l.b16 %v288
      %v345 = vunpack.c.l.b16 %v289
      %v346 = vunpack.c.l.b16 %v290
      %v347 = vunpack.c.l.b16 %v291
      %v348 = vunpack.c.l.b16 %v292
      %v349 = vunpack.c.l.b16 %v293
      %v350 = vpack.c.b16 %v335, %v334
      %v351 = vpack.c.b16 %v337, %v336
      %v352 = vpack.c.b16 %v339, %v338
      %v353 = vpack.c.b16 %v341, %v340
      %v354 = vpack.c.b16 %v343, %v342
      %v355 = vpack.c.b16 %v345, %v344
      %v356 = vpack.c.b16 %v347, %v346
      %v357 = vpack.c.b16 %v349, %v348
      %366 = vmatpush.bf16.msra.mxu0 %v357
      %367 = vmatpush.bf16.msra.mxu0 %v356
      %368 = vmatpush.bf16.msra.mxu0 %v355
      %369 = vmatpush.bf16.msra.mxu0 %v354
      %370 = vmatpush.bf16.msra.mxu0 %v353
      %371 = vmatpush.bf16.msra.mxu0 %v352
      %372 = vmatpush.bf16.msra.mxu0 %v351
      %373 = vmatpush.bf16.msra.mxu0 %v350
      %374 = vmatmul.bf16.gmra.mxu0 %v310
      %v375 = vpop.f32.mrf.mxu0
      %v376 = vadd.f32 0.0, %v375
      %v377 = vpop.f32.mrf.mxu0
      %v378 = vadd.f32 0.0, %v377
      %379 = vmatmul.bf16.gmra.mxu0 %v311
      %v380 = vpop.f32.mrf.mxu0
      %v381 = vadd.f32 0.0, %v380
      %v382 = vpop.f32.mrf.mxu0
      %v383 = vadd.f32 0.0, %v382
      %384 = vmatmul.bf16.gmra.mxu0 %v312
      %v385 = vpop.f32.mrf.mxu0
      %v386 = vadd.f32 0.0, %v385
      %v387 = vpop.f32.mrf.mxu0
      %v388 = vadd.f32 0.0, %v387
      %389 = vmatmul.bf16.gmra.mxu0 %v313
      %v390 = vpop.f32.mrf.mxu0
      %v391 = vadd.f32 0.0, %v390
      %v392 = vpop.f32.mrf.mxu0
      %v393 = vadd.f32 0.0, %v392
      %394 = vdwg.mxu0
      %v395 = vadd.f32 %v262, %v376
      %v396 = vadd.f32 %v263, %v378
      %v397 = vadd.f32 %v264, %v381
      %v398 = vadd.f32 %v265, %v383
      %v399 = vadd.f32 %v266, %v386
      %v400 = vadd.f32 %v267, %v388
      %v401 = vadd.f32 %v268, %v391
      %v402 = vadd.f32 %v269, %v393
      %403 = vst [vmem:[#allocation2] sm:$0xff] %v395
      %404 = vst [vmem:[#allocation2 + $0x8] sm:$0xff] %v396
      %405 = vst [vmem:[#allocation2 + $0x10] sm:$0xff] %v397
      %406 = vst [vmem:[#allocation2 + $0x18] sm:$0xff] %v398
      %407 = vst [vmem:[#allocation2 + $0x20] sm:$0xff] %v399
      %408 = vst [vmem:[#allocation2 + $0x28] sm:$0xff] %v400
      %409 = vst [vmem:[#allocation2 + $0x30] sm:$0xff] %v401
      %410 = vst [vmem:[#allocation2 + $0x38] sm:$0xff] %v402
      // Predicated region
      $region37: #{pretrained_model_forward.7} parent=31 // pred_check
        %p411 = pneg %p250
      $region38: #{pretrained_model_forward.7} parent=31 // pred_check_branch
        %413 = sbr.rel (%p411) target = $region40
      $region39: #{pretrained_model_forward.7} parent=31 // pred_region
        %v414 = vld [vmem:[#allocation2] sm:$0xff]
        %v415 = vld [vmem:[#allocation2 + $0x8] sm:$0xff]
        %v416 = vld [vmem:[#allocation2 + $0x10] sm:$0xff]
        %v417 = vld [vmem:[#allocation2 + $0x18] sm:$0xff]
        %v418 = vld [vmem:[#allocation2 + $0x20] sm:$0xff]
        %v419 = vld [vmem:[#allocation2 + $0x28] sm:$0xff]
        %v420 = vld [vmem:[#allocation2 + $0x30] sm:$0xff]
        %v421 = vld [vmem:[#allocation2 + $0x38] sm:$0xff]
        %v422 = vld [vmem:[%s2] sm:$0x1]
        %v424 = vperm.slane %v422, 0
        %v426 = vadd.f32 %v414, %v424
        %v427 = vadd.f32 %v415, %v424
        %v428 = vadd.f32 %v416, %v424
        %v429 = vadd.f32 %v417, %v424
        %v430 = vadd.f32 %v418, %v424
        %v431 = vadd.f32 %v419, %v424
        %v432 = vadd.f32 %v420, %v424
        %v433 = vadd.f32 %v421, %v424
        %v434 = vmax.f32 %v426, 0.0
        %v435 = vmax.f32 %v427, 0.0
        %v436 = vmax.f32 %v428, 0.0
        %v437 = vmax.f32 %v429, 0.0
        %v438 = vmax.f32 %v430, 0.0
        %v439 = vmax.f32 %v431, 0.0
        %v440 = vmax.f32 %v432, 0.0
        %v441 = vmax.f32 %v433, 0.0
        %v442 = vpack.c.bf16 %v434, %v434
        %v443 = vpack.c.bf16 %v435, %v435
        %v444 = vpack.c.bf16 %v436, %v436
        %v445 = vpack.c.bf16 %v437, %v437
        %v446 = vpack.c.bf16 %v438, %v438
        %v447 = vpack.c.bf16 %v439, %v439
        %v448 = vpack.c.bf16 %v440, %v440
        %v449 = vpack.c.bf16 %v441, %v441
        %450 = vst [vmem:[%s248] sm:$0xf] %v442
        %451 = vst [vmem:[%s248 + $0x4] sm:$0xf] %v443
        %452 = vst [vmem:[%s248 + $0x8] sm:$0xf] %v444
        %453 = vst [vmem:[%s248 + $0xc] sm:$0xf] %v445
        %454 = vst [vmem:[%s248 + $0x10] sm:$0xf] %v446
        %455 = vst [vmem:[%s248 + $0x14] sm:$0xf] %v447
        %456 = vst [vmem:[%s248 + $0x18] sm:$0xf] %v448
        %457 = vst [vmem:[%s248 + $0x1c] sm:$0xf] %v449
      $region40: #{pretrained_model_forward.7} parent=31 // pred_fallthru
        _
      %s458 = smul.u32 8, %s20
      %p459 = scmp.lt.s32.totalorder %s19, 1
      %s460 = scalar_select %p459, %s19, 1
      %p461 = scmp.lt.s32.totalorder %s458, 7
      %s462 = scalar_select %p461, %s458, 7
      %s463 = smul.addr %s460, 8
      %s464 = sadd.s32 %s462, %s463
      %s465 = smul.addr %s464, 4
      %s466 = scalar_lea.vmem %s3, %s465
      // Predicated region
      $region41: #{pretrained_model_forward.7} parent=31 // pred_check
        %p467 = pneg %p130
      $region42: #{pretrained_model_forward.7} parent=31 // pred_check_branch
        %469 = sbr.rel (%p467) target = $region44
      $region43: #{pretrained_model_forward.7} parent=31 // pred_region
        %s470 = smul.u32 8, %s20
      $region44: #{pretrained_model_forward.7} parent=31 // pred_fallthru
        _
    $region32: #{pretrained_model_forward.7} parent=5 // pred_fallthru
      _
    %p471 = scmp.le.s32.totalorder 2, %s9
    // Predicated region
    $region45: #{pretrained_model_forward.7} parent=5 // pred_check
      %p472 = pneg %p471
    $region46: #{pretrained_model_forward.7} parent=5 // pred_check_branch
      %474 = sbr.rel (%p472) target = $region48
    $region47: #{pretrained_model_forward.7} parent=5 // pred_region
      %s475 = ssub.s32 %s9, 2
      // Predicated region
      $region49: #{pretrained_model_forward.7} parent=47 // pred_check
        %p476 = pneg %p136
      $region50: #{pretrained_model_forward.7} parent=47 // pred_check_branch
        %478 = sbr.rel (%p476) target = $region52
      $region51: #{pretrained_model_forward.7} parent=47 // pred_region
        %s479 = smul.u32 8, %s23
        %p480 = scmp.lt.s32.totalorder %s22, 1
        %s481 = scalar_select %p480, %s22, 1
        %p482 = scmp.lt.s32.totalorder %s479, 7
        %s483 = scalar_select %p482, %s479, 7
        %s484 = smul.addr %s481, 8
        %s485 = sadd.s32 %s483, %s484
        %s486 = smul.addr %s485, 4
        %s487 = scalar_lea.vmem %s3, %s486
      $region52: #{pretrained_model_forward.7} parent=47 // pred_fallthru
        _
    $region48: #{pretrained_model_forward.7} parent=5 // pred_fallthru
      _
  $region6: #{pretrained_model_forward.7} parent=0 // loop_footer
    %s13 = sadd.s32 1, %s9
  $region7: #{pretrained_model_forward.7} parent=0 // loop_footer_branch
    %8 = sbr.rel target = $region3
  $region8: #{pretrained_model_forward.7} parent=0 // loop_exit
    _

// kernel: pretrained_model_forward.8
$region0: #{pretrained_model_forward.8}
  #allocation0 [shape = 'u32[]', space=smem, size = 0x4, offset = 0x4, fixed_abs, tag = 'smem constant byte address 0x4 - core index']
  #allocation1 [shape = 'u32[72,128]{1,0:T(1,128)}', space=vmem, size = 0x9000, scoped, tag = 'internal scratch']
  #allocation2 [shape = 'f32[16,128]{1,0:T(8,128)}', space=vmem, size = 0x2000, scoped, tag = 'scratch operand']
  %s0 = inlined_call_operand.vmem [shape: bf16[2,16,256], index: 0, kind: input, shape index: {}]
  %s1 = inlined_call_operand.vmem [shape: bf16[256,128], index: 1, kind: input, shape index: {}]
  %s2 = inlined_call_operand.vmem [shape: f32[1,128], index: 2, kind: input, shape index: {}]
  %s3 = inlined_call_operand.vmem [shape: bf16[2,16,128], index: 3, kind: output, shape index: {}]
  %s4 = sld [smem:[#allocation0]]
  $region53: #{pretrained_model_forward.8} parent=0
    _
  %s6 = ssub.s32 1, %s4
  %s7 = scalar_select 0, %s6, %s4
  loop: start=0, step=1, limit=4
  $region2: #{pretrained_model_forward.8} parent=0 // loop_pre_header
    _
  $region3: #{pretrained_model_forward.8} parent=0 // loop_header
    %s9 = sphi 0, %s13
    %p10 = scmp.ge.s32.totalorder %s9, 4
    %s16 = sphi 0, %s35
    %s17 = sphi 0, %s31
    %s18 = sphi 0, %s27
    %s19 = sphi 0, %s16
    %s20 = sphi 0, %s17
    %s21 = sphi 0, %s18
    %s22 = sphi 0, %s19
    %s23 = sphi 0, %s20
    %s24 = sphi 0, %s21
    %s42 = sphi 0, %s44
    %s45 = sphi 0, %s42
    %s46 = sphi 0, %s45
    %s62 = sphi 0, %s46
    %s68 = sphi 0, %s70
    %s71 = sphi 0, %s68
    %s72 = sphi 0, %s71
    %s88 = sphi 0, %s72
    %s92 = sphi 0, %s92
    %s94 = sphi 0, %s92
    %s95 = sphi 0, %s94
    %s109 = sphi 0, %s95
    %s117 = sphi 0, %s119
    %s120 = sphi 0, %s117
    %s121 = sphi 0, %s120
    %s137 = sphi 0, %s121
  $region4: #{pretrained_model_forward.8} parent=0 // loop_header_branch
    %12 = sbr.rel (%p10) target = $region8
  $region5: #{pretrained_model_forward.8} parent=0 // loop_body
    %s14 = ssub.s32 %s9, 1
    %s15 = ssub.s32 %s9, 2
    %s25 = sadd.s32 1, %s18
    %p26 = scmp.ge.s32.totalorder %s25, 1
    %s27 = scalar_select %p26, 0, %s25
    %s28 = sadd.s32 1, %s17
    %s29 = scalar_select %p26, %s28, %s17
    %p30 = scmp.ge.s32.totalorder %s29, 1
    %s31 = scalar_select %p30, 0, %s29
    %s32 = sadd.s32 1, %s16
    %s33 = scalar_select %p30, %s32, %s16
    %p34 = scmp.ge.s32.totalorder %s33, 2
    %s35 = scalar_select %p34, 0, %s33
    %s36 = ssub.s32 %s16, %s35
    %s37 = ssub.s32 %s17, %s31
    %s38 = sor.u32 %s36, %s37
    %s39 = ssub.s32 %s18, %s27
    %s40 = sor.u32 %s38, %s39
    %p41 = scmp.eq.s32.totalorder %s40, 0
    %s43 = sadd.s32 %s42, 1
    %s44 = scalar_select %p41, %s42, %s43
    %p47 = pneg %p41
    %p48 = scmp.eq.s32.totalorder %s9, 1
    %p49 = por %p47, %p48
    %p50 = scmp.ne.s32.totalorder %s42, %s45
    %p51 = scmp.eq.s32.totalorder %s9, 0
    %p52 = por %p50, %p51
    %p53 = scmp.ne.s32.totalorder %s42, %s45
    %p54 = scmp.eq.s32.totalorder %s14, 1
    %p55 = por %p53, %p54
    %p56 = scmp.ne.s32.totalorder %s45, %s46
    %p57 = scmp.eq.s32.totalorder %s14, 0
    %p58 = por %p56, %p57
    %p59 = scmp.ne.s32.totalorder %s45, %s46
    %p60 = scmp.eq.s32.totalorder %s15, 1
    %p61 = por %p59, %p60
    %p63 = scmp.ne.s32.totalorder %s46, %s62
    %p64 = scmp.eq.s32.totalorder %s15, 0
    %p65 = por %p63, %p64
    %s66 = ssub.s32 %s18, %s27
    %p67 = scmp.eq.s32.totalorder %s66, 0
    %s69 = sadd.s32 %s68, 1
    %s70 = scalar_select %p67, %s68, %s69
    %p73 = pneg %p67
    %p74 = scmp.eq.s32.totalorder %s9, 1
    %p75 = por %p73, %p74
    %p76 = scmp.ne.s32.totalorder %s68, %s71
    %p77 = scmp.eq.s32.totalorder %s9, 0
    %p78 = por %p76, %p77
    %p79 = scmp.ne.s32.totalorder %s68, %s71
    %p80 = scmp.eq.s32.totalorder %s14, 1
    %p81 = por %p79, %p80
    %p82 = scmp.ne.s32.totalorder %s71, %s72
    %p83 = scmp.eq.s32.totalorder %s14, 0
    %p84 = por %p82, %p83
    %p85 = scmp.ne.s32.totalorder %s71, %s72
    %p86 = scmp.eq.s32.totalorder %s15, 1
    %p87 = por %p85, %p86
    %p89 = scmp.ne.s32.totalorder %s72, %s88
    %p90 = scmp.eq.s32.totalorder %s15, 0
    %p91 = por %p89, %p90
    %s93 = sadd.s32 %s92, 1
    %p96 = scmp.eq.s32.totalorder %s9, 1
    %p97 = scmp.ne.s32.totalorder %s92, %s94
    %p98 = scmp.eq.s32.totalorder %s9, 0
    %p99 = por %p97, %p98
    %p100 = scmp.ne.s32.totalorder %s92, %s94
    %p101 = scmp.eq.s32.totalorder %s14, 1
    %p102 = por %p100, %p101
    %p103 = scmp.ne.s32.totalorder %s94, %s95
    %p104 = scmp.eq.s32.totalorder %s14, 0
    %p105 = por %p103, %p104
    %p106 = scmp.ne.s32.totalorder %s94, %s95
    %p107 = scmp.eq.s32.totalorder %s15, 1
    %p108 = por %p106, %p107
    %p110 = scmp.ne.s32.totalorder %s95, %s109
    %p111 = scmp.eq.s32.totalorder %s15, 0
    %p112 = por %p110, %p111
    %s113 = ssub.s32 %s16, %s35
    %s114 = ssub.s32 %s17, %s31
    %s115 = sor.u32 %s113, %s114
    %p116 = scmp.eq.s32.totalorder %s115, 0
    %s118 = sadd.s32 %s117, 1
    %s119 = scalar_select %p116, %s117, %s118
    %p122 = pneg %p116
    %p123 = scmp.eq.s32.totalorder %s9, 1
    %p124 = por %p122, %p123
    %p125 = scmp.ne.s32.totalorder %s117, %s120
    %p126 = scmp.eq.s32.totalorder %s9, 0
    %p127 = por %p125, %p126
    %p128 = scmp.ne.s32.totalorder %s117, %s120
    %p129 = scmp.eq.s32.totalorder %s14, 1
    %p130 = por %p128, %p129
    %p131 = scmp.ne.s32.totalorder %s120, %s121
    %p132 = scmp.eq.s32.totalorder %s14, 0
    %p133 = por %p131, %p132
    %p134 = scmp.ne.s32.totalorder %s120, %s121
    %p135 = scmp.eq.s32.totalorder %s15, 1
    %p136 = por %p134, %p135
    %p138 = scmp.ne.s32.totalorder %s121, %s137
    %p139 = scmp.eq.s32.totalorder %s15, 0
    %p140 = por %p138, %p139
    %p141 = scmp.le.s32.totalorder 1, %s9
    %p142 = scmp.lt.s32.totalorder %s9, 3
    %p143 = pnand %p141, %p142
    %p144 = pneg %p143
    // Predicated region
    $region9: #{pretrained_model_forward.8} parent=5 // pred_check
      _
    $region10: #{pretrained_model_forward.8} parent=5 // pred_check_branch
      %146 = sbr.rel (%p143) target = $region12
    $region11: #{pretrained_model_forward.8} parent=5 // pred_region
      %s147 = ssub.s32 %s9, 1
      // Predicated region
      $region13: #{pretrained_model_forward.8} parent=11 // pred_check
        %p148 = pneg %p84
      $region14: #{pretrained_model_forward.8} parent=11 // pred_check_branch
        %150 = sbr.rel (%p148) target = $region16
      $region15: #{pretrained_model_forward.8} parent=11 // pred_region
        %s151 = smul.u32 32, %s21
        %p152 = scmp.lt.s32.totalorder %s151, 31
        %s153 = scalar_select %p152, %s151, 31
        %s154 = smul.addr %s153, 4
        %s155 = scalar_lea.vmem %s1, %s154
        %s156 = smul.u32 32, %s21
      $region16: #{pretrained_model_forward.8} parent=11 // pred_fallthru
        _
      // Predicated region
      $region17: #{pretrained_model_forward.8} parent=11 // pred_check
        %p157 = pneg %p105
      $region18: #{pretrained_model_forward.8} parent=11 // pred_check_branch
        %159 = sbr.rel (%p157) target = $region20
      $region19: #{pretrained_model_forward.8} parent=11 // pred_region
        _
      $region20: #{pretrained_model_forward.8} parent=11 // pred_fallthru
        _
    $region12: #{pretrained_model_forward.8} parent=5 // pred_fallthru
      _
    %p160 = scmp.lt.s32.totalorder %s9, 2
    // Predicated region
    $region21: #{pretrained_model_forward.8} parent=5 // pred_check
      %p161 = pneg %p160
    $region22: #{pretrained_model_forward.8} parent=5 // pred_check_branch
      %163 = sbr.rel (%p161) target = $region24
    $region23: #{pretrained_model_forward.8} parent=5 // pred_region
      // Predicated region
      $region25: #{pretrained_model_forward.8} parent=23 // pred_check
        %p164 = pneg %p52
      $region26: #{pretrained_model_forward.8} parent=23 // pred_check_branch
        %166 = sbr.rel (%p164) target = $region28
      $region27: #{pretrained_model_forward.8} parent=23 // pred_region
        %s167 = smul.u32 2, %s17
        %s168 = smul.u32 2, %s18
        %p169 = scmp.lt.s32.totalorder %s16, 1
        %s170 = scalar_select %p169, %s16, 1
        %p171 = scmp.lt.s32.totalorder %s167, 1
        %s172 = scalar_select %p171, %s167, 1
        %p173 = scmp.lt.s32.totalorder %s168, 1
        %s174 = scalar_select %p173, %s168, 1
        %s175 = smul.addr %s172, 2
        %s176 = sadd.s32 %s174, %s175
        %s177 = smul.addr %s170, 4
        %s178 = sadd.s32 %s176, %s177
        %s179 = smul.addr %s178, 4
        %s180 = scalar_lea.vmem %s0, %s179
        %s181 = smul.u32 2, %s17
        %s182 = smul.u32 2, %s18
      $region28: #{pretrained_model_forward.8} parent=23 // pred_fallthru
        _
    $region24: #{pretrained_model_forward.8} parent=5 // pred_fallthru
      _
    %p183 = scmp.le.s32.totalorder 1, %s9
    %p184 = scmp.lt.s32.totalorder %s9, 3
    %p185 = pnand %p183, %p184
    %p186 = pneg %p185
    // Predicated region
    $region29: #{pretrained_model_forward.8} parent=5 // pred_check
      _
    $region30: #{pretrained_model_forward.8} parent=5 // pred_check_branch
      %188 = sbr.rel (%p185) target = $region32
    $region31: #{pretrained_model_forward.8} parent=5 // pred_region
      %s189 = ssub.s32 %s9, 1
      %s190 = smul.u32 2, %s20
      %s191 = smul.u32 2, %s21
      %p192 = scmp.lt.s32.totalorder %s19, 1
      %s193 = scalar_select %p192, %s19, 1
      %p194 = scmp.lt.s32.totalorder %s190, 1
      %s195 = scalar_select %p194, %s190, 1
      %p196 = scmp.lt.s32.totalorder %s191, 1
      %s197 = scalar_select %p196, %s191, 1
      %s198 = smul.addr %s195, 2
      %s199 = sadd.s32 %s197, %s198
      %s200 = smul.addr %s193, 4
      %s201 = sadd.s32 %s199, %s200
      %s202 = smul.addr %s201, 4
      %s203 = scalar_lea.vmem %s0, %s202
      %p204 = pneg %p58
      %p205 = pneg %p55
      %s206 = smul.u32 32, %s21
      %p207 = scmp.lt.s32.totalorder %s206, 31
      %s208 = scalar_select %p207, %s206, 31
      %s209 = smul.addr %s208, 4
      %s210 = scalar_lea.vmem %s1, %s209
      %p211 = pneg %p84
      %p212 = pneg %p81
      %p213 = pneg %p105
      %p214 = pneg %p102
      %p215 = pneg %p133
      %p216 = pneg %p130
      %s217 = smul.u32 2, %s20
      %p218 = scmp.lt.s32.totalorder %s19, 1
      %s219 = scalar_select %p218, %s19, 1
      %p220 = scmp.lt.s32.totalorder %s217, 1
      %s221 = scalar_select %p220, %s217, 1
      %s222 = smul.addr %s219, 2
      %s223 = sadd.s32 %s221, %s222
      %s224 = smul.addr %s223, 4
      %s225 = scalar_lea.vmem %s3, %s224
      %s226 = smul.u32 2, %s20
      %s227 = smul.u32 2, %s21
      %p228 = scmp.lt.s32.totalorder %s19, 1
      %s229 = scalar_select %p228, %s19, 1
      %p230 = scmp.lt.s32.totalorder %s226, 1
      %s231 = scalar_select %p230, %s226, 1
      %p232 = scmp.lt.s32.totalorder %s227, 1
      %s233 = scalar_select %p232, %s227, 1
      %s234 = smul.addr %s231, 2
      %s235 = sadd.s32 %s233, %s234
      %s236 = smul.addr %s229, 4
      %s237 = sadd.s32 %s235, %s236
      %s238 = smul.addr %s237, 4
      %s239 = scalar_lea.vmem %s0, %s238
      %s240 = smul.u32 2, %s20
      %s241 = smul.u32 2, %s21
      %s242 = smul.u32 32, %s21
      %p243 = scmp.lt.s32.totalorder %s242, 31
      %s244 = scalar_select %p243, %s242, 31
      %s245 = smul.addr %s244, 4
      %s246 = scalar_lea.vmem %s1, %s245
      %s247 = smul.u32 32, %s21
      %s248 = smul.u32 2, %s20
      %p249 = scmp.lt.s32.totalorder %s19, 1
      %s250 = scalar_select %p249, %s19, 1
      %p251 = scmp.lt.s32.totalorder %s248, 1
      %s252 = scalar_select %p251, %s248, 1
      %s253 = smul.addr %s250, 2
      %s254 = sadd.s32 %s252, %s253
      %s255 = smul.addr %s254, 4
      %s256 = scalar_lea.vmem %s3, %s255
      %s257 = smul.u32 2, %s20
      %p258 = scmp.eq.s32.totalorder %s21, 0
      // Predicated region
      $region33: #{pretrained_model_forward.8} parent=31 // pred_check
        %p259 = pneg %p258
      $region34: #{pretrained_model_forward.8} parent=31 // pred_check_branch
        %261 = sbr.rel (%p259) target = $region36
      $region35: #{pretrained_model_forward.8} parent=31 // pred_region
        %262 = vst [vmem:[#allocation2] sm:$0xff] 0.0
        %263 = vst [vmem:[#allocation2 + $0x8] sm:$0xff] 0.0
      $region36: #{pretrained_model_forward.8} parent=31 // pred_fallthru
        _
      %v264 = vld [vmem:[#allocation2] sm:$0xff]
      %v265 = vld [vmem:[#allocation2 + $0x8] sm:$0xff]
      %v266 = vld [vmem:[%s239] sm:$0xff]
      %v267 = vld [vmem:[%s239 + $0x8] sm:$0xff]
      %v268 = vld [vmem:[%s246] sm:$0xf]
      %v269 = vld [vmem:[%s246 + $0x4] sm:$0xf]
      %v270 = vld [vmem:[%s246 + $0x8] sm:$0xf]
      %v271 = vld [vmem:[%s246 + $0xc] sm:$0xf]
      %v272 = vld [vmem:[%s246 + $0x10] sm:$0xf]
      %v273 = vld [vmem:[%s246 + $0x14] sm:$0xf]
      %v274 = vld [vmem:[%s246 + $0x18] sm:$0xf]
      %v275 = vld [vmem:[%s246 + $0x1c] sm:$0xf]
      %v276 = vld [vmem:[%s246 + $0x20] sm:$0xf]
      %v277 = vld [vmem:[%s246 + $0x24] sm:$0xf]
      %v278 = vld [vmem:[%s246 + $0x28] sm:$0xf]
      %v279 = vld [vmem:[%s246 + $0x2c] sm:$0xf]
      %v280 = vld [vmem:[%s246 + $0x30] sm:$0xf]
      %v281 = vld [vmem:[%s246 + $0x34] sm:$0xf]
      %v282 = vld [vmem:[%s246 + $0x38] sm:$0xf]
      %v283 = vld [vmem:[%s246 + $0x3c] sm:$0xf]
      %v284 = vld [vmem:[%s246 + $0x40] sm:$0xf]
      %v285 = vld [vmem:[%s246 + $0x44] sm:$0xf]
      %v286 = vld [vmem:[%s246 + $0x48] sm:$0xf]
      %v287 = vld [vmem:[%s246 + $0x4c] sm:$0xf]
      %v288 = vld [vmem:[%s246 + $0x50] sm:$0xf]
      %v289 = vld [vmem:[%s246 + $0x54] sm:$0xf]
      %v290 = vld [vmem:[%s246 + $0x58] sm:$0xf]
      %v291 = vld [vmem:[%s246 + $0x5c] sm:$0xf]
      %v292 = vld [vmem:[%s246 + $0x60] sm:$0xf]
      %v293 = vld [vmem:[%s246 + $0x64] sm:$0xf]
      %v294 = vld [vmem:[%s246 + $0x68] sm:$0xf]
      %v295 = vld [vmem:[%s246 + $0x6c] sm:$0xf]
      %v296 = vld [vmem:[%s246 + $0x70] sm:$0xf]
      %v297 = vld [vmem:[%s246 + $0x74] sm:$0xf]
      %v298 = vld [vmem:[%s246 + $0x78] sm:$0xf]
      %v299 = vld [vmem:[%s246 + $0x7c] sm:$0xf]
      %v302 = vunpack.c.l.b16 %v266
      %v303 = vunpack.c.h.b16 %v266
      %v304 = vunpack.c.l.b16 %v267
      %v305 = vunpack.c.h.b16 %v267
      %v306 = vpack.c.b16 %v304, %v302
      %v307 = vpack.c.b16 %v305, %v303
      %v342 = vunpack.c.l.b16 %v268
      %v343 = vunpack.c.l.b16 %v269
      %v344 = vunpack.c.l.b16 %v270
      %v345 = vunpack.c.l.b16 %v271
      %v346 = vunpack.c.l.b16 %v272
      %v347 = vunpack.c.l.b16 %v273
      %v348 = vunpack.c.l.b16 %v274
      %v349 = vunpack.c.l.b16 %v275
      %v350 = vunpack.c.l.b16 %v276
      %v351 = vunpack.c.l.b16 %v277
      %v352 = vunpack.c.l.b16 %v278
      %v353 = vunpack.c.l.b16 %v279
      %v354 = vunpack.c.l.b16 %v280
      %v355 = vunpack.c.l.b16 %v281
      %v356 = vunpack.c.l.b16 %v282
      %v357 = vunpack.c.l.b16 %v283
      %v358 = vunpack.c.l.b16 %v284
      %v359 = vunpack.c.l.b16 %v285
      %v360 = vunpack.c.l.b16 %v286
      %v361 = vunpack.c.l.b16 %v287
      %v362 = vunpack.c.l.b16 %v288
      %v363 = vunpack.c.l.b16 %v289
      %v364 = vunpack.c.l.b16 %v290
      %v365 = vunpack.c.l.b16 %v291
      %v366 = vunpack.c.l.b16 %v292
      %v367 = vunpack.c.l.b16 %v293
      %v368 = vunpack.c.l.b16 %v294
      %v369 = vunpack.c.l.b16 %v295
      %v370 = vunpack.c.l.b16 %v296
      %v371 = vunpack.c.l.b16 %v297
      %v372 = vunpack.c.l.b16 %v298
      %v373 = vunpack.c.l.b16 %v299
      %v374 = vpack.c.b16 %v343, %v342
      %v375 = vpack.c.b16 %v345, %v344
      %v376 = vpack.c.b16 %v347, %v346
      %v377 = vpack.c.b16 %v349, %v348
      %v378 = vpack.c.b16 %v351, %v350
      %v379 = vpack.c.b16 %v353, %v352
      %v380 = vpack.c.b16 %v355, %v354
      %v381 = vpack.c.b16 %v357, %v356
      %v382 = vpack.c.b16 %v359, %v358
      %v383 = vpack.c.b16 %v361, %v360
      %v384 = vpack.c.b16 %v363, %v362
      %v385 = vpack.c.b16 %v365, %v364
      %v386 = vpack.c.b16 %v367, %v366
      %v387 = vpack.c.b16 %v369, %v368
      %v388 = vpack.c.b16 %v371, %v370
      %v389 = vpack.c.b16 %v373, %v372
      %406 = vmatpush.bf16.msra.mxu0 %v381
      %407 = vmatpush.bf16.msra.mxu0 %v380
      %408 = vmatpush.bf16.msra.mxu0 %v379
      %409 = vmatpush.bf16.msra.mxu0 %v378
      %410 = vmatpush.bf16.msra.mxu0 %v377
      %411 = vmatpush.bf16.msra.mxu0 %v376
      %412 = vmatpush.bf16.msra.mxu0 %v375
      %413 = vmatpush.bf16.msra.mxu0 %v374
      %414 = vmatmul.bf16.gmra.mxu0 %v306
      %v415 = vpop.f32.mrf.mxu0
      %v416 = vadd.f32 0.0, %v415
      %v417 = vpop.f32.mrf.mxu0
      %v418 = vadd.f32 0.0, %v417
      %419 = vdwg.mxu0
      %420 = vmatpush.bf16.msra.mxu0 %v389
      %421 = vmatpush.bf16.msra.mxu0 %v388
      %422 = vmatpush.bf16.msra.mxu0 %v387
      %423 = vmatpush.bf16.msra.mxu0 %v386
      %424 = vmatpush.bf16.msra.mxu0 %v385
      %425 = vmatpush.bf16.msra.mxu0 %v384
      %426 = vmatpush.bf16.msra.mxu0 %v383
      %427 = vmatpush.bf16.msra.mxu0 %v382
      %428 = vmatmul.bf16.gmra.mxu0 %v307
      %v429 = vpop.f32.mrf.mxu0
      %v430 = vadd.f32 %v416, %v429
      %v431 = vpop.f32.mrf.mxu0
      %v432 = vadd.f32 %v418, %v431
      %433 = vdwg.mxu0
      %v434 = vadd.f32 %v264, %v430
      %v435 = vadd.f32 %v265, %v432
      %436 = vst [vmem:[#allocation2] sm:$0xff] %v434
      %437 = vst [vmem:[#allocation2 + $0x8] sm:$0xff] %v435
      // Predicated region
      $region37: #{pretrained_model_forward.8} parent=31 // pred_check
        %p438 = pneg %p258
      $region38: #{pretrained_model_forward.8} parent=31 // pred_check_branch
        %440 = sbr.rel (%p438) target = $region40
      $region39: #{pretrained_model_forward.8} parent=31 // pred_region
        %v441 = vld [vmem:[#allocation2] sm:$0xff]
        %v442 = vld [vmem:[#allocation2 + $0x8] sm:$0xff]
        %v443 = vld [vmem:[%s2] sm:$0x1]
        %v445 = vperm.slane %v443, 0
        %v447 = vadd.f32 %v441, %v445
        %v448 = vadd.f32 %v442, %v445
        %v449 = vmax.f32 %v447, 0.0
        %v450 = vmax.f32 %v448, 0.0
        %v451 = vpack.c.bf16 %v449, %v449
        %v452 = vpack.c.bf16 %v450, %v450
        %453 = vst [vmem:[%s256] sm:$0xf] %v451
        %454 = vst [vmem:[%s256 + $0x4] sm:$0xf] %v452
      $region40: #{pretrained_model_forward.8} parent=31 // pred_fallthru
        _
      %s455 = smul.u32 2, %s20
      %p456 = scmp.lt.s32.totalorder %s19, 1
      %s457 = scalar_select %p456, %s19, 1
      %p458 = scmp.lt.s32.totalorder %s455, 1
      %s459 = scalar_select %p458, %s455, 1
      %s460 = smul.addr %s457, 2
      %s461 = sadd.s32 %s459, %s460
      %s462 = smul.addr %s461, 4
      %s463 = scalar_lea.vmem %s3, %s462
      // Predicated region
      $region41: #{pretrained_model_forward.8} parent=31 // pred_check
        %p464 = pneg %p130
      $region42: #{pretrained_model_forward.8} parent=31 // pred_check_branch
        %466 = sbr.rel (%p464) target = $region44
      $region43: #{pretrained_model_forward.8} parent=31 // pred_region
        %s467 = smul.u32 2, %s20
      $region44: #{pretrained_model_forward.8} parent=31 // pred_fallthru
        _
    $region32: #{pretrained_model_forward.8} parent=5 // pred_fallthru
      _
    %p468 = scmp.le.s32.totalorder 2, %s9
    // Predicated region
    $region45: #{pretrained_model_forward.8} parent=5 // pred_check
      %p469 = pneg %p468
    $region46: #{pretrained_model_forward.8} parent=5 // pred_check_branch
      %471 = sbr.rel (%p469) target = $region48
    $region47: #{pretrained_model_forward.8} parent=5 // pred_region
      %s472 = ssub.s32 %s9, 2
      // Predicated region
      $region49: #{pretrained_model_forward.8} parent=47 // pred_check
        %p473 = pneg %p136
      $region50: #{pretrained_model_forward.8} parent=47 // pred_check_branch
        %475 = sbr.rel (%p473) target = $region52
      $region51: #{pretrained_model_forward.8} parent=47 // pred_region
        %s476 = smul.u32 2, %s23
        %p477 = scmp.lt.s32.totalorder %s22, 1
        %s478 = scalar_select %p477, %s22, 1
        %p479 = scmp.lt.s32.totalorder %s476, 1
        %s480 = scalar_select %p479, %s476, 1
        %s481 = smul.addr %s478, 2
        %s482 = sadd.s32 %s480, %s481
        %s483 = smul.addr %s482, 4
        %s484 = scalar_lea.vmem %s3, %s483
      $region52: #{pretrained_model_forward.8} parent=47 // pred_fallthru
        _
    $region48: #{pretrained_model_forward.8} parent=5 // pred_fallthru
      _
  $region6: #{pretrained_model_forward.8} parent=0 // loop_footer
    %s13 = sadd.s32 1, %s9
  $region7: #{pretrained_model_forward.8} parent=0 // loop_footer_branch
    %8 = sbr.rel target = $region3
  $region8: #{pretrained_model_forward.8} parent=0 // loop_exit
    _

// kernel: pretrained_model_forward.9
$region0: #{pretrained_model_forward.9}
  #allocation0 [shape = 'u32[]', space=smem, size = 0x4, offset = 0x4, fixed_abs, tag = 'smem constant byte address 0x4 - core index']
  #allocation1 [shape = 'u32[72,128]{1,0:T(1,128)}', space=vmem, size = 0x9000, scoped, tag = 'internal scratch']
  #allocation2 [shape = 'f32[64,128]{1,0:T(8,128)}', space=vmem, size = 0x8000, scoped, tag = 'scratch operand']
  %s0 = inlined_call_operand.vmem [shape: bf16[2,64,512], index: 0, kind: input, shape index: {}]
  %s1 = inlined_call_operand.vmem [shape: bf16[512,128], index: 1, kind: input, shape index: {}]
  %s2 = inlined_call_operand.vmem [shape: f32[1,128], index: 2, kind: input, shape index: {}]
  %s3 = inlined_call_operand.vmem [shape: bf16[2,64,128], index: 3, kind: output, shape index: {}]
  %s4 = sld [smem:[#allocation0]]
  $region53: #{pretrained_model_forward.9} parent=0
    _
  %s6 = ssub.s32 1, %s4
  %s7 = scalar_select 0, %s6, %s4
  loop: start=0, step=1, limit=4
  $region2: #{pretrained_model_forward.9} parent=0 // loop_pre_header
    _
  $region3: #{pretrained_model_forward.9} parent=0 // loop_header
    %s9 = sphi 0, %s13
    %p10 = scmp.ge.s32.totalorder %s9, 4
    %s16 = sphi 0, %s35
    %s17 = sphi 0, %s31
    %s18 = sphi 0, %s27
    %s19 = sphi 0, %s16
    %s20 = sphi 0, %s17
    %s21 = sphi 0, %s18
    %s22 = sphi 0, %s19
    %s23 = sphi 0, %s20
    %s24 = sphi 0, %s21
    %s42 = sphi 0, %s44
    %s45 = sphi 0, %s42
    %s46 = sphi 0, %s45
    %s62 = sphi 0, %s46
    %s68 = sphi 0, %s70
    %s71 = sphi 0, %s68
    %s72 = sphi 0, %s71
    %s88 = sphi 0, %s72
    %s92 = sphi 0, %s92
    %s94 = sphi 0, %s92
    %s95 = sphi 0, %s94
    %s109 = sphi 0, %s95
    %s117 = sphi 0, %s119
    %s120 = sphi 0, %s117
    %s121 = sphi 0, %s120
    %s137 = sphi 0, %s121
  $region4: #{pretrained_model_forward.9} parent=0 // loop_header_branch
    %12 = sbr.rel (%p10) target = $region8
  $region5: #{pretrained_model_forward.9} parent=0 // loop_body
    %s14 = ssub.s32 %s9, 1
    %s15 = ssub.s32 %s9, 2
    %s25 = sadd.s32 1, %s18
    %p26 = scmp.ge.s32.totalorder %s25, 1
    %s27 = scalar_select %p26, 0, %s25
    %s28 = sadd.s32 1, %s17
    %s29 = scalar_select %p26, %s28, %s17
    %p30 = scmp.ge.s32.totalorder %s29, 1
    %s31 = scalar_select %p30, 0, %s29
    %s32 = sadd.s32 1, %s16
    %s33 = scalar_select %p30, %s32, %s16
    %p34 = scmp.ge.s32.totalorder %s33, 2
    %s35 = scalar_select %p34, 0, %s33
    %s36 = ssub.s32 %s16, %s35
    %s37 = ssub.s32 %s17, %s31
    %s38 = sor.u32 %s36, %s37
    %s39 = ssub.s32 %s18, %s27
    %s40 = sor.u32 %s38, %s39
    %p41 = scmp.eq.s32.totalorder %s40, 0
    %s43 = sadd.s32 %s42, 1
    %s44 = scalar_select %p41, %s42, %s43
    %p47 = pneg %p41
    %p48 = scmp.eq.s32.totalorder %s9, 1
    %p49 = por %p47, %p48
    %p50 = scmp.ne.s32.totalorder %s42, %s45
    %p51 = scmp.eq.s32.totalorder %s9, 0
    %p52 = por %p50, %p51
    %p53 = scmp.ne.s32.totalorder %s42, %s45
    %p54 = scmp.eq.s32.totalorder %s14, 1
    %p55 = por %p53, %p54
    %p56 = scmp.ne.s32.totalorder %s45, %s46
    %p57 = scmp.eq.s32.totalorder %s14, 0
    %p58 = por %p56, %p57
    %p59 = scmp.ne.s32.totalorder %s45, %s46
    %p60 = scmp.eq.s32.totalorder %s15, 1
    %p61 = por %p59, %p60
    %p63 = scmp.ne.s32.totalorder %s46, %s62
    %p64 = scmp.eq.s32.totalorder %s15, 0
    %p65 = por %p63, %p64
    %s66 = ssub.s32 %s18, %s27
    %p67 = scmp.eq.s32.totalorder %s66, 0
    %s69 = sadd.s32 %s68, 1
    %s70 = scalar_select %p67, %s68, %s69
    %p73 = pneg %p67
    %p74 = scmp.eq.s32.totalorder %s9, 1
    %p75 = por %p73, %p74
    %p76 = scmp.ne.s32.totalorder %s68, %s71
    %p77 = scmp.eq.s32.totalorder %s9, 0
    %p78 = por %p76, %p77
    %p79 = scmp.ne.s32.totalorder %s68, %s71
    %p80 = scmp.eq.s32.totalorder %s14, 1
    %p81 = por %p79, %p80
    %p82 = scmp.ne.s32.totalorder %s71, %s72
    %p83 = scmp.eq.s32.totalorder %s14, 0
    %p84 = por %p82, %p83
    %p85 = scmp.ne.s32.totalorder %s71, %s72
    %p86 = scmp.eq.s32.totalorder %s15, 1
    %p87 = por %p85, %p86
    %p89 = scmp.ne.s32.totalorder %s72, %s88
    %p90 = scmp.eq.s32.totalorder %s15, 0
    %p91 = por %p89, %p90
    %s93 = sadd.s32 %s92, 1
    %p96 = scmp.eq.s32.totalorder %s9, 1
    %p97 = scmp.ne.s32.totalorder %s92, %s94
    %p98 = scmp.eq.s32.totalorder %s9, 0
    %p99 = por %p97, %p98
    %p100 = scmp.ne.s32.totalorder %s92, %s94
    %p101 = scmp.eq.s32.totalorder %s14, 1
    %p102 = por %p100, %p101
    %p103 = scmp.ne.s32.totalorder %s94, %s95
    %p104 = scmp.eq.s32.totalorder %s14, 0
    %p105 = por %p103, %p104
    %p106 = scmp.ne.s32.totalorder %s94, %s95
    %p107 = scmp.eq.s32.totalorder %s15, 1
    %p108 = por %p106, %p107
    %p110 = scmp.ne.s32.totalorder %s95, %s109
    %p111 = scmp.eq.s32.totalorder %s15, 0
    %p112 = por %p110, %p111
    %s113 = ssub.s32 %s16, %s35
    %s114 = ssub.s32 %s17, %s31
    %s115 = sor.u32 %s113, %s114
    %p116 = scmp.eq.s32.totalorder %s115, 0
    %s118 = sadd.s32 %s117, 1
    %s119 = scalar_select %p116, %s117, %s118
    %p122 = pneg %p116
    %p123 = scmp.eq.s32.totalorder %s9, 1
    %p124 = por %p122, %p123
    %p125 = scmp.ne.s32.totalorder %s117, %s120
    %p126 = scmp.eq.s32.totalorder %s9, 0
    %p127 = por %p125, %p126
    %p128 = scmp.ne.s32.totalorder %s117, %s120
    %p129 = scmp.eq.s32.totalorder %s14, 1
    %p130 = por %p128, %p129
    %p131 = scmp.ne.s32.totalorder %s120, %s121
    %p132 = scmp.eq.s32.totalorder %s14, 0
    %p133 = por %p131, %p132
    %p134 = scmp.ne.s32.totalorder %s120, %s121
    %p135 = scmp.eq.s32.totalorder %s15, 1
    %p136 = por %p134, %p135
    %p138 = scmp.ne.s32.totalorder %s121, %s137
    %p139 = scmp.eq.s32.totalorder %s15, 0
    %p140 = por %p138, %p139
    %p141 = scmp.le.s32.totalorder 1, %s9
    %p142 = scmp.lt.s32.totalorder %s9, 3
    %p143 = pnand %p141, %p142
    %p144 = pneg %p143
    // Predicated region
    $region9: #{pretrained_model_forward.9} parent=5 // pred_check
      _
    $region10: #{pretrained_model_forward.9} parent=5 // pred_check_branch
      %146 = sbr.rel (%p143) target = $region12
    $region11: #{pretrained_model_forward.9} parent=5 // pred_region
      %s147 = ssub.s32 %s9, 1
      // Predicated region
      $region13: #{pretrained_model_forward.9} parent=11 // pred_check
        %p148 = pneg %p84
      $region14: #{pretrained_model_forward.9} parent=11 // pred_check_branch
        %150 = sbr.rel (%p148) target = $region16
      $region15: #{pretrained_model_forward.9} parent=11 // pred_region
        %s151 = smul.u32 64, %s21
        %p152 = scmp.lt.s32.totalorder %s151, 63
        %s153 = scalar_select %p152, %s151, 63
        %s154 = smul.addr %s153, 4
        %s155 = scalar_lea.vmem %s1, %s154
        %s156 = smul.u32 64, %s21
      $region16: #{pretrained_model_forward.9} parent=11 // pred_fallthru
        _
      // Predicated region
      $region17: #{pretrained_model_forward.9} parent=11 // pred_check
        %p157 = pneg %p105
      $region18: #{pretrained_model_forward.9} parent=11 // pred_check_branch
        %159 = sbr.rel (%p157) target = $region20
      $region19: #{pretrained_model_forward.9} parent=11 // pred_region
        _
      $region20: #{pretrained_model_forward.9} parent=11 // pred_fallthru
        _
    $region12: #{pretrained_model_forward.9} parent=5 // pred_fallthru
      _
    %p160 = scmp.lt.s32.totalorder %s9, 2
    // Predicated region
    $region21: #{pretrained_model_forward.9} parent=5 // pred_check
      %p161 = pneg %p160
    $region22: #{pretrained_model_forward.9} parent=5 // pred_check_branch
      %163 = sbr.rel (%p161) target = $region24
    $region23: #{pretrained_model_forward.9} parent=5 // pred_region
      // Predicated region
      $region25: #{pretrained_model_forward.9} parent=23 // pred_check
        %p164 = pneg %p52
      $region26: #{pretrained_model_forward.9} parent=23 // pred_check_branch
        %166 = sbr.rel (%p164) target = $region28
      $region27: #{pretrained_model_forward.9} parent=23 // pred_region
        %s167 = smul.u32 8, %s17
        %s168 = smul.u32 4, %s18
        %p169 = scmp.lt.s32.totalorder %s16, 1
        %s170 = scalar_select %p169, %s16, 1
        %p171 = scmp.lt.s32.totalorder %s167, 7
        %s172 = scalar_select %p171, %s167, 7
        %p173 = scmp.lt.s32.totalorder %s168, 3
        %s174 = scalar_select %p173, %s168, 3
        %s175 = smul.addr %s172, 4
        %s176 = sadd.s32 %s174, %s175
        %s177 = smul.addr %s170, 32
        %s178 = sadd.s32 %s176, %s177
        %s179 = smul.addr %s178, 4
        %s180 = scalar_lea.vmem %s0, %s179
        %s181 = smul.u32 8, %s17
        %s182 = smul.u32 4, %s18
      $region28: #{pretrained_model_forward.9} parent=23 // pred_fallthru
        _
    $region24: #{pretrained_model_forward.9} parent=5 // pred_fallthru
      _
    %p183 = scmp.le.s32.totalorder 1, %s9
    %p184 = scmp.lt.s32.totalorder %s9, 3
    %p185 = pnand %p183, %p184
    %p186 = pneg %p185
    // Predicated region
    $region29: #{pretrained_model_forward.9} parent=5 // pred_check
      _
    $region30: #{pretrained_model_forward.9} parent=5 // pred_check_branch
      %188 = sbr.rel (%p185) target = $region32
    $region31: #{pretrained_model_forward.9} parent=5 // pred_region
      %s189 = ssub.s32 %s9, 1
      %s190 = smul.u32 8, %s20
      %s191 = smul.u32 4, %s21
      %p192 = scmp.lt.s32.totalorder %s19, 1
      %s193 = scalar_select %p192, %s19, 1
      %p194 = scmp.lt.s32.totalorder %s190, 7
      %s195 = scalar_select %p194, %s190, 7
      %p196 = scmp.lt.s32.totalorder %s191, 3
      %s197 = scalar_select %p196, %s191, 3
      %s198 = smul.addr %s195, 4
      %s199 = sadd.s32 %s197, %s198
      %s200 = smul.addr %s193, 32
      %s201 = sadd.s32 %s199, %s200
      %s202 = smul.addr %s201, 4
      %s203 = scalar_lea.vmem %s0, %s202
      %p204 = pneg %p58
      %p205 = pneg %p55
      %s206 = smul.u32 64, %s21
      %p207 = scmp.lt.s32.totalorder %s206, 63
      %s208 = scalar_select %p207, %s206, 63
      %s209 = smul.addr %s208, 4
      %s210 = scalar_lea.vmem %s1, %s209
      %p211 = pneg %p84
      %p212 = pneg %p81
      %p213 = pneg %p105
      %p214 = pneg %p102
      %p215 = pneg %p133
      %p216 = pneg %p130
      %s217 = smul.u32 8, %s20
      %p218 = scmp.lt.s32.totalorder %s19, 1
      %s219 = scalar_select %p218, %s19, 1
      %p220 = scmp.lt.s32.totalorder %s217, 7
      %s221 = scalar_select %p220, %s217, 7
      %s222 = smul.addr %s219, 8
      %s223 = sadd.s32 %s221, %s222
      %s224 = smul.addr %s223, 4
      %s225 = scalar_lea.vmem %s3, %s224
      %s226 = smul.u32 8, %s20
      %s227 = smul.u32 4, %s21
      %p228 = scmp.lt.s32.totalorder %s19, 1
      %s229 = scalar_select %p228, %s19, 1
      %p230 = scmp.lt.s32.totalorder %s226, 7
      %s231 = scalar_select %p230, %s226, 7
      %p232 = scmp.lt.s32.totalorder %s227, 3
      %s233 = scalar_select %p232, %s227, 3
      %s234 = smul.addr %s231, 4
      %s235 = sadd.s32 %s233, %s234
      %s236 = smul.addr %s229, 32
      %s237 = sadd.s32 %s235, %s236
      %s238 = smul.addr %s237, 4
      %s239 = scalar_lea.vmem %s0, %s238
      %s240 = smul.u32 8, %s20
      %s241 = smul.u32 4, %s21
      %s242 = smul.u32 64, %s21
      %p243 = scmp.lt.s32.totalorder %s242, 63
      %s244 = scalar_select %p243, %s242, 63
      %s245 = smul.addr %s244, 4
      %s246 = scalar_lea.vmem %s1, %s245
      %s247 = smul.u32 64, %s21
      %s248 = smul.u32 8, %s20
      %p249 = scmp.lt.s32.totalorder %s19, 1
      %s250 = scalar_select %p249, %s19, 1
      %p251 = scmp.lt.s32.totalorder %s248, 7
      %s252 = scalar_select %p251, %s248, 7
      %s253 = smul.addr %s250, 8
      %s254 = sadd.s32 %s252, %s253
      %s255 = smul.addr %s254, 4
      %s256 = scalar_lea.vmem %s3, %s255
      %s257 = smul.u32 8, %s20
      %p258 = scmp.eq.s32.totalorder %s21, 0
      // Predicated region
      $region33: #{pretrained_model_forward.9} parent=31 // pred_check
        %p259 = pneg %p258
      $region34: #{pretrained_model_forward.9} parent=31 // pred_check_branch
        %261 = sbr.rel (%p259) target = $region36
      $region35: #{pretrained_model_forward.9} parent=31 // pred_region
        %262 = vst [vmem:[#allocation2] sm:$0xff] 0.0
        %263 = vst [vmem:[#allocation2 + $0x8] sm:$0xff] 0.0
        %264 = vst [vmem:[#allocation2 + $0x10] sm:$0xff] 0.0
        %265 = vst [vmem:[#allocation2 + $0x18] sm:$0xff] 0.0
        %266 = vst [vmem:[#allocation2 + $0x20] sm:$0xff] 0.0
        %267 = vst [vmem:[#allocation2 + $0x28] sm:$0xff] 0.0
        %268 = vst [vmem:[#allocation2 + $0x30] sm:$0xff] 0.0
        %269 = vst [vmem:[#allocation2 + $0x38] sm:$0xff] 0.0
      $region36: #{pretrained_model_forward.9} parent=31 // pred_fallthru
        _
      %v270 = vld [vmem:[#allocation2] sm:$0xff]
      %v271 = vld [vmem:[#allocation2 + $0x8] sm:$0xff]
      %v272 = vld [vmem:[#allocation2 + $0x10] sm:$0xff]
      %v273 = vld [vmem:[#allocation2 + $0x18] sm:$0xff]
      %v274 = vld [vmem:[#allocation2 + $0x20] sm:$0xff]
      %v275 = vld [vmem:[#allocation2 + $0x28] sm:$0xff]
      %v276 = vld [vmem:[#allocation2 + $0x30] sm:$0xff]
      %v277 = vld [vmem:[#allocation2 + $0x38] sm:$0xff]
      %v278 = vld [vmem:[%s239] sm:$0xff]
      %v279 = vld [vmem:[%s239 + $0x8] sm:$0xff]
      %v280 = vld [vmem:[%s239 + $0x10] sm:$0xff]
      %v281 = vld [vmem:[%s239 + $0x18] sm:$0xff]
      %v282 = vld [vmem:[%s239 + $0x20] sm:$0xff]
      %v283 = vld [vmem:[%s239 + $0x28] sm:$0xff]
      %v284 = vld [vmem:[%s239 + $0x30] sm:$0xff]
      %v285 = vld [vmem:[%s239 + $0x38] sm:$0xff]
      %v286 = vld [vmem:[%s239 + $0x40] sm:$0xff]
      %v287 = vld [vmem:[%s239 + $0x48] sm:$0xff]
      %v288 = vld [vmem:[%s239 + $0x50] sm:$0xff]
      %v289 = vld [vmem:[%s239 + $0x58] sm:$0xff]
      %v290 = vld [vmem:[%s239 + $0x60] sm:$0xff]
      %v291 = vld [vmem:[%s239 + $0x68] sm:$0xff]
      %v292 = vld [vmem:[%s239 + $0x70] sm:$0xff]
      %v293 = vld [vmem:[%s239 + $0x78] sm:$0xff]
      %v294 = vld [vmem:[%s246] sm:$0xf]
      %v295 = vld [vmem:[%s246 + $0x4] sm:$0xf]
      %v296 = vld [vmem:[%s246 + $0x8] sm:$0xf]
      %v297 = vld [vmem:[%s246 + $0xc] sm:$0xf]
      %v298 = vld [vmem:[%s246 + $0x10] sm:$0xf]
      %v299 = vld [vmem:[%s246 + $0x14] sm:$0xf]
      %v300 = vld [vmem:[%s246 + $0x18] sm:$0xf]
      %v301 = vld [vmem:[%s246 + $0x1c] sm:$0xf]
      %v302 = vld [vmem:[%s246 + $0x20] sm:$0xf]
      %v303 = vld [vmem:[%s246 + $0x24] sm:$0xf]
      %v304 = vld [vmem:[%s246 + $0x28] sm:$0xf]
      %v305 = vld [vmem:[%s246 + $0x2c] sm:$0xf]
      %v306 = vld [vmem:[%s246 + $0x30] sm:$0xf]
      %v307 = vld [vmem:[%s246 + $0x34] sm:$0xf]
      %v308 = vld [vmem:[%s246 + $0x38] sm:$0xf]
      %v309 = vld [vmem:[%s246 + $0x3c] sm:$0xf]
      %v310 = vld [vmem:[%s246 + $0x40] sm:$0xf]
      %v311 = vld [vmem:[%s246 + $0x44] sm:$0xf]
      %v312 = vld [vmem:[%s246 + $0x48] sm:$0xf]
      %v313 = vld [vmem:[%s246 + $0x4c] sm:$0xf]
      %v314 = vld [vmem:[%s246 + $0x50] sm:$0xf]
      %v315 = vld [vmem:[%s246 + $0x54] sm:$0xf]
      %v316 = vld [vmem:[%s246 + $0x58] sm:$0xf]
      %v317 = vld [vmem:[%s246 + $0x5c] sm:$0xf]
      %v318 = vld [vmem:[%s246 + $0x60] sm:$0xf]
      %v319 = vld [vmem:[%s246 + $0x64] sm:$0xf]
      %v320 = vld [vmem:[%s246 + $0x68] sm:$0xf]
      %v321 = vld [vmem:[%s246 + $0x6c] sm:$0xf]
      %v322 = vld [vmem:[%s246 + $0x70] sm:$0xf]
      %v323 = vld [vmem:[%s246 + $0x74] sm:$0xf]
      %v324 = vld [vmem:[%s246 + $0x78] sm:$0xf]
      %v325 = vld [vmem:[%s246 + $0x7c] sm:$0xf]
      %v326 = vld [vmem:[%s246 + $0x80] sm:$0xf]
      %v327 = vld [vmem:[%s246 + $0x84] sm:$0xf]
      %v328 = vld [vmem:[%s246 + $0x88] sm:$0xf]
      %v329 = vld [vmem:[%s246 + $0x8c] sm:$0xf]
      %v330 = vld [vmem:[%s246 + $0x90] sm:$0xf]
      %v331 = vld [vmem:[%s246 + $0x94] sm:$0xf]
      %v332 = vld [vmem:[%s246 + $0x98] sm:$0xf]
      %v333 = vld [vmem:[%s246 + $0x9c] sm:$0xf]
      %v334 = vld [vmem:[%s246 + $0xa0] sm:$0xf]
      %v335 = vld [vmem:[%s246 + $0xa4] sm:$0xf]
      %v336 = vld [vmem:[%s246 + $0xa8] sm:$0xf]
      %v337 = vld [vmem:[%s246 + $0xac] sm:$0xf]
      %v338 = vld [vmem:[%s246 + $0xb0] sm:$0xf]
      %v339 = vld [vmem:[%s246 + $0xb4] sm:$0xf]
      %v340 = vld [vmem:[%s246 + $0xb8] sm:$0xf]
      %v341 = vld [vmem:[%s246 + $0xbc] sm:$0xf]
      %v342 = vld [vmem:[%s246 + $0xc0] sm:$0xf]
      %v343 = vld [vmem:[%s246 + $0xc4] sm:$0xf]
      %v344 = vld [vmem:[%s246 + $0xc8] sm:$0xf]
      %v345 = vld [vmem:[%s246 + $0xcc] sm:$0xf]
      %v346 = vld [vmem:[%s246 + $0xd0] sm:$0xf]
      %v347 = vld [vmem:[%s246 + $0xd4] sm:$0xf]
      %v348 = vld [vmem:[%s246 + $0xd8] sm:$0xf]
      %v349 = vld [vmem:[%s246 + $0xdc] sm:$0xf]
      %v350 = vld [vmem:[%s246 + $0xe0] sm:$0xf]
      %v351 = vld [vmem:[%s246 + $0xe4] sm:$0xf]
      %v352 = vld [vmem:[%s246 + $0xe8] sm:$0xf]
      %v353 = vld [vmem:[%s246 + $0xec] sm:$0xf]
      %v354 = vld [vmem:[%s246 + $0xf0] sm:$0xf]
      %v355 = vld [vmem:[%s246 + $0xf4] sm:$0xf]
      %v356 = vld [vmem:[%s246 + $0xf8] sm:$0xf]
      %v357 = vld [vmem:[%s246 + $0xfc] sm:$0xf]
      %v374 = vunpack.c.l.b16 %v278
      %v375 = vunpack.c.h.b16 %v278
      %v376 = vunpack.c.l.b16 %v279
      %v377 = vunpack.c.h.b16 %v279
      %v378 = vunpack.c.l.b16 %v280
      %v379 = vunpack.c.h.b16 %v280
      %v380 = vunpack.c.l.b16 %v281
      %v381 = vunpack.c.h.b16 %v281
      %v382 = vunpack.c.l.b16 %v282
      %v383 = vunpack.c.h.b16 %v282
      %v384 = vunpack.c.l.b16 %v283
      %v385 = vunpack.c.h.b16 %v283
      %v386 = vunpack.c.l.b16 %v284
      %v387 = vunpack.c.h.b16 %v284
      %v388 = vunpack.c.l.b16 %v285
      %v389 = vunpack.c.h.b16 %v285
      %v390 = vunpack.c.l.b16 %v286
      %v391 = vunpack.c.h.b16 %v286
      %v392 = vunpack.c.l.b16 %v287
      %v393 = vunpack.c.h.b16 %v287
      %v394 = vunpack.c.l.b16 %v288
      %v395 = vunpack.c.h.b16 %v288
      %v396 = vunpack.c.l.b16 %v289
      %v397 = vunpack.c.h.b16 %v289
      %v398 = vunpack.c.l.b16 %v290
      %v399 = vunpack.c.h.b16 %v290
      %v400 = vunpack.c.l.b16 %v291
      %v401 = vunpack.c.h.b16 %v291
      %v402 = vunpack.c.l.b16 %v292
      %v403 = vunpack.c.h.b16 %v292
      %v404 = vunpack.c.l.b16 %v293
      %v405 = vunpack.c.h.b16 %v293
      %v406 = vpack.c.b16 %v378, %v374
      %v407 = vpack.c.b16 %v379, %v375
      %v408 = vpack.c.b16 %v380, %v376
      %v409 = vpack.c.b16 %v381, %v377
      %v410 = vpack.c.b16 %v386, %v382
      %v411 = vpack.c.b16 %v387, %v383
      %v412 = vpack.c.b16 %v388, %v384
      %v413 = vpack.c.b16 %v389, %v385
      %v414 = vpack.c.b16 %v394, %v390
      %v415 = vpack.c.b16 %v395, %v391
      %v416 = vpack.c.b16 %v396, %v392
      %v417 = vpack.c.b16 %v397, %v393
      %v418 = vpack.c.b16 %v402, %v398
      %v419 = vpack.c.b16 %v403, %v399
      %v420 = vpack.c.b16 %v404, %v400
      %v421 = vpack.c.b16 %v405, %v401
      %v502 = vunpack.c.l.b16 %v294
      %v503 = vunpack.c.l.b16 %v295
      %v504 = vunpack.c.l.b16 %v296
      %v505 = vunpack.c.l.b16 %v297
      %v506 = vunpack.c.l.b16 %v298
      %v507 = vunpack.c.l.b16 %v299
      %v508 = vunpack.c.l.b16 %v300
      %v509 = vunpack.c.l.b16 %v301
      %v510 = vunpack.c.l.b16 %v302
      %v511 = vunpack.c.l.b16 %v303
      %v512 = vunpack.c.l.b16 %v304
      %v513 = vunpack.c.l.b16 %v305
      %v514 = vunpack.c.l.b16 %v306
      %v515 = vunpack.c.l.b16 %v307
      %v516 = vunpack.c.l.b16 %v308
      %v517 = vunpack.c.l.b16 %v309
      %v518 = vunpack.c.l.b16 %v310
      %v519 = vunpack.c.l.b16 %v311
      %v520 = vunpack.c.l.b16 %v312
      %v521 = vunpack.c.l.b16 %v313
      %v522 = vunpack.c.l.b16 %v314
      %v523 = vunpack.c.l.b16 %v315
      %v524 = vunpack.c.l.b16 %v316
      %v525 = vunpack.c.l.b16 %v317
      %v526 = vunpack.c.l.b16 %v318
      %v527 = vunpack.c.l.b16 %v319
      %v528 = vunpack.c.l.b16 %v320
      %v529 = vunpack.c.l.b16 %v321
      %v530 = vunpack.c.l.b16 %v322
      %v531 = vunpack.c.l.b16 %v323
      %v532 = vunpack.c.l.b16 %v324
      %v533 = vunpack.c.l.b16 %v325
      %v534 = vunpack.c.l.b16 %v326
      %v535 = vunpack.c.l.b16 %v327
      %v536 = vunpack.c.l.b16 %v328
      %v537 = vunpack.c.l.b16 %v329
      %v538 = vunpack.c.l.b16 %v330
      %v539 = vunpack.c.l.b16 %v331
      %v540 = vunpack.c.l.b16 %v332
      %v541 = vunpack.c.l.b16 %v333
      %v542 = vunpack.c.l.b16 %v334
      %v543 = vunpack.c.l.b16 %v335
      %v544 = vunpack.c.l.b16 %v336
      %v545 = vunpack.c.l.b16 %v337
      %v546 = vunpack.c.l.b16 %v338
      %v547 = vunpack.c.l.b16 %v339
      %v548 = vunpack.c.l.b16 %v340
      %v549 = vunpack.c.l.b16 %v341
      %v550 = vunpack.c.l.b16 %v342
      %v551 = vunpack.c.l.b16 %v343
      %v552 = vunpack.c.l.b16 %v344
      %v553 = vunpack.c.l.b16 %v345
      %v554 = vunpack.c.l.b16 %v346
      %v555 = vunpack.c.l.b16 %v347
      %v556 = vunpack.c.l.b16 %v348
      %v557 = vunpack.c.l.b16 %v349
      %v558 = vunpack.c.l.b16 %v350
      %v559 = vunpack.c.l.b16 %v351
      %v560 = vunpack.c.l.b16 %v352
      %v561 = vunpack.c.l.b16 %v353
      %v562 = vunpack.c.l.b16 %v354
      %v563 = vunpack.c.l.b16 %v355
      %v564 = vunpack.c.l.b16 %v356
      %v565 = vunpack.c.l.b16 %v357
      %v566 = vpack.c.b16 %v503, %v502
      %v567 = vpack.c.b16 %v505, %v504
      %v568 = vpack.c.b16 %v507, %v506
      %v569 = vpack.c.b16 %v509, %v508
      %v570 = vpack.c.b16 %v511, %v510
      %v571 = vpack.c.b16 %v513, %v512
      %v572 = vpack.c.b16 %v515, %v514
      %v573 = vpack.c.b16 %v517, %v516
      %v574 = vpack.c.b16 %v519, %v518
      %v575 = vpack.c.b16 %v521, %v520
      %v576 = vpack.c.b16 %v523, %v522
      %v577 = vpack.c.b16 %v525, %v524
      %v578 = vpack.c.b16 %v527, %v526
      %v579 = vpack.c.b16 %v529, %v528
      %v580 = vpack.c.b16 %v531, %v530
      %v581 = vpack.c.b16 %v533, %v532
      %v582 = vpack.c.b16 %v535, %v534
      %v583 = vpack.c.b16 %v537, %v536
      %v584 = vpack.c.b16 %v539, %v538
      %v585 = vpack.c.b16 %v541, %v540
      %v586 = vpack.c.b16 %v543, %v542
      %v587 = vpack.c.b16 %v545, %v544
      %v588 = vpack.c.b16 %v547, %v546
      %v589 = vpack.c.b16 %v549, %v548
      %v590 = vpack.c.b16 %v551, %v550
      %v591 = vpack.c.b16 %v553, %v552
      %v592 = vpack.c.b16 %v555, %v554
      %v593 = vpack.c.b16 %v557, %v556
      %v594 = vpack.c.b16 %v559, %v558
      %v595 = vpack.c.b16 %v561, %v560
      %v596 = vpack.c.b16 %v563, %v562
      %v597 = vpack.c.b16 %v565, %v564
      %630 = vmatpush.bf16.msra.mxu0 %v573
      %631 = vmatpush.bf16.msra.mxu0 %v572
      %632 = vmatpush.bf16.msra.mxu0 %v571
      %633 = vmatpush.bf16.msra.mxu0 %v570
      %634 = vmatpush.bf16.msra.mxu0 %v569
      %635 = vmatpush.bf16.msra.mxu0 %v568
      %636 = vmatpush.bf16.msra.mxu0 %v567
      %637 = vmatpush.bf16.msra.mxu0 %v566
      %638 = vmatmul.bf16.gmra.mxu0 %v406
      %v639 = vpop.f32.mrf.mxu0
      %v640 = vadd.f32 0.0, %v639
      %v641 = vpop.f32.mrf.mxu0
      %v642 = vadd.f32 0.0, %v641
      %643 = vmatmul.bf16.gmra.mxu0 %v410
      %v644 = vpop.f32.mrf.mxu0
      %v645 = vadd.f32 0.0, %v644
      %v646 = vpop.f32.mrf.mxu0
      %v647 = vadd.f32 0.0, %v646
      %648 = vmatmul.bf16.gmra.mxu0 %v414
      %v649 = vpop.f32.mrf.mxu0
      %v650 = vadd.f32 0.0, %v649
      %v651 = vpop.f32.mrf.mxu0
      %v652 = vadd.f32 0.0, %v651
      %653 = vmatmul.bf16.gmra.mxu0 %v418
      %v654 = vpop.f32.mrf.mxu0
      %v655 = vadd.f32 0.0, %v654
      %v656 = vpop.f32.mrf.mxu0
      %v657 = vadd.f32 0.0, %v656
      %658 = vdwg.mxu0
      %659 = vmatpush.bf16.msra.mxu0 %v581
      %660 = vmatpush.bf16.msra.mxu0 %v580
      %661 = vmatpush.bf16.msra.mxu0 %v579
      %662 = vmatpush.bf16.msra.mxu0 %v578
      %663 = vmatpush.bf16.msra.mxu0 %v577
      %664 = vmatpush.bf16.msra.mxu0 %v576
      %665 = vmatpush.bf16.msra.mxu0 %v575
      %666 = vmatpush.bf16.msra.mxu0 %v574
      %667 = vmatmul.bf16.gmra.mxu0 %v407
      %v668 = vpop.f32.mrf.mxu0
      %v669 = vadd.f32 %v640, %v668
      %v670 = vpop.f32.mrf.mxu0
      %v671 = vadd.f32 %v642, %v670
      %672 = vmatmul.bf16.gmra.mxu0 %v411
      %v673 = vpop.f32.mrf.mxu0
      %v674 = vadd.f32 %v645, %v673
      %v675 = vpop.f32.mrf.mxu0
      %v676 = vadd.f32 %v647, %v675
      %677 = vmatmul.bf16.gmra.mxu0 %v415
      %v678 = vpop.f32.mrf.mxu0
      %v679 = vadd.f32 %v650, %v678
      %v680 = vpop.f32.mrf.mxu0
      %v681 = vadd.f32 %v652, %v680
      %682 = vmatmul.bf16.gmra.mxu0 %v419
      %v683 = vpop.f32.mrf.mxu0
      %v684 = vadd.f32 %v655, %v683
      %v685 = vpop.f32.mrf.mxu0
      %v686 = vadd.f32 %v657, %v685
      %687 = vdwg.mxu0
      %688 = vmatpush.bf16.msra.mxu0 %v589
      %689 = vmatpush.bf16.msra.mxu0 %v588
      %690 = vmatpush.bf16.msra.mxu0 %v587
      %691 = vmatpush.bf16.msra.mxu0 %v586
      %692 = vmatpush.bf16.msra.mxu0 %v585
      %693 = vmatpush.bf16.msra.mxu0 %v584
      %694 = vmatpush.bf16.msra.mxu0 %v583
      %695 = vmatpush.bf16.msra.mxu0 %v582
      %696 = vmatmul.bf16.gmra.mxu0 %v408
      %v697 = vpop.f32.mrf.mxu0
      %v698 = vadd.f32 %v669, %v697
      %v699 = vpop.f32.mrf.mxu0
      %v700 = vadd.f32 %v671, %v699
      %701 = vmatmul.bf16.gmra.mxu0 %v412
      %v702 = vpop.f32.mrf.mxu0
      %v703 = vadd.f32 %v674, %v702
      %v704 = vpop.f32.mrf.mxu0
      %v705 = vadd.f32 %v676, %v704
      %706 = vmatmul.bf16.gmra.mxu0 %v416
      %v707 = vpop.f32.mrf.mxu0
      %v708 = vadd.f32 %v679, %v707
      %v709 = vpop.f32.mrf.mxu0
      %v710 = vadd.f32 %v681, %v709
      %711 = vmatmul.bf16.gmra.mxu0 %v420
      %v712 = vpop.f32.mrf.mxu0
      %v713 = vadd.f32 %v684, %v712
      %v714 = vpop.f32.mrf.mxu0
      %v715 = vadd.f32 %v686, %v714
      %716 = vdwg.mxu0
      %717 = vmatpush.bf16.msra.mxu0 %v597
      %718 = vmatpush.bf16.msra.mxu0 %v596
      %719 = vmatpush.bf16.msra.mxu0 %v595
      %720 = vmatpush.bf16.msra.mxu0 %v594
      %721 = vmatpush.bf16.msra.mxu0 %v593
      %722 = vmatpush.bf16.msra.mxu0 %v592
      %723 = vmatpush.bf16.msra.mxu0 %v591
      %724 = vmatpush.bf16.msra.mxu0 %v590
      %725 = vmatmul.bf16.gmra.mxu0 %v409
      %v726 = vpop.f32.mrf.mxu0
      %v727 = vadd.f32 %v698, %v726
      %v728 = vpop.f32.mrf.mxu0
      %v729 = vadd.f32 %v700, %v728
      %730 = vmatmul.bf16.gmra.mxu0 %v413
      %v731 = vpop.f32.mrf.mxu0
      %v732 = vadd.f32 %v703, %v731
      %v733 = vpop.f32.mrf.mxu0
      %v734 = vadd.f32 %v705, %v733
      %735 = vmatmul.bf16.gmra.mxu0 %v417
      %v736 = vpop.f32.mrf.mxu0
      %v737 = vadd.f32 %v708, %v736
      %v738 = vpop.f32.mrf.mxu0
      %v739 = vadd.f32 %v710, %v738
      %740 = vmatmul.bf16.gmra.mxu0 %v421
      %v741 = vpop.f32.mrf.mxu0
      %v742 = vadd.f32 %v713, %v741
      %v743 = vpop.f32.mrf.mxu0
      %v744 = vadd.f32 %v715, %v743
      %745 = vdwg.mxu0
      %v746 = vadd.f32 %v270, %v727
      %v747 = vadd.f32 %v271, %v729
      %v748 = vadd.f32 %v272, %v732
      %v749 = vadd.f32 %v273, %v734
      %v750 = vadd.f32 %v274, %v737
      %v751 = vadd.f32 %v275, %v739
      %v752 = vadd.f32 %v276, %v742
      %v753 = vadd.f32 %v277, %v744
      %754 = vst [vmem:[#allocation2] sm:$0xff] %v746
      %755 = vst [vmem:[#allocation2 + $0x8] sm:$0xff] %v747
      %756 = vst [vmem:[#allocation2 + $0x10] sm:$0xff] %v748
      %757 = vst [vmem:[#allocation2 + $0x18] sm:$0xff] %v749
      %758 = vst [vmem:[#allocation2 + $0x20] sm:$0xff] %v750
      %759 = vst [vmem:[#allocation2 + $0x28] sm:$0xff] %v751
      %760 = vst [vmem:[#allocation2 + $0x30] sm:$0xff] %v752
      %761 = vst [vmem:[#allocation2 + $0x38] sm:$0xff] %v753
      // Predicated region
      $region37: #{pretrained_model_forward.9} parent=31 // pred_check
        %p762 = pneg %p258
      $region38: #{pretrained_model_forward.9} parent=31 // pred_check_branch
        %764 = sbr.rel (%p762) target = $region40
      $region39: #{pretrained_model_forward.9} parent=31 // pred_region
        %v765 = vld [vmem:[#allocation2] sm:$0xff]
        %v766 = vld [vmem:[#allocation2 + $0x8] sm:$0xff]
        %v767 = vld [vmem:[#allocation2 + $0x10] sm:$0xff]
        %v768 = vld [vmem:[#allocation2 + $0x18] sm:$0xff]
        %v769 = vld [vmem:[#allocation2 + $0x20] sm:$0xff]
        %v770 = vld [vmem:[#allocation2 + $0x28] sm:$0xff]
        %v771 = vld [vmem:[#allocation2 + $0x30] sm:$0xff]
        %v772 = vld [vmem:[#allocation2 + $0x38] sm:$0xff]
        %v773 = vld [vmem:[%s2] sm:$0x1]
        %v775 = vperm.slane %v773, 0
        %v777 = vadd.f32 %v765, %v775
        %v778 = vadd.f32 %v766, %v775
        %v779 = vadd.f32 %v767, %v775
        %v780 = vadd.f32 %v768, %v775
        %v781 = vadd.f32 %v769, %v775
        %v782 = vadd.f32 %v770, %v775
        %v783 = vadd.f32 %v771, %v775
        %v784 = vadd.f32 %v772, %v775
        %v785 = vmax.f32 %v777, 0.0
        %v786 = vmax.f32 %v778, 0.0
        %v787 = vmax.f32 %v779, 0.0
        %v788 = vmax.f32 %v780, 0.0
        %v789 = vmax.f32 %v781, 0.0
        %v790 = vmax.f32 %v782, 0.0
        %v791 = vmax.f32 %v783, 0.0
        %v792 = vmax.f32 %v784, 0.0
        %v793 = vpack.c.bf16 %v785, %v785
        %v794 = vpack.c.bf16 %v786, %v786
        %v795 = vpack.c.bf16 %v787, %v787
        %v796 = vpack.c.bf16 %v788, %v788
        %v797 = vpack.c.bf16 %v789, %v789
        %v798 = vpack.c.bf16 %v790, %v790
        %v799 = vpack.c.bf16 %v791, %v791
        %v800 = vpack.c.bf16 %v792, %v792
        %801 = vst [vmem:[%s256] sm:$0xf] %v793
        %802 = vst [vmem:[%s256 + $0x4] sm:$0xf] %v794
        %803 = vst [vmem:[%s256 + $0x8] sm:$0xf] %v795
        %804 = vst [vmem:[%s256 + $0xc] sm:$0xf] %v796
        %805 = vst [vmem:[%s256 + $0x10] sm:$0xf] %v797
        %806 = vst [vmem:[%s256 + $0x14] sm:$0xf] %v798
        %807 = vst [vmem:[%s256 + $0x18] sm:$0xf] %v799
        %808 = vst [vmem:[%s256 + $0x1c] sm:$0xf] %v800
      $region40: #{pretrained_model_forward.9} parent=31 // pred_fallthru
        _
      %s809 = smul.u32 8, %s20
      %p810 = scmp.lt.s32.totalorder %s19, 1
      %s811 = scalar_select %p810, %s19, 1
      %p812 = scmp.lt.s32.totalorder %s809, 7
      %s813 = scalar_select %p812, %s809, 7
      %s814 = smul.addr %s811, 8
      %s815 = sadd.s32 %s813, %s814
      %s816 = smul.addr %s815, 4
      %s817 = scalar_lea.vmem %s3, %s816
      // Predicated region
      $region41: #{pretrained_model_forward.9} parent=31 // pred_check
        %p818 = pneg %p130
      $region42: #{pretrained_model_forward.9} parent=31 // pred_check_branch
        %820 = sbr.rel (%p818) target = $region44
      $region43: #{pretrained_model_forward.9} parent=31 // pred_region
        %s821 = smul.u32 8, %s20
      $region44: #{pretrained_model_forward.9} parent=31 // pred_fallthru
        _
    $region32: #{pretrained_model_forward.9} parent=5 // pred_fallthru
      _
    %p822 = scmp.le.s32.totalorder 2, %s9
    // Predicated region
    $region45: #{pretrained_model_forward.9} parent=5 // pred_check
      %p823 = pneg %p822
    $region46: #{pretrained_model_forward.9} parent=5 // pred_check_branch
      %825 = sbr.rel (%p823) target = $region48
    $region47: #{pretrained_model_forward.9} parent=5 // pred_region
      %s826 = ssub.s32 %s9, 2
      // Predicated region
      $region49: #{pretrained_model_forward.9} parent=47 // pred_check
        %p827 = pneg %p136
      $region50: #{pretrained_model_forward.9} parent=47 // pred_check_branch
        %829 = sbr.rel (%p827) target = $region52
      $region51: #{pretrained_model_forward.9} parent=47 // pred_region
        %s830 = smul.u32 8, %s23
        %p831 = scmp.lt.s32.totalorder %s22, 1
        %s832 = scalar_select %p831, %s22, 1
        %p833 = scmp.lt.s32.totalorder %s830, 7
        %s834 = scalar_select %p833, %s830, 7
        %s835 = smul.addr %s832, 8
        %s836 = sadd.s32 %s834, %s835
        %s837 = smul.addr %s836, 4
        %s838 = scalar_lea.vmem %s3, %s837
      $region52: #{pretrained_model_forward.9} parent=47 // pred_fallthru
        _
    $region48: #{pretrained_model_forward.9} parent=5 // pred_fallthru
      _
  $region6: #{pretrained_model_forward.9} parent=0 // loop_footer
    %s13 = sadd.s32 1, %s9
  $region7: #{pretrained_model_forward.9} parent=0 // loop_footer_branch
    %8 = sbr.rel target = $region3
  $region8: #{pretrained_model_forward.9} parent=0 // loop_exit
    _

// kernel: pretrained_model_forward.10
$region0: #{pretrained_model_forward.10}
  #allocation0 [shape = 'u32[]', space=smem, size = 0x4, offset = 0x4, fixed_abs, tag = 'smem constant byte address 0x4 - core index']
  #allocation1 [shape = 'u32[72,128]{1,0:T(1,128)}', space=vmem, size = 0x9000, scoped, tag = 'internal scratch']
  #allocation2 [shape = 'f32[256,128]{1,0:T(8,128)}', space=vmem, size = 0x20000, scoped, tag = 'scratch operand']
  %s0 = inlined_call_operand.vmem [shape: bf16[2,256,256], index: 0, kind: input, shape index: {}]
  %s1 = inlined_call_operand.vmem [shape: bf16[256,128], index: 1, kind: input, shape index: {}]
  %s2 = inlined_call_operand.vmem [shape: f32[1,128], index: 2, kind: input, shape index: {}]
  %s3 = inlined_call_operand.vmem [shape: bf16[2,256,128], index: 3, kind: output, shape index: {}]
  %s4 = sld [smem:[#allocation0]]
  $region53: #{pretrained_model_forward.10} parent=0
    _
  %s6 = ssub.s32 1, %s4
  %s7 = scalar_select 0, %s6, %s4
  loop: start=0, step=1, limit=4
  $region2: #{pretrained_model_forward.10} parent=0 // loop_pre_header
    _
  $region3: #{pretrained_model_forward.10} parent=0 // loop_header
    %s9 = sphi 0, %s13
    %p10 = scmp.ge.s32.totalorder %s9, 4
    %s16 = sphi 0, %s35
    %s17 = sphi 0, %s31
    %s18 = sphi 0, %s27
    %s19 = sphi 0, %s16
    %s20 = sphi 0, %s17
    %s21 = sphi 0, %s18
    %s22 = sphi 0, %s19
    %s23 = sphi 0, %s20
    %s24 = sphi 0, %s21
    %s42 = sphi 0, %s44
    %s45 = sphi 0, %s42
    %s46 = sphi 0, %s45
    %s62 = sphi 0, %s46
    %s68 = sphi 0, %s70
    %s71 = sphi 0, %s68
    %s72 = sphi 0, %s71
    %s88 = sphi 0, %s72
    %s92 = sphi 0, %s92
    %s94 = sphi 0, %s92
    %s95 = sphi 0, %s94
    %s109 = sphi 0, %s95
    %s117 = sphi 0, %s119
    %s120 = sphi 0, %s117
    %s121 = sphi 0, %s120
    %s137 = sphi 0, %s121
  $region4: #{pretrained_model_forward.10} parent=0 // loop_header_branch
    %12 = sbr.rel (%p10) target = $region8
  $region5: #{pretrained_model_forward.10} parent=0 // loop_body
    %s14 = ssub.s32 %s9, 1
    %s15 = ssub.s32 %s9, 2
    %s25 = sadd.s32 1, %s18
    %p26 = scmp.ge.s32.totalorder %s25, 1
    %s27 = scalar_select %p26, 0, %s25
    %s28 = sadd.s32 1, %s17
    %s29 = scalar_select %p26, %s28, %s17
    %p30 = scmp.ge.s32.totalorder %s29, 1
    %s31 = scalar_select %p30, 0, %s29
    %s32 = sadd.s32 1, %s16
    %s33 = scalar_select %p30, %s32, %s16
    %p34 = scmp.ge.s32.totalorder %s33, 2
    %s35 = scalar_select %p34, 0, %s33
    %s36 = ssub.s32 %s16, %s35
    %s37 = ssub.s32 %s17, %s31
    %s38 = sor.u32 %s36, %s37
    %s39 = ssub.s32 %s18, %s27
    %s40 = sor.u32 %s38, %s39
    %p41 = scmp.eq.s32.totalorder %s40, 0
    %s43 = sadd.s32 %s42, 1
    %s44 = scalar_select %p41, %s42, %s43
    %p47 = pneg %p41
    %p48 = scmp.eq.s32.totalorder %s9, 1
    %p49 = por %p47, %p48
    %p50 = scmp.ne.s32.totalorder %s42, %s45
    %p51 = scmp.eq.s32.totalorder %s9, 0
    %p52 = por %p50, %p51
    %p53 = scmp.ne.s32.totalorder %s42, %s45
    %p54 = scmp.eq.s32.totalorder %s14, 1
    %p55 = por %p53, %p54
    %p56 = scmp.ne.s32.totalorder %s45, %s46
    %p57 = scmp.eq.s32.totalorder %s14, 0
    %p58 = por %p56, %p57
    %p59 = scmp.ne.s32.totalorder %s45, %s46
    %p60 = scmp.eq.s32.totalorder %s15, 1
    %p61 = por %p59, %p60
    %p63 = scmp.ne.s32.totalorder %s46, %s62
    %p64 = scmp.eq.s32.totalorder %s15, 0
    %p65 = por %p63, %p64
    %s66 = ssub.s32 %s18, %s27
    %p67 = scmp.eq.s32.totalorder %s66, 0
    %s69 = sadd.s32 %s68, 1
    %s70 = scalar_select %p67, %s68, %s69
    %p73 = pneg %p67
    %p74 = scmp.eq.s32.totalorder %s9, 1
    %p75 = por %p73, %p74
    %p76 = scmp.ne.s32.totalorder %s68, %s71
    %p77 = scmp.eq.s32.totalorder %s9, 0
    %p78 = por %p76, %p77
    %p79 = scmp.ne.s32.totalorder %s68, %s71
    %p80 = scmp.eq.s32.totalorder %s14, 1
    %p81 = por %p79, %p80
    %p82 = scmp.ne.s32.totalorder %s71, %s72
    %p83 = scmp.eq.s32.totalorder %s14, 0
    %p84 = por %p82, %p83
    %p85 = scmp.ne.s32.totalorder %s71, %s72
    %p86 = scmp.eq.s32.totalorder %s15, 1
    %p87 = por %p85, %p86
    %p89 = scmp.ne.s32.totalorder %s72, %s88
    %p90 = scmp.eq.s32.totalorder %s15, 0
    %p91 = por %p89, %p90
    %s93 = sadd.s32 %s92, 1
    %p96 = scmp.eq.s32.totalorder %s9, 1
    %p97 = scmp.ne.s32.totalorder %s92, %s94
    %p98 = scmp.eq.s32.totalorder %s9, 0
    %p99 = por %p97, %p98
    %p100 = scmp.ne.s32.totalorder %s92, %s94
    %p101 = scmp.eq.s32.totalorder %s14, 1
    %p102 = por %p100, %p101
    %p103 = scmp.ne.s32.totalorder %s94, %s95
    %p104 = scmp.eq.s32.totalorder %s14, 0
    %p105 = por %p103, %p104
    %p106 = scmp.ne.s32.totalorder %s94, %s95
    %p107 = scmp.eq.s32.totalorder %s15, 1
    %p108 = por %p106, %p107
    %p110 = scmp.ne.s32.totalorder %s95, %s109
    %p111 = scmp.eq.s32.totalorder %s15, 0
    %p112 = por %p110, %p111
    %s113 = ssub.s32 %s16, %s35
    %s114 = ssub.s32 %s17, %s31
    %s115 = sor.u32 %s113, %s114
    %p116 = scmp.eq.s32.totalorder %s115, 0
    %s118 = sadd.s32 %s117, 1
    %s119 = scalar_select %p116, %s117, %s118
    %p122 = pneg %p116
    %p123 = scmp.eq.s32.totalorder %s9, 1
    %p124 = por %p122, %p123
    %p125 = scmp.ne.s32.totalorder %s117, %s120
    %p126 = scmp.eq.s32.totalorder %s9, 0
    %p127 = por %p125, %p126
    %p128 = scmp.ne.s32.totalorder %s117, %s120
    %p129 = scmp.eq.s32.totalorder %s14, 1
    %p130 = por %p128, %p129
    %p131 = scmp.ne.s32.totalorder %s120, %s121
    %p132 = scmp.eq.s32.totalorder %s14, 0
    %p133 = por %p131, %p132
    %p134 = scmp.ne.s32.totalorder %s120, %s121
    %p135 = scmp.eq.s32.totalorder %s15, 1
    %p136 = por %p134, %p135
    %p138 = scmp.ne.s32.totalorder %s121, %s137
    %p139 = scmp.eq.s32.totalorder %s15, 0
    %p140 = por %p138, %p139
    %p141 = scmp.le.s32.totalorder 1, %s9
    %p142 = scmp.lt.s32.totalorder %s9, 3
    %p143 = pnand %p141, %p142
    %p144 = pneg %p143
    // Predicated region
    $region9: #{pretrained_model_forward.10} parent=5 // pred_check
      _
    $region10: #{pretrained_model_forward.10} parent=5 // pred_check_branch
      %146 = sbr.rel (%p143) target = $region12
    $region11: #{pretrained_model_forward.10} parent=5 // pred_region
      %s147 = ssub.s32 %s9, 1
      // Predicated region
      $region13: #{pretrained_model_forward.10} parent=11 // pred_check
        %p148 = pneg %p84
      $region14: #{pretrained_model_forward.10} parent=11 // pred_check_branch
        %150 = sbr.rel (%p148) target = $region16
      $region15: #{pretrained_model_forward.10} parent=11 // pred_region
        %s151 = smul.u32 32, %s21
        %p152 = scmp.lt.s32.totalorder %s151, 31
        %s153 = scalar_select %p152, %s151, 31
        %s154 = smul.addr %s153, 4
        %s155 = scalar_lea.vmem %s1, %s154
        %s156 = smul.u32 32, %s21
      $region16: #{pretrained_model_forward.10} parent=11 // pred_fallthru
        _
      // Predicated region
      $region17: #{pretrained_model_forward.10} parent=11 // pred_check
        %p157 = pneg %p105
      $region18: #{pretrained_model_forward.10} parent=11 // pred_check_branch
        %159 = sbr.rel (%p157) target = $region20
      $region19: #{pretrained_model_forward.10} parent=11 // pred_region
        _
      $region20: #{pretrained_model_forward.10} parent=11 // pred_fallthru
        _
    $region12: #{pretrained_model_forward.10} parent=5 // pred_fallthru
      _
    %p160 = scmp.lt.s32.totalorder %s9, 2
    // Predicated region
    $region21: #{pretrained_model_forward.10} parent=5 // pred_check
      %p161 = pneg %p160
    $region22: #{pretrained_model_forward.10} parent=5 // pred_check_branch
      %163 = sbr.rel (%p161) target = $region24
    $region23: #{pretrained_model_forward.10} parent=5 // pred_region
      // Predicated region
      $region25: #{pretrained_model_forward.10} parent=23 // pred_check
        %p164 = pneg %p52
      $region26: #{pretrained_model_forward.10} parent=23 // pred_check_branch
        %166 = sbr.rel (%p164) target = $region28
      $region27: #{pretrained_model_forward.10} parent=23 // pred_region
        %s167 = smul.u32 32, %s17
        %s168 = smul.u32 2, %s18
        %p169 = scmp.lt.s32.totalorder %s16, 1
        %s170 = scalar_select %p169, %s16, 1
        %p171 = scmp.lt.s32.totalorder %s167, 31
        %s172 = scalar_select %p171, %s167, 31
        %p173 = scmp.lt.s32.totalorder %s168, 1
        %s174 = scalar_select %p173, %s168, 1
        %s175 = smul.addr %s172, 2
        %s176 = sadd.s32 %s174, %s175
        %s177 = smul.addr %s170, 64
        %s178 = sadd.s32 %s176, %s177
        %s179 = smul.addr %s178, 4
        %s180 = scalar_lea.vmem %s0, %s179
        %s181 = smul.u32 32, %s17
        %s182 = smul.u32 2, %s18
      $region28: #{pretrained_model_forward.10} parent=23 // pred_fallthru
        _
    $region24: #{pretrained_model_forward.10} parent=5 // pred_fallthru
      _
    %p183 = scmp.le.s32.totalorder 1, %s9
    %p184 = scmp.lt.s32.totalorder %s9, 3
    %p185 = pnand %p183, %p184
    %p186 = pneg %p185
    // Predicated region
    $region29: #{pretrained_model_forward.10} parent=5 // pred_check
      _
    $region30: #{pretrained_model_forward.10} parent=5 // pred_check_branch
      %188 = sbr.rel (%p185) target = $region32
    $region31: #{pretrained_model_forward.10} parent=5 // pred_region
      %s189 = ssub.s32 %s9, 1
      %s190 = smul.u32 32, %s20
      %s191 = smul.u32 2, %s21
      %p192 = scmp.lt.s32.totalorder %s19, 1
      %s193 = scalar_select %p192, %s19, 1
      %p194 = scmp.lt.s32.totalorder %s190, 31
      %s195 = scalar_select %p194, %s190, 31
      %p196 = scmp.lt.s32.totalorder %s191, 1
      %s197 = scalar_select %p196, %s191, 1
      %s198 = smul.addr %s195, 2
      %s199 = sadd.s32 %s197, %s198
      %s200 = smul.addr %s193, 64
      %s201 = sadd.s32 %s199, %s200
      %s202 = smul.addr %s201, 4
      %s203 = scalar_lea.vmem %s0, %s202
      %p204 = pneg %p58
      %p205 = pneg %p55
      %s206 = smul.u32 32, %s21
      %p207 = scmp.lt.s32.totalorder %s206, 31
      %s208 = scalar_select %p207, %s206, 31
      %s209 = smul.addr %s208, 4
      %s210 = scalar_lea.vmem %s1, %s209
      %p211 = pneg %p84
      %p212 = pneg %p81
      %p213 = pneg %p105
      %p214 = pneg %p102
      %p215 = pneg %p133
      %p216 = pneg %p130
      %s217 = smul.u32 32, %s20
      %p218 = scmp.lt.s32.totalorder %s19, 1
      %s219 = scalar_select %p218, %s19, 1
      %p220 = scmp.lt.s32.totalorder %s217, 31
      %s221 = scalar_select %p220, %s217, 31
      %s222 = smul.addr %s219, 32
      %s223 = sadd.s32 %s221, %s222
      %s224 = smul.addr %s223, 4
      %s225 = scalar_lea.vmem %s3, %s224
      %s226 = smul.u32 32, %s20
      %s227 = smul.u32 2, %s21
      %p228 = scmp.lt.s32.totalorder %s19, 1
      %s229 = scalar_select %p228, %s19, 1
      %p230 = scmp.lt.s32.totalorder %s226, 31
      %s231 = scalar_select %p230, %s226, 31
      %p232 = scmp.lt.s32.totalorder %s227, 1
      %s233 = scalar_select %p232, %s227, 1
      %s234 = smul.addr %s231, 2
      %s235 = sadd.s32 %s233, %s234
      %s236 = smul.addr %s229, 64
      %s237 = sadd.s32 %s235, %s236
      %s238 = smul.addr %s237, 4
      %s239 = scalar_lea.vmem %s0, %s238
      %s240 = smul.u32 32, %s20
      %s241 = smul.u32 2, %s21
      %s242 = smul.u32 32, %s21
      %p243 = scmp.lt.s32.totalorder %s242, 31
      %s244 = scalar_select %p243, %s242, 31
      %s245 = smul.addr %s244, 4
      %s246 = scalar_lea.vmem %s1, %s245
      %s247 = smul.u32 32, %s21
      %s248 = smul.u32 32, %s20
      %p249 = scmp.lt.s32.totalorder %s19, 1
      %s250 = scalar_select %p249, %s19, 1
      %p251 = scmp.lt.s32.totalorder %s248, 31
      %s252 = scalar_select %p251, %s248, 31
      %s253 = smul.addr %s250, 32
      %s254 = sadd.s32 %s252, %s253
      %s255 = smul.addr %s254, 4
      %s256 = scalar_lea.vmem %s3, %s255
      %s257 = smul.u32 32, %s20
      %p258 = scmp.eq.s32.totalorder %s21, 0
      // Predicated region
      $region33: #{pretrained_model_forward.10} parent=31 // pred_check
        %p259 = pneg %p258
      $region34: #{pretrained_model_forward.10} parent=31 // pred_check_branch
        %261 = sbr.rel (%p259) target = $region36
      $region35: #{pretrained_model_forward.10} parent=31 // pred_region
        %262 = vst [vmem:[#allocation2] sm:$0xff] 0.0
        %263 = vst [vmem:[#allocation2 + $0x8] sm:$0xff] 0.0
        %264 = vst [vmem:[#allocation2 + $0x10] sm:$0xff] 0.0
        %265 = vst [vmem:[#allocation2 + $0x18] sm:$0xff] 0.0
        %266 = vst [vmem:[#allocation2 + $0x20] sm:$0xff] 0.0
        %267 = vst [vmem:[#allocation2 + $0x28] sm:$0xff] 0.0
        %268 = vst [vmem:[#allocation2 + $0x30] sm:$0xff] 0.0
        %269 = vst [vmem:[#allocation2 + $0x38] sm:$0xff] 0.0
        %270 = vst [vmem:[#allocation2 + $0x40] sm:$0xff] 0.0
        %271 = vst [vmem:[#allocation2 + $0x48] sm:$0xff] 0.0
        %272 = vst [vmem:[#allocation2 + $0x50] sm:$0xff] 0.0
        %273 = vst [vmem:[#allocation2 + $0x58] sm:$0xff] 0.0
        %274 = vst [vmem:[#allocation2 + $0x60] sm:$0xff] 0.0
        %275 = vst [vmem:[#allocation2 + $0x68] sm:$0xff] 0.0
        %276 = vst [vmem:[#allocation2 + $0x70] sm:$0xff] 0.0
        %277 = vst [vmem:[#allocation2 + $0x78] sm:$0xff] 0.0
        %278 = vst [vmem:[#allocation2 + $0x80] sm:$0xff] 0.0
        %279 = vst [vmem:[#allocation2 + $0x88] sm:$0xff] 0.0
        %280 = vst [vmem:[#allocation2 + $0x90] sm:$0xff] 0.0
        %281 = vst [vmem:[#allocation2 + $0x98] sm:$0xff] 0.0
        %282 = vst [vmem:[#allocation2 + $0xa0] sm:$0xff] 0.0
        %283 = vst [vmem:[#allocation2 + $0xa8] sm:$0xff] 0.0
        %284 = vst [vmem:[#allocation2 + $0xb0] sm:$0xff] 0.0
        %285 = vst [vmem:[#allocation2 + $0xb8] sm:$0xff] 0.0
        %286 = vst [vmem:[#allocation2 + $0xc0] sm:$0xff] 0.0
        %287 = vst [vmem:[#allocation2 + $0xc8] sm:$0xff] 0.0
        %288 = vst [vmem:[#allocation2 + $0xd0] sm:$0xff] 0.0
        %289 = vst [vmem:[#allocation2 + $0xd8] sm:$0xff] 0.0
        %290 = vst [vmem:[#allocation2 + $0xe0] sm:$0xff] 0.0
        %291 = vst [vmem:[#allocation2 + $0xe8] sm:$0xff] 0.0
        %292 = vst [vmem:[#allocation2 + $0xf0] sm:$0xff] 0.0
        %293 = vst [vmem:[#allocation2 + $0xf8] sm:$0xff] 0.0
      $region36: #{pretrained_model_forward.10} parent=31 // pred_fallthru
        _
      %v294 = vld [vmem:[#allocation2] sm:$0xff]
      %v295 = vld [vmem:[#allocation2 + $0x8] sm:$0xff]
      %v296 = vld [vmem:[#allocation2 + $0x10] sm:$0xff]
      %v297 = vld [vmem:[#allocation2 + $0x18] sm:$0xff]
      %v298 = vld [vmem:[#allocation2 + $0x20] sm:$0xff]
      %v299 = vld [vmem:[#allocation2 + $0x28] sm:$0xff]
      %v300 = vld [vmem:[#allocation2 + $0x30] sm:$0xff]
      %v301 = vld [vmem:[#allocation2 + $0x38] sm:$0xff]
      %v302 = vld [vmem:[#allocation2 + $0x40] sm:$0xff]
      %v303 = vld [vmem:[#allocation2 + $0x48] sm:$0xff]
      %v304 = vld [vmem:[#allocation2 + $0x50] sm:$0xff]
      %v305 = vld [vmem:[#allocation2 + $0x58] sm:$0xff]
      %v306 = vld [vmem:[#allocation2 + $0x60] sm:$0xff]
      %v307 = vld [vmem:[#allocation2 + $0x68] sm:$0xff]
      %v308 = vld [vmem:[#allocation2 + $0x70] sm:$0xff]
      %v309 = vld [vmem:[#allocation2 + $0x78] sm:$0xff]
      %v310 = vld [vmem:[#allocation2 + $0x80] sm:$0xff]
      %v311 = vld [vmem:[#allocation2 + $0x88] sm:$0xff]
      %v312 = vld [vmem:[#allocation2 + $0x90] sm:$0xff]
      %v313 = vld [vmem:[#allocation2 + $0x98] sm:$0xff]
      %v314 = vld [vmem:[#allocation2 + $0xa0] sm:$0xff]
      %v315 = vld [vmem:[#allocation2 + $0xa8] sm:$0xff]
      %v316 = vld [vmem:[#allocation2 + $0xb0] sm:$0xff]
      %v317 = vld [vmem:[#allocation2 + $0xb8] sm:$0xff]
      %v318 = vld [vmem:[#allocation2 + $0xc0] sm:$0xff]
      %v319 = vld [vmem:[#allocation2 + $0xc8] sm:$0xff]
      %v320 = vld [vmem:[#allocation2 + $0xd0] sm:$0xff]
      %v321 = vld [vmem:[#allocation2 + $0xd8] sm:$0xff]
      %v322 = vld [vmem:[#allocation2 + $0xe0] sm:$0xff]
      %v323 = vld [vmem:[#allocation2 + $0xe8] sm:$0xff]
      %v324 = vld [vmem:[#allocation2 + $0xf0] sm:$0xff]
      %v325 = vld [vmem:[#allocation2 + $0xf8] sm:$0xff]
      %v326 = vld [vmem:[%s239] sm:$0xff]
      %v327 = vld [vmem:[%s239 + $0x8] sm:$0xff]
      %v328 = vld [vmem:[%s239 + $0x10] sm:$0xff]
      %v329 = vld [vmem:[%s239 + $0x18] sm:$0xff]
      %v330 = vld [vmem:[%s239 + $0x20] sm:$0xff]
      %v331 = vld [vmem:[%s239 + $0x28] sm:$0xff]
      %v332 = vld [vmem:[%s239 + $0x30] sm:$0xff]
      %v333 = vld [vmem:[%s239 + $0x38] sm:$0xff]
      %v334 = vld [vmem:[%s239 + $0x40] sm:$0xff]
      %v335 = vld [vmem:[%s239 + $0x48] sm:$0xff]
      %v336 = vld [vmem:[%s239 + $0x50] sm:$0xff]
      %v337 = vld [vmem:[%s239 + $0x58] sm:$0xff]
      %v338 = vld [vmem:[%s239 + $0x60] sm:$0xff]
      %v339 = vld [vmem:[%s239 + $0x68] sm:$0xff]
      %v340 = vld [vmem:[%s239 + $0x70] sm:$0xff]
      %v341 = vld [vmem:[%s239 + $0x78] sm:$0xff]
      %v342 = vld [vmem:[%s239 + $0x80] sm:$0xff]
      %v343 = vld [vmem:[%s239 + $0x88] sm:$0xff]
      %v344 = vld [vmem:[%s239 + $0x90] sm:$0xff]
      %v345 = vld [vmem:[%s239 + $0x98] sm:$0xff]
      %v346 = vld [vmem:[%s239 + $0xa0] sm:$0xff]
      %v347 = vld [vmem:[%s239 + $0xa8] sm:$0xff]
      %v348 = vld [vmem:[%s239 + $0xb0] sm:$0xff]
      %v349 = vld [vmem:[%s239 + $0xb8] sm:$0xff]
      %v350 = vld [vmem:[%s239 + $0xc0] sm:$0xff]
      %v351 = vld [vmem:[%s239 + $0xc8] sm:$0xff]
      %v352 = vld [vmem:[%s239 + $0xd0] sm:$0xff]
      %v353 = vld [vmem:[%s239 + $0xd8] sm:$0xff]
      %v354 = vld [vmem:[%s239 + $0xe0] sm:$0xff]
      %v355 = vld [vmem:[%s239 + $0xe8] sm:$0xff]
      %v356 = vld [vmem:[%s239 + $0xf0] sm:$0xff]
      %v357 = vld [vmem:[%s239 + $0xf8] sm:$0xff]
      %v358 = vld [vmem:[%s246] sm:$0xf]
      %v359 = vld [vmem:[%s246 + $0x4] sm:$0xf]
      %v360 = vld [vmem:[%s246 + $0x8] sm:$0xf]
      %v361 = vld [vmem:[%s246 + $0xc] sm:$0xf]
      %v362 = vld [vmem:[%s246 + $0x10] sm:$0xf]
      %v363 = vld [vmem:[%s246 + $0x14] sm:$0xf]
      %v364 = vld [vmem:[%s246 + $0x18] sm:$0xf]
      %v365 = vld [vmem:[%s246 + $0x1c] sm:$0xf]
      %v366 = vld [vmem:[%s246 + $0x20] sm:$0xf]
      %v367 = vld [vmem:[%s246 + $0x24] sm:$0xf]
      %v368 = vld [vmem:[%s246 + $0x28] sm:$0xf]
      %v369 = vld [vmem:[%s246 + $0x2c] sm:$0xf]
      %v370 = vld [vmem:[%s246 + $0x30] sm:$0xf]
      %v371 = vld [vmem:[%s246 + $0x34] sm:$0xf]
      %v372 = vld [vmem:[%s246 + $0x38] sm:$0xf]
      %v373 = vld [vmem:[%s246 + $0x3c] sm:$0xf]
      %v374 = vld [vmem:[%s246 + $0x40] sm:$0xf]
      %v375 = vld [vmem:[%s246 + $0x44] sm:$0xf]
      %v376 = vld [vmem:[%s246 + $0x48] sm:$0xf]
      %v377 = vld [vmem:[%s246 + $0x4c] sm:$0xf]
      %v378 = vld [vmem:[%s246 + $0x50] sm:$0xf]
      %v379 = vld [vmem:[%s246 + $0x54] sm:$0xf]
      %v380 = vld [vmem:[%s246 + $0x58] sm:$0xf]
      %v381 = vld [vmem:[%s246 + $0x5c] sm:$0xf]
      %v382 = vld [vmem:[%s246 + $0x60] sm:$0xf]
      %v383 = vld [vmem:[%s246 + $0x64] sm:$0xf]
      %v384 = vld [vmem:[%s246 + $0x68] sm:$0xf]
      %v385 = vld [vmem:[%s246 + $0x6c] sm:$0xf]
      %v386 = vld [vmem:[%s246 + $0x70] sm:$0xf]
      %v387 = vld [vmem:[%s246 + $0x74] sm:$0xf]
      %v388 = vld [vmem:[%s246 + $0x78] sm:$0xf]
      %v389 = vld [vmem:[%s246 + $0x7c] sm:$0xf]
      %v422 = vunpack.c.l.b16 %v326
      %v423 = vunpack.c.h.b16 %v326
      %v424 = vunpack.c.l.b16 %v327
      %v425 = vunpack.c.h.b16 %v327
      %v426 = vunpack.c.l.b16 %v328
      %v427 = vunpack.c.h.b16 %v328
      %v428 = vunpack.c.l.b16 %v329
      %v429 = vunpack.c.h.b16 %v329
      %v430 = vunpack.c.l.b16 %v330
      %v431 = vunpack.c.h.b16 %v330
      %v432 = vunpack.c.l.b16 %v331
      %v433 = vunpack.c.h.b16 %v331
      %v434 = vunpack.c.l.b16 %v332
      %v435 = vunpack.c.h.b16 %v332
      %v436 = vunpack.c.l.b16 %v333
      %v437 = vunpack.c.h.b16 %v333
      %v438 = vunpack.c.l.b16 %v334
      %v439 = vunpack.c.h.b16 %v334
      %v440 = vunpack.c.l.b16 %v335
      %v441 = vunpack.c.h.b16 %v335
      %v442 = vunpack.c.l.b16 %v336
      %v443 = vunpack.c.h.b16 %v336
      %v444 = vunpack.c.l.b16 %v337
      %v445 = vunpack.c.h.b16 %v337
      %v446 = vunpack.c.l.b16 %v338
      %v447 = vunpack.c.h.b16 %v338
      %v448 = vunpack.c.l.b16 %v339
      %v449 = vunpack.c.h.b16 %v339
      %v450 = vunpack.c.l.b16 %v340
      %v451 = vunpack.c.h.b16 %v340
      %v452 = vunpack.c.l.b16 %v341
      %v453 = vunpack.c.h.b16 %v341
      %v454 = vunpack.c.l.b16 %v342
      %v455 = vunpack.c.h.b16 %v342
      %v456 = vunpack.c.l.b16 %v343
      %v457 = vunpack.c.h.b16 %v343
      %v458 = vunpack.c.l.b16 %v344
      %v459 = vunpack.c.h.b16 %v344
      %v460 = vunpack.c.l.b16 %v345
      %v461 = vunpack.c.h.b16 %v345
      %v462 = vunpack.c.l.b16 %v346
      %v463 = vunpack.c.h.b16 %v346
      %v464 = vunpack.c.l.b16 %v347
      %v465 = vunpack.c.h.b16 %v347
      %v466 = vunpack.c.l.b16 %v348
      %v467 = vunpack.c.h.b16 %v348
      %v468 = vunpack.c.l.b16 %v349
      %v469 = vunpack.c.h.b16 %v349
      %v470 = vunpack.c.l.b16 %v350
      %v471 = vunpack.c.h.b16 %v350
      %v472 = vunpack.c.l.b16 %v351
      %v473 = vunpack.c.h.b16 %v351
      %v474 = vunpack.c.l.b16 %v352
      %v475 = vunpack.c.h.b16 %v352
      %v476 = vunpack.c.l.b16 %v353
      %v477 = vunpack.c.h.b16 %v353
      %v478 = vunpack.c.l.b16 %v354
      %v479 = vunpack.c.h.b16 %v354
      %v480 = vunpack.c.l.b16 %v355
      %v481 = vunpack.c.h.b16 %v355
      %v482 = vunpack.c.l.b16 %v356
      %v483 = vunpack.c.h.b16 %v356
      %v484 = vunpack.c.l.b16 %v357
      %v485 = vunpack.c.h.b16 %v357
      %v486 = vpack.c.b16 %v424, %v422
      %v487 = vpack.c.b16 %v425, %v423
      %v488 = vpack.c.b16 %v428, %v426
      %v489 = vpack.c.b16 %v429, %v427
      %v490 = vpack.c.b16 %v432, %v430
      %v491 = vpack.c.b16 %v433, %v431
      %v492 = vpack.c.b16 %v436, %v434
      %v493 = vpack.c.b16 %v437, %v435
      %v494 = vpack.c.b16 %v440, %v438
      %v495 = vpack.c.b16 %v441, %v439
      %v496 = vpack.c.b16 %v444, %v442
      %v497 = vpack.c.b16 %v445, %v443
      %v498 = vpack.c.b16 %v448, %v446
      %v499 = vpack.c.b16 %v449, %v447
      %v500 = vpack.c.b16 %v452, %v450
      %v501 = vpack.c.b16 %v453, %v451
      %v502 = vpack.c.b16 %v456, %v454
      %v503 = vpack.c.b16 %v457, %v455
      %v504 = vpack.c.b16 %v460, %v458
      %v505 = vpack.c.b16 %v461, %v459
      %v506 = vpack.c.b16 %v464, %v462
      %v507 = vpack.c.b16 %v465, %v463
      %v508 = vpack.c.b16 %v468, %v466
      %v509 = vpack.c.b16 %v469, %v467
      %v510 = vpack.c.b16 %v472, %v470
      %v511 = vpack.c.b16 %v473, %v471
      %v512 = vpack.c.b16 %v476, %v474
      %v513 = vpack.c.b16 %v477, %v475
      %v514 = vpack.c.b16 %v480, %v478
      %v515 = vpack.c.b16 %v481, %v479
      %v516 = vpack.c.b16 %v484, %v482
      %v517 = vpack.c.b16 %v485, %v483
      %v582 = vunpack.c.l.b16 %v358
      %v583 = vunpack.c.l.b16 %v359
      %v584 = vunpack.c.l.b16 %v360
      %v585 = vunpack.c.l.b16 %v361
      %v586 = vunpack.c.l.b16 %v362
      %v587 = vunpack.c.l.b16 %v363
      %v588 = vunpack.c.l.b16 %v364
      %v589 = vunpack.c.l.b16 %v365
      %v590 = vunpack.c.l.b16 %v366
      %v591 = vunpack.c.l.b16 %v367
      %v592 = vunpack.c.l.b16 %v368
      %v593 = vunpack.c.l.b16 %v369
      %v594 = vunpack.c.l.b16 %v370
      %v595 = vunpack.c.l.b16 %v371
      %v596 = vunpack.c.l.b16 %v372
      %v597 = vunpack.c.l.b16 %v373
      %v598 = vunpack.c.l.b16 %v374
      %v599 = vunpack.c.l.b16 %v375
      %v600 = vunpack.c.l.b16 %v376
      %v601 = vunpack.c.l.b16 %v377
      %v602 = vunpack.c.l.b16 %v378
      %v603 = vunpack.c.l.b16 %v379
      %v604 = vunpack.c.l.b16 %v380
      %v605 = vunpack.c.l.b16 %v381
      %v606 = vunpack.c.l.b16 %v382
      %v607 = vunpack.c.l.b16 %v383
      %v608 = vunpack.c.l.b16 %v384
      %v609 = vunpack.c.l.b16 %v385
      %v610 = vunpack.c.l.b16 %v386
      %v611 = vunpack.c.l.b16 %v387
      %v612 = vunpack.c.l.b16 %v388
      %v613 = vunpack.c.l.b16 %v389
      %v614 = vpack.c.b16 %v583, %v582
      %v615 = vpack.c.b16 %v585, %v584
      %v616 = vpack.c.b16 %v587, %v586
      %v617 = vpack.c.b16 %v589, %v588
      %v618 = vpack.c.b16 %v591, %v590
      %v619 = vpack.c.b16 %v593, %v592
      %v620 = vpack.c.b16 %v595, %v594
      %v621 = vpack.c.b16 %v597, %v596
      %v622 = vpack.c.b16 %v599, %v598
      %v623 = vpack.c.b16 %v601, %v600
      %v624 = vpack.c.b16 %v603, %v602
      %v625 = vpack.c.b16 %v605, %v604
      %v626 = vpack.c.b16 %v607, %v606
      %v627 = vpack.c.b16 %v609, %v608
      %v628 = vpack.c.b16 %v611, %v610
      %v629 = vpack.c.b16 %v613, %v612
      %646 = vmatpush.bf16.msra.mxu0 %v621
      %647 = vmatpush.bf16.msra.mxu0 %v620
      %648 = vmatpush.bf16.msra.mxu0 %v619
      %649 = vmatpush.bf16.msra.mxu0 %v618
      %650 = vmatpush.bf16.msra.mxu0 %v617
      %651 = vmatpush.bf16.msra.mxu0 %v616
      %652 = vmatpush.bf16.msra.mxu0 %v615
      %653 = vmatpush.bf16.msra.mxu0 %v614
      %654 = vmatmul.bf16.gmra.mxu0 %v486
      %v655 = vpop.f32.mrf.mxu0
      %v656 = vadd.f32 0.0, %v655
      %v657 = vpop.f32.mrf.mxu0
      %v658 = vadd.f32 0.0, %v657
      %659 = vmatmul.bf16.gmra.mxu0 %v488
      %v660 = vpop.f32.mrf.mxu0
      %v661 = vadd.f32 0.0, %v660
      %v662 = vpop.f32.mrf.mxu0
      %v663 = vadd.f32 0.0, %v662
      %664 = vmatmul.bf16.gmra.mxu0 %v490
      %v665 = vpop.f32.mrf.mxu0
      %v666 = vadd.f32 0.0, %v665
      %v667 = vpop.f32.mrf.mxu0
      %v668 = vadd.f32 0.0, %v667
      %669 = vmatmul.bf16.gmra.mxu0 %v492
      %v670 = vpop.f32.mrf.mxu0
      %v671 = vadd.f32 0.0, %v670
      %v672 = vpop.f32.mrf.mxu0
      %v673 = vadd.f32 0.0, %v672
      %674 = vmatmul.bf16.gmra.mxu0 %v494
      %v675 = vpop.f32.mrf.mxu0
      %v676 = vadd.f32 0.0, %v675
      %v677 = vpop.f32.mrf.mxu0
      %v678 = vadd.f32 0.0, %v677
      %679 = vmatmul.bf16.gmra.mxu0 %v496
      %v680 = vpop.f32.mrf.mxu0
      %v681 = vadd.f32 0.0, %v680
      %v682 = vpop.f32.mrf.mxu0
      %v683 = vadd.f32 0.0, %v682
      %684 = vmatmul.bf16.gmra.mxu0 %v498
      %v685 = vpop.f32.mrf.mxu0
      %v686 = vadd.f32 0.0, %v685
      %v687 = vpop.f32.mrf.mxu0
      %v688 = vadd.f32 0.0, %v687
      %689 = vmatmul.bf16.gmra.mxu0 %v500
      %v690 = vpop.f32.mrf.mxu0
      %v691 = vadd.f32 0.0, %v690
      %v692 = vpop.f32.mrf.mxu0
      %v693 = vadd.f32 0.0, %v692
      %694 = vmatmul.bf16.gmra.mxu0 %v502
      %v695 = vpop.f32.mrf.mxu0
      %v696 = vadd.f32 0.0, %v695
      %v697 = vpop.f32.mrf.mxu0
      %v698 = vadd.f32 0.0, %v697
      %699 = vmatmul.bf16.gmra.mxu0 %v504
      %v700 = vpop.f32.mrf.mxu0
      %v701 = vadd.f32 0.0, %v700
      %v702 = vpop.f32.mrf.mxu0
      %v703 = vadd.f32 0.0, %v702
      %704 = vmatmul.bf16.gmra.mxu0 %v506
      %v705 = vpop.f32.mrf.mxu0
      %v706 = vadd.f32 0.0, %v705
      %v707 = vpop.f32.mrf.mxu0
      %v708 = vadd.f32 0.0, %v707
      %709 = vmatmul.bf16.gmra.mxu0 %v508
      %v710 = vpop.f32.mrf.mxu0
      %v711 = vadd.f32 0.0, %v710
      %v712 = vpop.f32.mrf.mxu0
      %v713 = vadd.f32 0.0, %v712
      %714 = vmatmul.bf16.gmra.mxu0 %v510
      %v715 = vpop.f32.mrf.mxu0
      %v716 = vadd.f32 0.0, %v715
      %v717 = vpop.f32.mrf.mxu0
      %v718 = vadd.f32 0.0, %v717
      %719 = vmatmul.bf16.gmra.mxu0 %v512
      %v720 = vpop.f32.mrf.mxu0
      %v721 = vadd.f32 0.0, %v720
      %v722 = vpop.f32.mrf.mxu0
      %v723 = vadd.f32 0.0, %v722
      %724 = vmatmul.bf16.gmra.mxu0 %v514
      %v725 = vpop.f32.mrf.mxu0
      %v726 = vadd.f32 0.0, %v725
      %v727 = vpop.f32.mrf.mxu0
      %v728 = vadd.f32 0.0, %v727
      %729 = vmatmul.bf16.gmra.mxu0 %v516
      %v730 = vpop.f32.mrf.mxu0
      %v731 = vadd.f32 0.0, %v730
      %v732 = vpop.f32.mrf.mxu0
      %v733 = vadd.f32 0.0, %v732
      %734 = vdwg.mxu0
      %735 = vmatpush.bf16.msra.mxu0 %v629
      %736 = vmatpush.bf16.msra.mxu0 %v628
      %737 = vmatpush.bf16.msra.mxu0 %v627
      %738 = vmatpush.bf16.msra.mxu0 %v626
      %739 = vmatpush.bf16.msra.mxu0 %v625
      %740 = vmatpush.bf16.msra.mxu0 %v624
      %741 = vmatpush.bf16.msra.mxu0 %v623
      %742 = vmatpush.bf16.msra.mxu0 %v622
      %743 = vmatmul.bf16.gmra.mxu0 %v487
      %v744 = vpop.f32.mrf.mxu0
      %v745 = vadd.f32 %v656, %v744
      %v746 = vpop.f32.mrf.mxu0
      %v747 = vadd.f32 %v658, %v746
      %748 = vmatmul.bf16.gmra.mxu0 %v489
      %v749 = vpop.f32.mrf.mxu0
      %v750 = vadd.f32 %v661, %v749
      %v751 = vpop.f32.mrf.mxu0
      %v752 = vadd.f32 %v663, %v751
      %753 = vmatmul.bf16.gmra.mxu0 %v491
      %v754 = vpop.f32.mrf.mxu0
      %v755 = vadd.f32 %v666, %v754
      %v756 = vpop.f32.mrf.mxu0
      %v757 = vadd.f32 %v668, %v756
      %758 = vmatmul.bf16.gmra.mxu0 %v493
      %v759 = vpop.f32.mrf.mxu0
      %v760 = vadd.f32 %v671, %v759
      %v761 = vpop.f32.mrf.mxu0
      %v762 = vadd.f32 %v673, %v761
      %763 = vmatmul.bf16.gmra.mxu0 %v495
      %v764 = vpop.f32.mrf.mxu0
      %v765 = vadd.f32 %v676, %v764
      %v766 = vpop.f32.mrf.mxu0
      %v767 = vadd.f32 %v678, %v766
      %768 = vmatmul.bf16.gmra.mxu0 %v497
      %v769 = vpop.f32.mrf.mxu0
      %v770 = vadd.f32 %v681, %v769
      %v771 = vpop.f32.mrf.mxu0
      %v772 = vadd.f32 %v683, %v771
      %773 = vmatmul.bf16.gmra.mxu0 %v499
      %v774 = vpop.f32.mrf.mxu0
      %v775 = vadd.f32 %v686, %v774
      %v776 = vpop.f32.mrf.mxu0
      %v777 = vadd.f32 %v688, %v776
      %778 = vmatmul.bf16.gmra.mxu0 %v501
      %v779 = vpop.f32.mrf.mxu0
      %v780 = vadd.f32 %v691, %v779
      %v781 = vpop.f32.mrf.mxu0
      %v782 = vadd.f32 %v693, %v781
      %783 = vmatmul.bf16.gmra.mxu0 %v503
      %v784 = vpop.f32.mrf.mxu0
      %v785 = vadd.f32 %v696, %v784
      %v786 = vpop.f32.mrf.mxu0
      %v787 = vadd.f32 %v698, %v786
      %788 = vmatmul.bf16.gmra.mxu0 %v505
      %v789 = vpop.f32.mrf.mxu0
      %v790 = vadd.f32 %v701, %v789
      %v791 = vpop.f32.mrf.mxu0
      %v792 = vadd.f32 %v703, %v791
      %793 = vmatmul.bf16.gmra.mxu0 %v507
      %v794 = vpop.f32.mrf.mxu0
      %v795 = vadd.f32 %v706, %v794
      %v796 = vpop.f32.mrf.mxu0
      %v797 = vadd.f32 %v708, %v796
      %798 = vmatmul.bf16.gmra.mxu0 %v509
      %v799 = vpop.f32.mrf.mxu0
      %v800 = vadd.f32 %v711, %v799
      %v801 = vpop.f32.mrf.mxu0
      %v802 = vadd.f32 %v713, %v801
      %803 = vmatmul.bf16.gmra.mxu0 %v511
      %v804 = vpop.f32.mrf.mxu0
      %v805 = vadd.f32 %v716, %v804
      %v806 = vpop.f32.mrf.mxu0
      %v807 = vadd.f32 %v718, %v806
      %808 = vmatmul.bf16.gmra.mxu0 %v513
      %v809 = vpop.f32.mrf.mxu0
      %v810 = vadd.f32 %v721, %v809
      %v811 = vpop.f32.mrf.mxu0
      %v812 = vadd.f32 %v723, %v811
      %813 = vmatmul.bf16.gmra.mxu0 %v515
      %v814 = vpop.f32.mrf.mxu0
      %v815 = vadd.f32 %v726, %v814
      %v816 = vpop.f32.mrf.mxu0
      %v817 = vadd.f32 %v728, %v816
      %818 = vmatmul.bf16.gmra.mxu0 %v517
      %v819 = vpop.f32.mrf.mxu0
      %v820 = vadd.f32 %v731, %v819
      %v821 = vpop.f32.mrf.mxu0
      %v822 = vadd.f32 %v733, %v821
      %823 = vdwg.mxu0
      %v824 = vadd.f32 %v294, %v745
      %v825 = vadd.f32 %v295, %v747
      %v826 = vadd.f32 %v296, %v750
      %v827 = vadd.f32 %v297, %v752
      %v828 = vadd.f32 %v298, %v755
      %v829 = vadd.f32 %v299, %v757
      %v830 = vadd.f32 %v300, %v760
      %v831 = vadd.f32 %v301, %v762
      %v832 = vadd.f32 %v302, %v765
      %v833 = vadd.f32 %v303, %v767
      %v834 = vadd.f32 %v304, %v770
      %v835 = vadd.f32 %v305, %v772
      %v836 = vadd.f32 %v306, %v775
      %v837 = vadd.f32 %v307, %v777
      %v838 = vadd.f32 %v308, %v780
      %v839 = vadd.f32 %v309, %v782
      %v840 = vadd.f32 %v310, %v785
      %v841 = vadd.f32 %v311, %v787
      %v842 = vadd.f32 %v312, %v790
      %v843 = vadd.f32 %v313, %v792
      %v844 = vadd.f32 %v314, %v795
      %v845 = vadd.f32 %v315, %v797
      %v846 = vadd.f32 %v316, %v800
      %v847 = vadd.f32 %v317, %v802
      %v848 = vadd.f32 %v318, %v805
      %v849 = vadd.f32 %v319, %v807
      %v850 = vadd.f32 %v320, %v810
      %v851 = vadd.f32 %v321, %v812
      %v852 = vadd.f32 %v322, %v815
      %v853 = vadd.f32 %v323, %v817
      %v854 = vadd.f32 %v324, %v820
      %v855 = vadd.f32 %v325, %v822
      %856 = vst [vmem:[#allocation2] sm:$0xff] %v824
      %857 = vst [vmem:[#allocation2 + $0x8] sm:$0xff] %v825
      %858 = vst [vmem:[#allocation2 + $0x10] sm:$0xff] %v826
      %859 = vst [vmem:[#allocation2 + $0x18] sm:$0xff] %v827
      %860 = vst [vmem:[#allocation2 + $0x20] sm:$0xff] %v828
      %861 = vst [vmem:[#allocation2 + $0x28] sm:$0xff] %v829
      %862 = vst [vmem:[#allocation2 + $0x30] sm:$0xff] %v830
      %863 = vst [vmem:[#allocation2 + $0x38] sm:$0xff] %v831
      %864 = vst [vmem:[#allocation2 + $0x40] sm:$0xff] %v832
      %865 = vst [vmem:[#allocation2 + $0x48] sm:$0xff] %v833
      %866 = vst [vmem:[#allocation2 + $0x50] sm:$0xff] %v834
      %867 = vst [vmem:[#allocation2 + $0x58] sm:$0xff] %v835
      %868 = vst [vmem:[#allocation2 + $0x60] sm:$0xff] %v836
      %869 = vst [vmem:[#allocation2 + $0x68] sm:$0xff] %v837
      %870 = vst [vmem:[#allocation2 + $0x70] sm:$0xff] %v838
      %871 = vst [vmem:[#allocation2 + $0x78] sm:$0xff] %v839
      %872 = vst [vmem:[#allocation2 + $0x80] sm:$0xff] %v840
      %873 = vst [vmem:[#allocation2 + $0x88] sm:$0xff] %v841
      %874 = vst [vmem:[#allocation2 + $0x90] sm:$0xff] %v842
      %875 = vst [vmem:[#allocation2 + $0x98] sm:$0xff] %v843
      %876 = vst [vmem:[#allocation2 + $0xa0] sm:$0xff] %v844
      %877 = vst [vmem:[#allocation2 + $0xa8] sm:$0xff] %v845
      %878 = vst [vmem:[#allocation2 + $0xb0] sm:$0xff] %v846
      %879 = vst [vmem:[#allocation2 + $0xb8] sm:$0xff] %v847
      %880 = vst [vmem:[#allocation2 + $0xc0] sm:$0xff] %v848
      %881 = vst [vmem:[#allocation2 + $0xc8] sm:$0xff] %v849
      %882 = vst [vmem:[#allocation2 + $0xd0] sm:$0xff] %v850
      %883 = vst [vmem:[#allocation2 + $0xd8] sm:$0xff] %v851
      %884 = vst [vmem:[#allocation2 + $0xe0] sm:$0xff] %v852
      %885 = vst [vmem:[#allocation2 + $0xe8] sm:$0xff] %v853
      %886 = vst [vmem:[#allocation2 + $0xf0] sm:$0xff] %v854
      %887 = vst [vmem:[#allocation2 + $0xf8] sm:$0xff] %v855
      // Predicated region
      $region37: #{pretrained_model_forward.10} parent=31 // pred_check
        %p888 = pneg %p258
      $region38: #{pretrained_model_forward.10} parent=31 // pred_check_branch
        %890 = sbr.rel (%p888) target = $region40
      $region39: #{pretrained_model_forward.10} parent=31 // pred_region
        %v891 = vld [vmem:[#allocation2] sm:$0xff]
        %v892 = vld [vmem:[#allocation2 + $0x8] sm:$0xff]
        %v893 = vld [vmem:[#allocation2 + $0x10] sm:$0xff]
        %v894 = vld [vmem:[#allocation2 + $0x18] sm:$0xff]
        %v895 = vld [vmem:[#allocation2 + $0x20] sm:$0xff]
        %v896 = vld [vmem:[#allocation2 + $0x28] sm:$0xff]
        %v897 = vld [vmem:[#allocation2 + $0x30] sm:$0xff]
        %v898 = vld [vmem:[#allocation2 + $0x38] sm:$0xff]
        %v899 = vld [vmem:[#allocation2 + $0x40] sm:$0xff]
        %v900 = vld [vmem:[#allocation2 + $0x48] sm:$0xff]
        %v901 = vld [vmem:[#allocation2 + $0x50] sm:$0xff]
        %v902 = vld [vmem:[#allocation2 + $0x58] sm:$0xff]
        %v903 = vld [vmem:[#allocation2 + $0x60] sm:$0xff]
        %v904 = vld [vmem:[#allocation2 + $0x68] sm:$0xff]
        %v905 = vld [vmem:[#allocation2 + $0x70] sm:$0xff]
        %v906 = vld [vmem:[#allocation2 + $0x78] sm:$0xff]
        %v907 = vld [vmem:[#allocation2 + $0x80] sm:$0xff]
        %v908 = vld [vmem:[#allocation2 + $0x88] sm:$0xff]
        %v909 = vld [vmem:[#allocation2 + $0x90] sm:$0xff]
        %v910 = vld [vmem:[#allocation2 + $0x98] sm:$0xff]
        %v911 = vld [vmem:[#allocation2 + $0xa0] sm:$0xff]
        %v912 = vld [vmem:[#allocation2 + $0xa8] sm:$0xff]
        %v913 = vld [vmem:[#allocation2 + $0xb0] sm:$0xff]
        %v914 = vld [vmem:[#allocation2 + $0xb8] sm:$0xff]
        %v915 = vld [vmem:[#allocation2 + $0xc0] sm:$0xff]
        %v916 = vld [vmem:[#allocation2 + $0xc8] sm:$0xff]
        %v917 = vld [vmem:[#allocation2 + $0xd0] sm:$0xff]
        %v918 = vld [vmem:[#allocation2 + $0xd8] sm:$0xff]
        %v919 = vld [vmem:[#allocation2 + $0xe0] sm:$0xff]
        %v920 = vld [vmem:[#allocation2 + $0xe8] sm:$0xff]
        %v921 = vld [vmem:[#allocation2 + $0xf0] sm:$0xff]
        %v922 = vld [vmem:[#allocation2 + $0xf8] sm:$0xff]
        %v923 = vld [vmem:[%s2] sm:$0x1]
        %v925 = vperm.slane %v923, 0
        %v927 = vadd.f32 %v891, %v925
        %v928 = vadd.f32 %v892, %v925
        %v929 = vadd.f32 %v893, %v925
        %v930 = vadd.f32 %v894, %v925
        %v931 = vadd.f32 %v895, %v925
        %v932 = vadd.f32 %v896, %v925
        %v933 = vadd.f32 %v897, %v925
        %v934 = vadd.f32 %v898, %v925
        %v935 = vadd.f32 %v899, %v925
        %v936 = vadd.f32 %v900, %v925
        %v937 = vadd.f32 %v901, %v925
        %v938 = vadd.f32 %v902, %v925
        %v939 = vadd.f32 %v903, %v925
        %v940 = vadd.f32 %v904, %v925
        %v941 = vadd.f32 %v905, %v925
        %v942 = vadd.f32 %v906, %v925
        %v943 = vadd.f32 %v907, %v925
        %v944 = vadd.f32 %v908, %v925
        %v945 = vadd.f32 %v909, %v925
        %v946 = vadd.f32 %v910, %v925
        %v947 = vadd.f32 %v911, %v925
        %v948 = vadd.f32 %v912, %v925
        %v949 = vadd.f32 %v913, %v925
        %v950 = vadd.f32 %v914, %v925
        %v951 = vadd.f32 %v915, %v925
        %v952 = vadd.f32 %v916, %v925
        %v953 = vadd.f32 %v917, %v925
        %v954 = vadd.f32 %v918, %v925
        %v955 = vadd.f32 %v919, %v925
        %v956 = vadd.f32 %v920, %v925
        %v957 = vadd.f32 %v921, %v925
        %v958 = vadd.f32 %v922, %v925
        %v959 = vmax.f32 %v927, 0.0
        %v960 = vmax.f32 %v928, 0.0
        %v961 = vmax.f32 %v929, 0.0
        %v962 = vmax.f32 %v930, 0.0
        %v963 = vmax.f32 %v931, 0.0
        %v964 = vmax.f32 %v932, 0.0
        %v965 = vmax.f32 %v933, 0.0
        %v966 = vmax.f32 %v934, 0.0
        %v967 = vmax.f32 %v935, 0.0
        %v968 = vmax.f32 %v936, 0.0
        %v969 = vmax.f32 %v937, 0.0
        %v970 = vmax.f32 %v938, 0.0
        %v971 = vmax.f32 %v939, 0.0
        %v972 = vmax.f32 %v940, 0.0
        %v973 = vmax.f32 %v941, 0.0
        %v974 = vmax.f32 %v942, 0.0
        %v975 = vmax.f32 %v943, 0.0
        %v976 = vmax.f32 %v944, 0.0
        %v977 = vmax.f32 %v945, 0.0
        %v978 = vmax.f32 %v946, 0.0
        %v979 = vmax.f32 %v947, 0.0
        %v980 = vmax.f32 %v948, 0.0
        %v981 = vmax.f32 %v949, 0.0
        %v982 = vmax.f32 %v950, 0.0
        %v983 = vmax.f32 %v951, 0.0
        %v984 = vmax.f32 %v952, 0.0
        %v985 = vmax.f32 %v953, 0.0
        %v986 = vmax.f32 %v954, 0.0
        %v987 = vmax.f32 %v955, 0.0
        %v988 = vmax.f32 %v956, 0.0
        %v989 = vmax.f32 %v957, 0.0
        %v990 = vmax.f32 %v958, 0.0
        %v991 = vpack.c.bf16 %v959, %v959
        %v992 = vpack.c.bf16 %v960, %v960
        %v993 = vpack.c.bf16 %v961, %v961
        %v994 = vpack.c.bf16 %v962, %v962
        %v995 = vpack.c.bf16 %v963, %v963
        %v996 = vpack.c.bf16 %v964, %v964
        %v997 = vpack.c.bf16 %v965, %v965
        %v998 = vpack.c.bf16 %v966, %v966
        %v999 = vpack.c.bf16 %v967, %v967
        %v1000 = vpack.c.bf16 %v968, %v968
        %v1001 = vpack.c.bf16 %v969, %v969
        %v1002 = vpack.c.bf16 %v970, %v970
        %v1003 = vpack.c.bf16 %v971, %v971
        %v1004 = vpack.c.bf16 %v972, %v972
        %v1005 = vpack.c.bf16 %v973, %v973
        %v1006 = vpack.c.bf16 %v974, %v974
        %v1007 = vpack.c.bf16 %v975, %v975
        %v1008 = vpack.c.bf16 %v976, %v976
        %v1009 = vpack.c.bf16 %v977, %v977
        %v1010 = vpack.c.bf16 %v978, %v978
        %v1011 = vpack.c.bf16 %v979, %v979
        %v1012 = vpack.c.bf16 %v980, %v980
        %v1013 = vpack.c.bf16 %v981, %v981
        %v1014 = vpack.c.bf16 %v982, %v982
        %v1015 = vpack.c.bf16 %v983, %v983
        %v1016 = vpack.c.bf16 %v984, %v984
        %v1017 = vpack.c.bf16 %v985, %v985
        %v1018 = vpack.c.bf16 %v986, %v986
        %v1019 = vpack.c.bf16 %v987, %v987
        %v1020 = vpack.c.bf16 %v988, %v988
        %v1021 = vpack.c.bf16 %v989, %v989
        %v1022 = vpack.c.bf16 %v990, %v990
        %1023 = vst [vmem:[%s256] sm:$0xf] %v991
        %1024 = vst [vmem:[%s256 + $0x4] sm:$0xf] %v992
        %1025 = vst [vmem:[%s256 + $0x8] sm:$0xf] %v993
        %1026 = vst [vmem:[%s256 + $0xc] sm:$0xf] %v994
        %1027 = vst [vmem:[%s256 + $0x10] sm:$0xf] %v995
        %1028 = vst [vmem:[%s256 + $0x14] sm:$0xf] %v996
        %1029 = vst [vmem:[%s256 + $0x18] sm:$0xf] %v997
        %1030 = vst [vmem:[%s256 + $0x1c] sm:$0xf] %v998
        %1031 = vst [vmem:[%s256 + $0x20] sm:$0xf] %v999
        %1032 = vst [vmem:[%s256 + $0x24] sm:$0xf] %v1000
        %1033 = vst [vmem:[%s256 + $0x28] sm:$0xf] %v1001
        %1034 = vst [vmem:[%s256 + $0x2c] sm:$0xf] %v1002
        %1035 = vst [vmem:[%s256 + $0x30] sm:$0xf] %v1003
        %1036 = vst [vmem:[%s256 + $0x34] sm:$0xf] %v1004
        %1037 = vst [vmem:[%s256 + $0x38] sm:$0xf] %v1005
        %1038 = vst [vmem:[%s256 + $0x3c] sm:$0xf] %v1006
        %1039 = vst [vmem:[%s256 + $0x40] sm:$0xf] %v1007
        %1040 = vst [vmem:[%s256 + $0x44] sm:$0xf] %v1008
        %1041 = vst [vmem:[%s256 + $0x48] sm:$0xf] %v1009
        %1042 = vst [vmem:[%s256 + $0x4c] sm:$0xf] %v1010
        %1043 = vst [vmem:[%s256 + $0x50] sm:$0xf] %v1011
        %1044 = vst [vmem:[%s256 + $0x54] sm:$0xf] %v1012
        %1045 = vst [vmem:[%s256 + $0x58] sm:$0xf] %v1013
        %1046 = vst [vmem:[%s256 + $0x5c] sm:$0xf] %v1014
        %1047 = vst [vmem:[%s256 + $0x60] sm:$0xf] %v1015
        %1048 = vst [vmem:[%s256 + $0x64] sm:$0xf] %v1016
        %1049 = vst [vmem:[%s256 + $0x68] sm:$0xf] %v1017
        %1050 = vst [vmem:[%s256 + $0x6c] sm:$0xf] %v1018
        %1051 = vst [vmem:[%s256 + $0x70] sm:$0xf] %v1019
        %1052 = vst [vmem:[%s256 + $0x74] sm:$0xf] %v1020
        %1053 = vst [vmem:[%s256 + $0x78] sm:$0xf] %v1021
        %1054 = vst [vmem:[%s256 + $0x7c] sm:$0xf] %v1022
      $region40: #{pretrained_model_forward.10} parent=31 // pred_fallthru
        _
      %s1055 = smul.u32 32, %s20
      %p1056 = scmp.lt.s32.totalorder %s19, 1
      %s1057 = scalar_select %p1056, %s19, 1
      %p1058 = scmp.lt.s32.totalorder %s1055, 31
      %s1059 = scalar_select %p1058, %s1055, 31
      %s1060 = smul.addr %s1057, 32
      %s1061 = sadd.s32 %s1059, %s1060
      %s1062 = smul.addr %s1061, 4
      %s1063 = scalar_lea.vmem %s3, %s1062
      // Predicated region
      $region41: #{pretrained_model_forward.10} parent=31 // pred_check
        %p1064 = pneg %p130
      $region42: #{pretrained_model_forward.10} parent=31 // pred_check_branch
        %1066 = sbr.rel (%p1064) target = $region44
      $region43: #{pretrained_model_forward.10} parent=31 // pred_region
        %s1067 = smul.u32 32, %s20
      $region44: #{pretrained_model_forward.10} parent=31 // pred_fallthru
        _
    $region32: #{pretrained_model_forward.10} parent=5 // pred_fallthru
      _
    %p1068 = scmp.le.s32.totalorder 2, %s9
    // Predicated region
    $region45: #{pretrained_model_forward.10} parent=5 // pred_check
      %p1069 = pneg %p1068
    $region46: #{pretrained_model_forward.10} parent=5 // pred_check_branch
      %1071 = sbr.rel (%p1069) target = $region48
    $region47: #{pretrained_model_forward.10} parent=5 // pred_region
      %s1072 = ssub.s32 %s9, 2
      // Predicated region
      $region49: #{pretrained_model_forward.10} parent=47 // pred_check
        %p1073 = pneg %p136
      $region50: #{pretrained_model_forward.10} parent=47 // pred_check_branch
        %1075 = sbr.rel (%p1073) target = $region52
      $region51: #{pretrained_model_forward.10} parent=47 // pred_region
        %s1076 = smul.u32 32, %s23
        %p1077 = scmp.lt.s32.totalorder %s22, 1
        %s1078 = scalar_select %p1077, %s22, 1
        %p1079 = scmp.lt.s32.totalorder %s1076, 31
        %s1080 = scalar_select %p1079, %s1076, 31
        %s1081 = smul.addr %s1078, 32
        %s1082 = sadd.s32 %s1080, %s1081
        %s1083 = smul.addr %s1082, 4
        %s1084 = scalar_lea.vmem %s3, %s1083
      $region52: #{pretrained_model_forward.10} parent=47 // pred_fallthru
        _
    $region48: #{pretrained_model_forward.10} parent=5 // pred_fallthru
      _
  $region6: #{pretrained_model_forward.10} parent=0 // loop_footer
    %s13 = sadd.s32 1, %s9
  $region7: #{pretrained_model_forward.10} parent=0 // loop_footer_branch
    %8 = sbr.rel target = $region3
  $region8: #{pretrained_model_forward.10} parent=0 // loop_exit
    _

// kernel: pretrained_model_forward.11
$region0: #{pretrained_model_forward.11}
  #allocation0 [shape = 'u32[]', space=smem, size = 0x4, offset = 0x4, fixed_abs, tag = 'smem constant byte address 0x4 - core index']
  #allocation1 [shape = 'u32[72,128]{1,0:T(1,128)}', space=vmem, size = 0x9000, scoped, tag = 'internal scratch']
  #allocation2 [shape = 'f32[256,128]{1,0:T(8,128)}', space=vmem, size = 0x20000, scoped, tag = 'scratch operand']
  %s0 = inlined_call_operand.vmem [shape: bf16[2,256,128], index: 0, kind: input, shape index: {}]
  %s1 = inlined_call_operand.vmem [shape: bf16[128,128], index: 1, kind: input, shape index: {}]
  %s2 = inlined_call_operand.vmem [shape: f32[1,128], index: 2, kind: input, shape index: {}]
  %s3 = inlined_call_operand.vmem [shape: bf16[2,256,128], index: 3, kind: output, shape index: {}]
  %s4 = sld [smem:[#allocation0]]
  $region53: #{pretrained_model_forward.11} parent=0
    _
  %s6 = ssub.s32 1, %s4
  %s7 = scalar_select 0, %s6, %s4
  loop: start=0, step=1, limit=4
  $region2: #{pretrained_model_forward.11} parent=0 // loop_pre_header
    _
  $region3: #{pretrained_model_forward.11} parent=0 // loop_header
    %s9 = sphi 0, %s13
    %p10 = scmp.ge.s32.totalorder %s9, 4
    %s16 = sphi 0, %s35
    %s17 = sphi 0, %s31
    %s18 = sphi 0, %s27
    %s19 = sphi 0, %s16
    %s20 = sphi 0, %s17
    %s21 = sphi 0, %s18
    %s22 = sphi 0, %s19
    %s23 = sphi 0, %s20
    %s24 = sphi 0, %s21
    %s42 = sphi 0, %s44
    %s45 = sphi 0, %s42
    %s46 = sphi 0, %s45
    %s62 = sphi 0, %s46
    %s68 = sphi 0, %s70
    %s71 = sphi 0, %s68
    %s72 = sphi 0, %s71
    %s88 = sphi 0, %s72
    %s92 = sphi 0, %s92
    %s94 = sphi 0, %s92
    %s95 = sphi 0, %s94
    %s109 = sphi 0, %s95
    %s117 = sphi 0, %s119
    %s120 = sphi 0, %s117
    %s121 = sphi 0, %s120
    %s137 = sphi 0, %s121
  $region4: #{pretrained_model_forward.11} parent=0 // loop_header_branch
    %12 = sbr.rel (%p10) target = $region8
  $region5: #{pretrained_model_forward.11} parent=0 // loop_body
    %s14 = ssub.s32 %s9, 1
    %s15 = ssub.s32 %s9, 2
    %s25 = sadd.s32 1, %s18
    %p26 = scmp.ge.s32.totalorder %s25, 1
    %s27 = scalar_select %p26, 0, %s25
    %s28 = sadd.s32 1, %s17
    %s29 = scalar_select %p26, %s28, %s17
    %p30 = scmp.ge.s32.totalorder %s29, 1
    %s31 = scalar_select %p30, 0, %s29
    %s32 = sadd.s32 1, %s16
    %s33 = scalar_select %p30, %s32, %s16
    %p34 = scmp.ge.s32.totalorder %s33, 2
    %s35 = scalar_select %p34, 0, %s33
    %s36 = ssub.s32 %s16, %s35
    %s37 = ssub.s32 %s17, %s31
    %s38 = sor.u32 %s36, %s37
    %s39 = ssub.s32 %s18, %s27
    %s40 = sor.u32 %s38, %s39
    %p41 = scmp.eq.s32.totalorder %s40, 0
    %s43 = sadd.s32 %s42, 1
    %s44 = scalar_select %p41, %s42, %s43
    %p47 = pneg %p41
    %p48 = scmp.eq.s32.totalorder %s9, 1
    %p49 = por %p47, %p48
    %p50 = scmp.ne.s32.totalorder %s42, %s45
    %p51 = scmp.eq.s32.totalorder %s9, 0
    %p52 = por %p50, %p51
    %p53 = scmp.ne.s32.totalorder %s42, %s45
    %p54 = scmp.eq.s32.totalorder %s14, 1
    %p55 = por %p53, %p54
    %p56 = scmp.ne.s32.totalorder %s45, %s46
    %p57 = scmp.eq.s32.totalorder %s14, 0
    %p58 = por %p56, %p57
    %p59 = scmp.ne.s32.totalorder %s45, %s46
    %p60 = scmp.eq.s32.totalorder %s15, 1
    %p61 = por %p59, %p60
    %p63 = scmp.ne.s32.totalorder %s46, %s62
    %p64 = scmp.eq.s32.totalorder %s15, 0
    %p65 = por %p63, %p64
    %s66 = ssub.s32 %s18, %s27
    %p67 = scmp.eq.s32.totalorder %s66, 0
    %s69 = sadd.s32 %s68, 1
    %s70 = scalar_select %p67, %s68, %s69
    %p73 = pneg %p67
    %p74 = scmp.eq.s32.totalorder %s9, 1
    %p75 = por %p73, %p74
    %p76 = scmp.ne.s32.totalorder %s68, %s71
    %p77 = scmp.eq.s32.totalorder %s9, 0
    %p78 = por %p76, %p77
    %p79 = scmp.ne.s32.totalorder %s68, %s71
    %p80 = scmp.eq.s32.totalorder %s14, 1
    %p81 = por %p79, %p80
    %p82 = scmp.ne.s32.totalorder %s71, %s72
    %p83 = scmp.eq.s32.totalorder %s14, 0
    %p84 = por %p82, %p83
    %p85 = scmp.ne.s32.totalorder %s71, %s72
    %p86 = scmp.eq.s32.totalorder %s15, 1
    %p87 = por %p85, %p86
    %p89 = scmp.ne.s32.totalorder %s72, %s88
    %p90 = scmp.eq.s32.totalorder %s15, 0
    %p91 = por %p89, %p90
    %s93 = sadd.s32 %s92, 1
    %p96 = scmp.eq.s32.totalorder %s9, 1
    %p97 = scmp.ne.s32.totalorder %s92, %s94
    %p98 = scmp.eq.s32.totalorder %s9, 0
    %p99 = por %p97, %p98
    %p100 = scmp.ne.s32.totalorder %s92, %s94
    %p101 = scmp.eq.s32.totalorder %s14, 1
    %p102 = por %p100, %p101
    %p103 = scmp.ne.s32.totalorder %s94, %s95
    %p104 = scmp.eq.s32.totalorder %s14, 0
    %p105 = por %p103, %p104
    %p106 = scmp.ne.s32.totalorder %s94, %s95
    %p107 = scmp.eq.s32.totalorder %s15, 1
    %p108 = por %p106, %p107
    %p110 = scmp.ne.s32.totalorder %s95, %s109
    %p111 = scmp.eq.s32.totalorder %s15, 0
    %p112 = por %p110, %p111
    %s113 = ssub.s32 %s16, %s35
    %s114 = ssub.s32 %s17, %s31
    %s115 = sor.u32 %s113, %s114
    %p116 = scmp.eq.s32.totalorder %s115, 0
    %s118 = sadd.s32 %s117, 1
    %s119 = scalar_select %p116, %s117, %s118
    %p122 = pneg %p116
    %p123 = scmp.eq.s32.totalorder %s9, 1
    %p124 = por %p122, %p123
    %p125 = scmp.ne.s32.totalorder %s117, %s120
    %p126 = scmp.eq.s32.totalorder %s9, 0
    %p127 = por %p125, %p126
    %p128 = scmp.ne.s32.totalorder %s117, %s120
    %p129 = scmp.eq.s32.totalorder %s14, 1
    %p130 = por %p128, %p129
    %p131 = scmp.ne.s32.totalorder %s120, %s121
    %p132 = scmp.eq.s32.totalorder %s14, 0
    %p133 = por %p131, %p132
    %p134 = scmp.ne.s32.totalorder %s120, %s121
    %p135 = scmp.eq.s32.totalorder %s15, 1
    %p136 = por %p134, %p135
    %p138 = scmp.ne.s32.totalorder %s121, %s137
    %p139 = scmp.eq.s32.totalorder %s15, 0
    %p140 = por %p138, %p139
    %p141 = scmp.le.s32.totalorder 1, %s9
    %p142 = scmp.lt.s32.totalorder %s9, 3
    %p143 = pnand %p141, %p142
    %p144 = pneg %p143
    // Predicated region
    $region9: #{pretrained_model_forward.11} parent=5 // pred_check
      _
    $region10: #{pretrained_model_forward.11} parent=5 // pred_check_branch
      %146 = sbr.rel (%p143) target = $region12
    $region11: #{pretrained_model_forward.11} parent=5 // pred_region
      %s147 = ssub.s32 %s9, 1
      // Predicated region
      $region13: #{pretrained_model_forward.11} parent=11 // pred_check
        %p148 = pneg %p84
      $region14: #{pretrained_model_forward.11} parent=11 // pred_check_branch
        %150 = sbr.rel (%p148) target = $region16
      $region15: #{pretrained_model_forward.11} parent=11 // pred_region
        %s151 = smul.u32 16, %s21
        %p152 = scmp.lt.s32.totalorder %s151, 15
        %s153 = scalar_select %p152, %s151, 15
        %s154 = smul.addr %s153, 4
        %s155 = scalar_lea.vmem %s1, %s154
        %s156 = smul.u32 16, %s21
      $region16: #{pretrained_model_forward.11} parent=11 // pred_fallthru
        _
      // Predicated region
      $region17: #{pretrained_model_forward.11} parent=11 // pred_check
        %p157 = pneg %p105
      $region18: #{pretrained_model_forward.11} parent=11 // pred_check_branch
        %159 = sbr.rel (%p157) target = $region20
      $region19: #{pretrained_model_forward.11} parent=11 // pred_region
        _
      $region20: #{pretrained_model_forward.11} parent=11 // pred_fallthru
        _
    $region12: #{pretrained_model_forward.11} parent=5 // pred_fallthru
      _
    %p160 = scmp.lt.s32.totalorder %s9, 2
    // Predicated region
    $region21: #{pretrained_model_forward.11} parent=5 // pred_check
      %p161 = pneg %p160
    $region22: #{pretrained_model_forward.11} parent=5 // pred_check_branch
      %163 = sbr.rel (%p161) target = $region24
    $region23: #{pretrained_model_forward.11} parent=5 // pred_region
      // Predicated region
      $region25: #{pretrained_model_forward.11} parent=23 // pred_check
        %p164 = pneg %p52
      $region26: #{pretrained_model_forward.11} parent=23 // pred_check_branch
        %166 = sbr.rel (%p164) target = $region28
      $region27: #{pretrained_model_forward.11} parent=23 // pred_region
        %s167 = smul.u32 32, %s17
        %p168 = scmp.lt.s32.totalorder %s16, 1
        %s169 = scalar_select %p168, %s16, 1
        %p170 = scmp.lt.s32.totalorder %s167, 31
        %s171 = scalar_select %p170, %s167, 31
        %p172 = scmp.lt.s32.totalorder %s18, 0
        %s173 = scalar_select %p172, %s18, 0
        %s174 = sadd.s32 %s173, %s171
        %s175 = smul.addr %s169, 32
        %s176 = sadd.s32 %s174, %s175
        %s177 = smul.addr %s176, 4
        %s178 = scalar_lea.vmem %s0, %s177
        %s179 = smul.u32 32, %s17
      $region28: #{pretrained_model_forward.11} parent=23 // pred_fallthru
        _
    $region24: #{pretrained_model_forward.11} parent=5 // pred_fallthru
      _
    %p180 = scmp.le.s32.totalorder 1, %s9
    %p181 = scmp.lt.s32.totalorder %s9, 3
    %p182 = pnand %p180, %p181
    %p183 = pneg %p182
    // Predicated region
    $region29: #{pretrained_model_forward.11} parent=5 // pred_check
      _
    $region30: #{pretrained_model_forward.11} parent=5 // pred_check_branch
      %185 = sbr.rel (%p182) target = $region32
    $region31: #{pretrained_model_forward.11} parent=5 // pred_region
      %s186 = ssub.s32 %s9, 1
      %s187 = smul.u32 32, %s20
      %p188 = scmp.lt.s32.totalorder %s19, 1
      %s189 = scalar_select %p188, %s19, 1
      %p190 = scmp.lt.s32.totalorder %s187, 31
      %s191 = scalar_select %p190, %s187, 31
      %p192 = scmp.lt.s32.totalorder %s21, 0
      %s193 = scalar_select %p192, %s21, 0
      %s194 = sadd.s32 %s193, %s191
      %s195 = smul.addr %s189, 32
      %s196 = sadd.s32 %s194, %s195
      %s197 = smul.addr %s196, 4
      %s198 = scalar_lea.vmem %s0, %s197
      %p199 = pneg %p58
      %p200 = pneg %p55
      %s201 = smul.u32 16, %s21
      %p202 = scmp.lt.s32.totalorder %s201, 15
      %s203 = scalar_select %p202, %s201, 15
      %s204 = smul.addr %s203, 4
      %s205 = scalar_lea.vmem %s1, %s204
      %p206 = pneg %p84
      %p207 = pneg %p81
      %p208 = pneg %p105
      %p209 = pneg %p102
      %p210 = pneg %p133
      %p211 = pneg %p130
      %s212 = smul.u32 32, %s20
      %p213 = scmp.lt.s32.totalorder %s19, 1
      %s214 = scalar_select %p213, %s19, 1
      %p215 = scmp.lt.s32.totalorder %s212, 31
      %s216 = scalar_select %p215, %s212, 31
      %s217 = smul.addr %s214, 32
      %s218 = sadd.s32 %s216, %s217
      %s219 = smul.addr %s218, 4
      %s220 = scalar_lea.vmem %s3, %s219
      %s221 = smul.u32 32, %s20
      %p222 = scmp.lt.s32.totalorder %s19, 1
      %s223 = scalar_select %p222, %s19, 1
      %p224 = scmp.lt.s32.totalorder %s221, 31
      %s225 = scalar_select %p224, %s221, 31
      %p226 = scmp.lt.s32.totalorder %s21, 0
      %s227 = scalar_select %p226, %s21, 0
      %s228 = sadd.s32 %s227, %s225
      %s229 = smul.addr %s223, 32
      %s230 = sadd.s32 %s228, %s229
      %s231 = smul.addr %s230, 4
      %s232 = scalar_lea.vmem %s0, %s231
      %s233 = smul.u32 32, %s20
      %s234 = smul.u32 16, %s21
      %p235 = scmp.lt.s32.totalorder %s234, 15
      %s236 = scalar_select %p235, %s234, 15
      %s237 = smul.addr %s236, 4
      %s238 = scalar_lea.vmem %s1, %s237
      %s239 = smul.u32 16, %s21
      %s240 = smul.u32 32, %s20
      %p241 = scmp.lt.s32.totalorder %s19, 1
      %s242 = scalar_select %p241, %s19, 1
      %p243 = scmp.lt.s32.totalorder %s240, 31
      %s244 = scalar_select %p243, %s240, 31
      %s245 = smul.addr %s242, 32
      %s246 = sadd.s32 %s244, %s245
      %s247 = smul.addr %s246, 4
      %s248 = scalar_lea.vmem %s3, %s247
      %s249 = smul.u32 32, %s20
      %p250 = scmp.eq.s32.totalorder %s21, 0
      // Predicated region
      $region33: #{pretrained_model_forward.11} parent=31 // pred_check
        %p251 = pneg %p250
      $region34: #{pretrained_model_forward.11} parent=31 // pred_check_branch
        %253 = sbr.rel (%p251) target = $region36
      $region35: #{pretrained_model_forward.11} parent=31 // pred_region
        %254 = vst [vmem:[#allocation2] sm:$0xff] 0.0
        %255 = vst [vmem:[#allocation2 + $0x8] sm:$0xff] 0.0
        %256 = vst [vmem:[#allocation2 + $0x10] sm:$0xff] 0.0
        %257 = vst [vmem:[#allocation2 + $0x18] sm:$0xff] 0.0
        %258 = vst [vmem:[#allocation2 + $0x20] sm:$0xff] 0.0
        %259 = vst [vmem:[#allocation2 + $0x28] sm:$0xff] 0.0
        %260 = vst [vmem:[#allocation2 + $0x30] sm:$0xff] 0.0
        %261 = vst [vmem:[#allocation2 + $0x38] sm:$0xff] 0.0
        %262 = vst [vmem:[#allocation2 + $0x40] sm:$0xff] 0.0
        %263 = vst [vmem:[#allocation2 + $0x48] sm:$0xff] 0.0
        %264 = vst [vmem:[#allocation2 + $0x50] sm:$0xff] 0.0
        %265 = vst [vmem:[#allocation2 + $0x58] sm:$0xff] 0.0
        %266 = vst [vmem:[#allocation2 + $0x60] sm:$0xff] 0.0
        %267 = vst [vmem:[#allocation2 + $0x68] sm:$0xff] 0.0
        %268 = vst [vmem:[#allocation2 + $0x70] sm:$0xff] 0.0
        %269 = vst [vmem:[#allocation2 + $0x78] sm:$0xff] 0.0
        %270 = vst [vmem:[#allocation2 + $0x80] sm:$0xff] 0.0
        %271 = vst [vmem:[#allocation2 + $0x88] sm:$0xff] 0.0
        %272 = vst [vmem:[#allocation2 + $0x90] sm:$0xff] 0.0
        %273 = vst [vmem:[#allocation2 + $0x98] sm:$0xff] 0.0
        %274 = vst [vmem:[#allocation2 + $0xa0] sm:$0xff] 0.0
        %275 = vst [vmem:[#allocation2 + $0xa8] sm:$0xff] 0.0
        %276 = vst [vmem:[#allocation2 + $0xb0] sm:$0xff] 0.0
        %277 = vst [vmem:[#allocation2 + $0xb8] sm:$0xff] 0.0
        %278 = vst [vmem:[#allocation2 + $0xc0] sm:$0xff] 0.0
        %279 = vst [vmem:[#allocation2 + $0xc8] sm:$0xff] 0.0
        %280 = vst [vmem:[#allocation2 + $0xd0] sm:$0xff] 0.0
        %281 = vst [vmem:[#allocation2 + $0xd8] sm:$0xff] 0.0
        %282 = vst [vmem:[#allocation2 + $0xe0] sm:$0xff] 0.0
        %283 = vst [vmem:[#allocation2 + $0xe8] sm:$0xff] 0.0
        %284 = vst [vmem:[#allocation2 + $0xf0] sm:$0xff] 0.0
        %285 = vst [vmem:[#allocation2 + $0xf8] sm:$0xff] 0.0
      $region36: #{pretrained_model_forward.11} parent=31 // pred_fallthru
        _
      %v286 = vld [vmem:[#allocation2] sm:$0xff]
      %v287 = vld [vmem:[#allocation2 + $0x8] sm:$0xff]
      %v288 = vld [vmem:[#allocation2 + $0x10] sm:$0xff]
      %v289 = vld [vmem:[#allocation2 + $0x18] sm:$0xff]
      %v290 = vld [vmem:[#allocation2 + $0x20] sm:$0xff]
      %v291 = vld [vmem:[#allocation2 + $0x28] sm:$0xff]
      %v292 = vld [vmem:[#allocation2 + $0x30] sm:$0xff]
      %v293 = vld [vmem:[#allocation2 + $0x38] sm:$0xff]
      %v294 = vld [vmem:[#allocation2 + $0x40] sm:$0xff]
      %v295 = vld [vmem:[#allocation2 + $0x48] sm:$0xff]
      %v296 = vld [vmem:[#allocation2 + $0x50] sm:$0xff]
      %v297 = vld [vmem:[#allocation2 + $0x58] sm:$0xff]
      %v298 = vld [vmem:[#allocation2 + $0x60] sm:$0xff]
      %v299 = vld [vmem:[#allocation2 + $0x68] sm:$0xff]
      %v300 = vld [vmem:[#allocation2 + $0x70] sm:$0xff]
      %v301 = vld [vmem:[#allocation2 + $0x78] sm:$0xff]
      %v302 = vld [vmem:[#allocation2 + $0x80] sm:$0xff]
      %v303 = vld [vmem:[#allocation2 + $0x88] sm:$0xff]
      %v304 = vld [vmem:[#allocation2 + $0x90] sm:$0xff]
      %v305 = vld [vmem:[#allocation2 + $0x98] sm:$0xff]
      %v306 = vld [vmem:[#allocation2 + $0xa0] sm:$0xff]
      %v307 = vld [vmem:[#allocation2 + $0xa8] sm:$0xff]
      %v308 = vld [vmem:[#allocation2 + $0xb0] sm:$0xff]
      %v309 = vld [vmem:[#allocation2 + $0xb8] sm:$0xff]
      %v310 = vld [vmem:[#allocation2 + $0xc0] sm:$0xff]
      %v311 = vld [vmem:[#allocation2 + $0xc8] sm:$0xff]
      %v312 = vld [vmem:[#allocation2 + $0xd0] sm:$0xff]
      %v313 = vld [vmem:[#allocation2 + $0xd8] sm:$0xff]
      %v314 = vld [vmem:[#allocation2 + $0xe0] sm:$0xff]
      %v315 = vld [vmem:[#allocation2 + $0xe8] sm:$0xff]
      %v316 = vld [vmem:[#allocation2 + $0xf0] sm:$0xff]
      %v317 = vld [vmem:[#allocation2 + $0xf8] sm:$0xff]
      %v318 = vld [vmem:[%s232] sm:$0xf]
      %v319 = vld [vmem:[%s232 + $0x4] sm:$0xf]
      %v320 = vld [vmem:[%s232 + $0x8] sm:$0xf]
      %v321 = vld [vmem:[%s232 + $0xc] sm:$0xf]
      %v322 = vld [vmem:[%s232 + $0x10] sm:$0xf]
      %v323 = vld [vmem:[%s232 + $0x14] sm:$0xf]
      %v324 = vld [vmem:[%s232 + $0x18] sm:$0xf]
      %v325 = vld [vmem:[%s232 + $0x1c] sm:$0xf]
      %v326 = vld [vmem:[%s232 + $0x20] sm:$0xf]
      %v327 = vld [vmem:[%s232 + $0x24] sm:$0xf]
      %v328 = vld [vmem:[%s232 + $0x28] sm:$0xf]
      %v329 = vld [vmem:[%s232 + $0x2c] sm:$0xf]
      %v330 = vld [vmem:[%s232 + $0x30] sm:$0xf]
      %v331 = vld [vmem:[%s232 + $0x34] sm:$0xf]
      %v332 = vld [vmem:[%s232 + $0x38] sm:$0xf]
      %v333 = vld [vmem:[%s232 + $0x3c] sm:$0xf]
      %v334 = vld [vmem:[%s232 + $0x40] sm:$0xf]
      %v335 = vld [vmem:[%s232 + $0x44] sm:$0xf]
      %v336 = vld [vmem:[%s232 + $0x48] sm:$0xf]
      %v337 = vld [vmem:[%s232 + $0x4c] sm:$0xf]
      %v338 = vld [vmem:[%s232 + $0x50] sm:$0xf]
      %v339 = vld [vmem:[%s232 + $0x54] sm:$0xf]
      %v340 = vld [vmem:[%s232 + $0x58] sm:$0xf]
      %v341 = vld [vmem:[%s232 + $0x5c] sm:$0xf]
      %v342 = vld [vmem:[%s232 + $0x60] sm:$0xf]
      %v343 = vld [vmem:[%s232 + $0x64] sm:$0xf]
      %v344 = vld [vmem:[%s232 + $0x68] sm:$0xf]
      %v345 = vld [vmem:[%s232 + $0x6c] sm:$0xf]
      %v346 = vld [vmem:[%s232 + $0x70] sm:$0xf]
      %v347 = vld [vmem:[%s232 + $0x74] sm:$0xf]
      %v348 = vld [vmem:[%s232 + $0x78] sm:$0xf]
      %v349 = vld [vmem:[%s232 + $0x7c] sm:$0xf]
      %v350 = vld [vmem:[%s238] sm:$0xf]
      %v351 = vld [vmem:[%s238 + $0x4] sm:$0xf]
      %v352 = vld [vmem:[%s238 + $0x8] sm:$0xf]
      %v353 = vld [vmem:[%s238 + $0xc] sm:$0xf]
      %v354 = vld [vmem:[%s238 + $0x10] sm:$0xf]
      %v355 = vld [vmem:[%s238 + $0x14] sm:$0xf]
      %v356 = vld [vmem:[%s238 + $0x18] sm:$0xf]
      %v357 = vld [vmem:[%s238 + $0x1c] sm:$0xf]
      %v358 = vld [vmem:[%s238 + $0x20] sm:$0xf]
      %v359 = vld [vmem:[%s238 + $0x24] sm:$0xf]
      %v360 = vld [vmem:[%s238 + $0x28] sm:$0xf]
      %v361 = vld [vmem:[%s238 + $0x2c] sm:$0xf]
      %v362 = vld [vmem:[%s238 + $0x30] sm:$0xf]
      %v363 = vld [vmem:[%s238 + $0x34] sm:$0xf]
      %v364 = vld [vmem:[%s238 + $0x38] sm:$0xf]
      %v365 = vld [vmem:[%s238 + $0x3c] sm:$0xf]
      %v398 = vunpack.c.l.b16 %v318
      %v399 = vunpack.c.l.b16 %v319
      %v400 = vunpack.c.l.b16 %v320
      %v401 = vunpack.c.l.b16 %v321
      %v402 = vunpack.c.l.b16 %v322
      %v403 = vunpack.c.l.b16 %v323
      %v404 = vunpack.c.l.b16 %v324
      %v405 = vunpack.c.l.b16 %v325
      %v406 = vunpack.c.l.b16 %v326
      %v407 = vunpack.c.l.b16 %v327
      %v408 = vunpack.c.l.b16 %v328
      %v409 = vunpack.c.l.b16 %v329
      %v410 = vunpack.c.l.b16 %v330
      %v411 = vunpack.c.l.b16 %v331
      %v412 = vunpack.c.l.b16 %v332
      %v413 = vunpack.c.l.b16 %v333
      %v414 = vunpack.c.l.b16 %v334
      %v415 = vunpack.c.l.b16 %v335
      %v416 = vunpack.c.l.b16 %v336
      %v417 = vunpack.c.l.b16 %v337
      %v418 = vunpack.c.l.b16 %v338
      %v419 = vunpack.c.l.b16 %v339
      %v420 = vunpack.c.l.b16 %v340
      %v421 = vunpack.c.l.b16 %v341
      %v422 = vunpack.c.l.b16 %v342
      %v423 = vunpack.c.l.b16 %v343
      %v424 = vunpack.c.l.b16 %v344
      %v425 = vunpack.c.l.b16 %v345
      %v426 = vunpack.c.l.b16 %v346
      %v427 = vunpack.c.l.b16 %v347
      %v428 = vunpack.c.l.b16 %v348
      %v429 = vunpack.c.l.b16 %v349
      %v430 = vpack.c.b16 %v399, %v398
      %v431 = vpack.c.b16 %v401, %v400
      %v432 = vpack.c.b16 %v403, %v402
      %v433 = vpack.c.b16 %v405, %v404
      %v434 = vpack.c.b16 %v407, %v406
      %v435 = vpack.c.b16 %v409, %v408
      %v436 = vpack.c.b16 %v411, %v410
      %v437 = vpack.c.b16 %v413, %v412
      %v438 = vpack.c.b16 %v415, %v414
      %v439 = vpack.c.b16 %v417, %v416
      %v440 = vpack.c.b16 %v419, %v418
      %v441 = vpack.c.b16 %v421, %v420
      %v442 = vpack.c.b16 %v423, %v422
      %v443 = vpack.c.b16 %v425, %v424
      %v444 = vpack.c.b16 %v427, %v426
      %v445 = vpack.c.b16 %v429, %v428
      %v478 = vunpack.c.l.b16 %v350
      %v479 = vunpack.c.l.b16 %v351
      %v480 = vunpack.c.l.b16 %v352
      %v481 = vunpack.c.l.b16 %v353
      %v482 = vunpack.c.l.b16 %v354
      %v483 = vunpack.c.l.b16 %v355
      %v484 = vunpack.c.l.b16 %v356
      %v485 = vunpack.c.l.b16 %v357
      %v486 = vunpack.c.l.b16 %v358
      %v487 = vunpack.c.l.b16 %v359
      %v488 = vunpack.c.l.b16 %v360
      %v489 = vunpack.c.l.b16 %v361
      %v490 = vunpack.c.l.b16 %v362
      %v491 = vunpack.c.l.b16 %v363
      %v492 = vunpack.c.l.b16 %v364
      %v493 = vunpack.c.l.b16 %v365
      %v494 = vpack.c.b16 %v479, %v478
      %v495 = vpack.c.b16 %v481, %v480
      %v496 = vpack.c.b16 %v483, %v482
      %v497 = vpack.c.b16 %v485, %v484
      %v498 = vpack.c.b16 %v487, %v486
      %v499 = vpack.c.b16 %v489, %v488
      %v500 = vpack.c.b16 %v491, %v490
      %v501 = vpack.c.b16 %v493, %v492
      %510 = vmatpush.bf16.msra.mxu0 %v501
      %511 = vmatpush.bf16.msra.mxu0 %v500
      %512 = vmatpush.bf16.msra.mxu0 %v499
      %513 = vmatpush.bf16.msra.mxu0 %v498
      %514 = vmatpush.bf16.msra.mxu0 %v497
      %515 = vmatpush.bf16.msra.mxu0 %v496
      %516 = vmatpush.bf16.msra.mxu0 %v495
      %517 = vmatpush.bf16.msra.mxu0 %v494
      %518 = vmatmul.bf16.gmra.mxu0 %v430
      %v519 = vpop.f32.mrf.mxu0
      %v520 = vadd.f32 0.0, %v519
      %v521 = vpop.f32.mrf.mxu0
      %v522 = vadd.f32 0.0, %v521
      %523 = vmatmul.bf16.gmra.mxu0 %v431
      %v524 = vpop.f32.mrf.mxu0
      %v525 = vadd.f32 0.0, %v524
      %v526 = vpop.f32.mrf.mxu0
      %v527 = vadd.f32 0.0, %v526
      %528 = vmatmul.bf16.gmra.mxu0 %v432
      %v529 = vpop.f32.mrf.mxu0
      %v530 = vadd.f32 0.0, %v529
      %v531 = vpop.f32.mrf.mxu0
      %v532 = vadd.f32 0.0, %v531
      %533 = vmatmul.bf16.gmra.mxu0 %v433
      %v534 = vpop.f32.mrf.mxu0
      %v535 = vadd.f32 0.0, %v534
      %v536 = vpop.f32.mrf.mxu0
      %v537 = vadd.f32 0.0, %v536
      %538 = vmatmul.bf16.gmra.mxu0 %v434
      %v539 = vpop.f32.mrf.mxu0
      %v540 = vadd.f32 0.0, %v539
      %v541 = vpop.f32.mrf.mxu0
      %v542 = vadd.f32 0.0, %v541
      %543 = vmatmul.bf16.gmra.mxu0 %v435
      %v544 = vpop.f32.mrf.mxu0
      %v545 = vadd.f32 0.0, %v544
      %v546 = vpop.f32.mrf.mxu0
      %v547 = vadd.f32 0.0, %v546
      %548 = vmatmul.bf16.gmra.mxu0 %v436
      %v549 = vpop.f32.mrf.mxu0
      %v550 = vadd.f32 0.0, %v549
      %v551 = vpop.f32.mrf.mxu0
      %v552 = vadd.f32 0.0, %v551
      %553 = vmatmul.bf16.gmra.mxu0 %v437
      %v554 = vpop.f32.mrf.mxu0
      %v555 = vadd.f32 0.0, %v554
      %v556 = vpop.f32.mrf.mxu0
      %v557 = vadd.f32 0.0, %v556
      %558 = vmatmul.bf16.gmra.mxu0 %v438
      %v559 = vpop.f32.mrf.mxu0
      %v560 = vadd.f32 0.0, %v559
      %v561 = vpop.f32.mrf.mxu0
      %v562 = vadd.f32 0.0, %v561
      %563 = vmatmul.bf16.gmra.mxu0 %v439
      %v564 = vpop.f32.mrf.mxu0
      %v565 = vadd.f32 0.0, %v564
      %v566 = vpop.f32.mrf.mxu0
      %v567 = vadd.f32 0.0, %v566
      %568 = vmatmul.bf16.gmra.mxu0 %v440
      %v569 = vpop.f32.mrf.mxu0
      %v570 = vadd.f32 0.0, %v569
      %v571 = vpop.f32.mrf.mxu0
      %v572 = vadd.f32 0.0, %v571
      %573 = vmatmul.bf16.gmra.mxu0 %v441
      %v574 = vpop.f32.mrf.mxu0
      %v575 = vadd.f32 0.0, %v574
      %v576 = vpop.f32.mrf.mxu0
      %v577 = vadd.f32 0.0, %v576
      %578 = vmatmul.bf16.gmra.mxu0 %v442
      %v579 = vpop.f32.mrf.mxu0
      %v580 = vadd.f32 0.0, %v579
      %v581 = vpop.f32.mrf.mxu0
      %v582 = vadd.f32 0.0, %v581
      %583 = vmatmul.bf16.gmra.mxu0 %v443
      %v584 = vpop.f32.mrf.mxu0
      %v585 = vadd.f32 0.0, %v584
      %v586 = vpop.f32.mrf.mxu0
      %v587 = vadd.f32 0.0, %v586
      %588 = vmatmul.bf16.gmra.mxu0 %v444
      %v589 = vpop.f32.mrf.mxu0
      %v590 = vadd.f32 0.0, %v589
      %v591 = vpop.f32.mrf.mxu0
      %v592 = vadd.f32 0.0, %v591
      %593 = vmatmul.bf16.gmra.mxu0 %v445
      %v594 = vpop.f32.mrf.mxu0
      %v595 = vadd.f32 0.0, %v594
      %v596 = vpop.f32.mrf.mxu0
      %v597 = vadd.f32 0.0, %v596
      %598 = vdwg.mxu0
      %v599 = vadd.f32 %v286, %v520
      %v600 = vadd.f32 %v287, %v522
      %v601 = vadd.f32 %v288, %v525
      %v602 = vadd.f32 %v289, %v527
      %v603 = vadd.f32 %v290, %v530
      %v604 = vadd.f32 %v291, %v532
      %v605 = vadd.f32 %v292, %v535
      %v606 = vadd.f32 %v293, %v537
      %v607 = vadd.f32 %v294, %v540
      %v608 = vadd.f32 %v295, %v542
      %v609 = vadd.f32 %v296, %v545
      %v610 = vadd.f32 %v297, %v547
      %v611 = vadd.f32 %v298, %v550
      %v612 = vadd.f32 %v299, %v552
      %v613 = vadd.f32 %v300, %v555
      %v614 = vadd.f32 %v301, %v557
      %v615 = vadd.f32 %v302, %v560
      %v616 = vadd.f32 %v303, %v562
      %v617 = vadd.f32 %v304, %v565
      %v618 = vadd.f32 %v305, %v567
      %v619 = vadd.f32 %v306, %v570
      %v620 = vadd.f32 %v307, %v572
      %v621 = vadd.f32 %v308, %v575
      %v622 = vadd.f32 %v309, %v577
      %v623 = vadd.f32 %v310, %v580
      %v624 = vadd.f32 %v311, %v582
      %v625 = vadd.f32 %v312, %v585
      %v626 = vadd.f32 %v313, %v587
      %v627 = vadd.f32 %v314, %v590
      %v628 = vadd.f32 %v315, %v592
      %v629 = vadd.f32 %v316, %v595
      %v630 = vadd.f32 %v317, %v597
      %631 = vst [vmem:[#allocation2] sm:$0xff] %v599
      %632 = vst [vmem:[#allocation2 + $0x8] sm:$0xff] %v600
      %633 = vst [vmem:[#allocation2 + $0x10] sm:$0xff] %v601
      %634 = vst [vmem:[#allocation2 + $0x18] sm:$0xff] %v602
      %635 = vst [vmem:[#allocation2 + $0x20] sm:$0xff] %v603
      %636 = vst [vmem:[#allocation2 + $0x28] sm:$0xff] %v604
      %637 = vst [vmem:[#allocation2 + $0x30] sm:$0xff] %v605
      %638 = vst [vmem:[#allocation2 + $0x38] sm:$0xff] %v606
      %639 = vst [vmem:[#allocation2 + $0x40] sm:$0xff] %v607
      %640 = vst [vmem:[#allocation2 + $0x48] sm:$0xff] %v608
      %641 = vst [vmem:[#allocation2 + $0x50] sm:$0xff] %v609
      %642 = vst [vmem:[#allocation2 + $0x58] sm:$0xff] %v610
      %643 = vst [vmem:[#allocation2 + $0x60] sm:$0xff] %v611
      %644 = vst [vmem:[#allocation2 + $0x68] sm:$0xff] %v612
      %645 = vst [vmem:[#allocation2 + $0x70] sm:$0xff] %v613
      %646 = vst [vmem:[#allocation2 + $0x78] sm:$0xff] %v614
      %647 = vst [vmem:[#allocation2 + $0x80] sm:$0xff] %v615
      %648 = vst [vmem:[#allocation2 + $0x88] sm:$0xff] %v616
      %649 = vst [vmem:[#allocation2 + $0x90] sm:$0xff] %v617
      %650 = vst [vmem:[#allocation2 + $0x98] sm:$0xff] %v618
      %651 = vst [vmem:[#allocation2 + $0xa0] sm:$0xff] %v619
      %652 = vst [vmem:[#allocation2 + $0xa8] sm:$0xff] %v620
      %653 = vst [vmem:[#allocation2 + $0xb0] sm:$0xff] %v621
      %654 = vst [vmem:[#allocation2 + $0xb8] sm:$0xff] %v622
      %655 = vst [vmem:[#allocation2 + $0xc0] sm:$0xff] %v623
      %656 = vst [vmem:[#allocation2 + $0xc8] sm:$0xff] %v624
      %657 = vst [vmem:[#allocation2 + $0xd0] sm:$0xff] %v625
      %658 = vst [vmem:[#allocation2 + $0xd8] sm:$0xff] %v626
      %659 = vst [vmem:[#allocation2 + $0xe0] sm:$0xff] %v627
      %660 = vst [vmem:[#allocation2 + $0xe8] sm:$0xff] %v628
      %661 = vst [vmem:[#allocation2 + $0xf0] sm:$0xff] %v629
      %662 = vst [vmem:[#allocation2 + $0xf8] sm:$0xff] %v630
      // Predicated region
      $region37: #{pretrained_model_forward.11} parent=31 // pred_check
        %p663 = pneg %p250
      $region38: #{pretrained_model_forward.11} parent=31 // pred_check_branch
        %665 = sbr.rel (%p663) target = $region40
      $region39: #{pretrained_model_forward.11} parent=31 // pred_region
        %v666 = vld [vmem:[#allocation2] sm:$0xff]
        %v667 = vld [vmem:[#allocation2 + $0x8] sm:$0xff]
        %v668 = vld [vmem:[#allocation2 + $0x10] sm:$0xff]
        %v669 = vld [vmem:[#allocation2 + $0x18] sm:$0xff]
        %v670 = vld [vmem:[#allocation2 + $0x20] sm:$0xff]
        %v671 = vld [vmem:[#allocation2 + $0x28] sm:$0xff]
        %v672 = vld [vmem:[#allocation2 + $0x30] sm:$0xff]
        %v673 = vld [vmem:[#allocation2 + $0x38] sm:$0xff]
        %v674 = vld [vmem:[#allocation2 + $0x40] sm:$0xff]
        %v675 = vld [vmem:[#allocation2 + $0x48] sm:$0xff]
        %v676 = vld [vmem:[#allocation2 + $0x50] sm:$0xff]
        %v677 = vld [vmem:[#allocation2 + $0x58] sm:$0xff]
        %v678 = vld [vmem:[#allocation2 + $0x60] sm:$0xff]
        %v679 = vld [vmem:[#allocation2 + $0x68] sm:$0xff]
        %v680 = vld [vmem:[#allocation2 + $0x70] sm:$0xff]
        %v681 = vld [vmem:[#allocation2 + $0x78] sm:$0xff]
        %v682 = vld [vmem:[#allocation2 + $0x80] sm:$0xff]
        %v683 = vld [vmem:[#allocation2 + $0x88] sm:$0xff]
        %v684 = vld [vmem:[#allocation2 + $0x90] sm:$0xff]
        %v685 = vld [vmem:[#allocation2 + $0x98] sm:$0xff]
        %v686 = vld [vmem:[#allocation2 + $0xa0] sm:$0xff]
        %v687 = vld [vmem:[#allocation2 + $0xa8] sm:$0xff]
        %v688 = vld [vmem:[#allocation2 + $0xb0] sm:$0xff]
        %v689 = vld [vmem:[#allocation2 + $0xb8] sm:$0xff]
        %v690 = vld [vmem:[#allocation2 + $0xc0] sm:$0xff]
        %v691 = vld [vmem:[#allocation2 + $0xc8] sm:$0xff]
        %v692 = vld [vmem:[#allocation2 + $0xd0] sm:$0xff]
        %v693 = vld [vmem:[#allocation2 + $0xd8] sm:$0xff]
        %v694 = vld [vmem:[#allocation2 + $0xe0] sm:$0xff]
        %v695 = vld [vmem:[#allocation2 + $0xe8] sm:$0xff]
        %v696 = vld [vmem:[#allocation2 + $0xf0] sm:$0xff]
        %v697 = vld [vmem:[#allocation2 + $0xf8] sm:$0xff]
        %v698 = vld [vmem:[%s2] sm:$0x1]
        %v700 = vperm.slane %v698, 0
        %v702 = vadd.f32 %v666, %v700
        %v703 = vadd.f32 %v667, %v700
        %v704 = vadd.f32 %v668, %v700
        %v705 = vadd.f32 %v669, %v700
        %v706 = vadd.f32 %v670, %v700
        %v707 = vadd.f32 %v671, %v700
        %v708 = vadd.f32 %v672, %v700
        %v709 = vadd.f32 %v673, %v700
        %v710 = vadd.f32 %v674, %v700
        %v711 = vadd.f32 %v675, %v700
        %v712 = vadd.f32 %v676, %v700
        %v713 = vadd.f32 %v677, %v700
        %v714 = vadd.f32 %v678, %v700
        %v715 = vadd.f32 %v679, %v700
        %v716 = vadd.f32 %v680, %v700
        %v717 = vadd.f32 %v681, %v700
        %v718 = vadd.f32 %v682, %v700
        %v719 = vadd.f32 %v683, %v700
        %v720 = vadd.f32 %v684, %v700
        %v721 = vadd.f32 %v685, %v700
        %v722 = vadd.f32 %v686, %v700
        %v723 = vadd.f32 %v687, %v700
        %v724 = vadd.f32 %v688, %v700
        %v725 = vadd.f32 %v689, %v700
        %v726 = vadd.f32 %v690, %v700
        %v727 = vadd.f32 %v691, %v700
        %v728 = vadd.f32 %v692, %v700
        %v729 = vadd.f32 %v693, %v700
        %v730 = vadd.f32 %v694, %v700
        %v731 = vadd.f32 %v695, %v700
        %v732 = vadd.f32 %v696, %v700
        %v733 = vadd.f32 %v697, %v700
        %v734 = vpack.c.bf16 %v702, %v702
        %v735 = vpack.c.bf16 %v703, %v703
        %v736 = vpack.c.bf16 %v704, %v704
        %v737 = vpack.c.bf16 %v705, %v705
        %v738 = vpack.c.bf16 %v706, %v706
        %v739 = vpack.c.bf16 %v707, %v707
        %v740 = vpack.c.bf16 %v708, %v708
        %v741 = vpack.c.bf16 %v709, %v709
        %v742 = vpack.c.bf16 %v710, %v710
        %v743 = vpack.c.bf16 %v711, %v711
        %v744 = vpack.c.bf16 %v712, %v712
        %v745 = vpack.c.bf16 %v713, %v713
        %v746 = vpack.c.bf16 %v714, %v714
        %v747 = vpack.c.bf16 %v715, %v715
        %v748 = vpack.c.bf16 %v716, %v716
        %v749 = vpack.c.bf16 %v717, %v717
        %v750 = vpack.c.bf16 %v718, %v718
        %v751 = vpack.c.bf16 %v719, %v719
        %v752 = vpack.c.bf16 %v720, %v720
        %v753 = vpack.c.bf16 %v721, %v721
        %v754 = vpack.c.bf16 %v722, %v722
        %v755 = vpack.c.bf16 %v723, %v723
        %v756 = vpack.c.bf16 %v724, %v724
        %v757 = vpack.c.bf16 %v725, %v725
        %v758 = vpack.c.bf16 %v726, %v726
        %v759 = vpack.c.bf16 %v727, %v727
        %v760 = vpack.c.bf16 %v728, %v728
        %v761 = vpack.c.bf16 %v729, %v729
        %v762 = vpack.c.bf16 %v730, %v730
        %v763 = vpack.c.bf16 %v731, %v731
        %v764 = vpack.c.bf16 %v732, %v732
        %v765 = vpack.c.bf16 %v733, %v733
        %766 = vst [vmem:[%s248] sm:$0xf] %v734
        %767 = vst [vmem:[%s248 + $0x4] sm:$0xf] %v735
        %768 = vst [vmem:[%s248 + $0x8] sm:$0xf] %v736
        %769 = vst [vmem:[%s248 + $0xc] sm:$0xf] %v737
        %770 = vst [vmem:[%s248 + $0x10] sm:$0xf] %v738
        %771 = vst [vmem:[%s248 + $0x14] sm:$0xf] %v739
        %772 = vst [vmem:[%s248 + $0x18] sm:$0xf] %v740
        %773 = vst [vmem:[%s248 + $0x1c] sm:$0xf] %v741
        %774 = vst [vmem:[%s248 + $0x20] sm:$0xf] %v742
        %775 = vst [vmem:[%s248 + $0x24] sm:$0xf] %v743
        %776 = vst [vmem:[%s248 + $0x28] sm:$0xf] %v744
        %777 = vst [vmem:[%s248 + $0x2c] sm:$0xf] %v745
        %778 = vst [vmem:[%s248 + $0x30] sm:$0xf] %v746
        %779 = vst [vmem:[%s248 + $0x34] sm:$0xf] %v747
        %780 = vst [vmem:[%s248 + $0x38] sm:$0xf] %v748
        %781 = vst [vmem:[%s248 + $0x3c] sm:$0xf] %v749
        %782 = vst [vmem:[%s248 + $0x40] sm:$0xf] %v750
        %783 = vst [vmem:[%s248 + $0x44] sm:$0xf] %v751
        %784 = vst [vmem:[%s248 + $0x48] sm:$0xf] %v752
        %785 = vst [vmem:[%s248 + $0x4c] sm:$0xf] %v753
        %786 = vst [vmem:[%s248 + $0x50] sm:$0xf] %v754
        %787 = vst [vmem:[%s248 + $0x54] sm:$0xf] %v755
        %788 = vst [vmem:[%s248 + $0x58] sm:$0xf] %v756
        %789 = vst [vmem:[%s248 + $0x5c] sm:$0xf] %v757
        %790 = vst [vmem:[%s248 + $0x60] sm:$0xf] %v758
        %791 = vst [vmem:[%s248 + $0x64] sm:$0xf] %v759
        %792 = vst [vmem:[%s248 + $0x68] sm:$0xf] %v760
        %793 = vst [vmem:[%s248 + $0x6c] sm:$0xf] %v761
        %794 = vst [vmem:[%s248 + $0x70] sm:$0xf] %v762
        %795 = vst [vmem:[%s248 + $0x74] sm:$0xf] %v763
        %796 = vst [vmem:[%s248 + $0x78] sm:$0xf] %v764
        %797 = vst [vmem:[%s248 + $0x7c] sm:$0xf] %v765
      $region40: #{pretrained_model_forward.11} parent=31 // pred_fallthru
        _
      %s798 = smul.u32 32, %s20
      %p799 = scmp.lt.s32.totalorder %s19, 1
      %s800 = scalar_select %p799, %s19, 1
      %p801 = scmp.lt.s32.totalorder %s798, 31
      %s802 = scalar_select %p801, %s798, 31
      %s803 = smul.addr %s800, 32
      %s804 = sadd.s32 %s802, %s803
      %s805 = smul.addr %s804, 4
      %s806 = scalar_lea.vmem %s3, %s805
      // Predicated region
      $region41: #{pretrained_model_forward.11} parent=31 // pred_check
        %p807 = pneg %p130
      $region42: #{pretrained_model_forward.11} parent=31 // pred_check_branch
        %809 = sbr.rel (%p807) target = $region44
      $region43: #{pretrained_model_forward.11} parent=31 // pred_region
        %s810 = smul.u32 32, %s20
      $region44: #{pretrained_model_forward.11} parent=31 // pred_fallthru
        _
    $region32: #{pretrained_model_forward.11} parent=5 // pred_fallthru
      _
    %p811 = scmp.le.s32.totalorder 2, %s9
    // Predicated region
    $region45: #{pretrained_model_forward.11} parent=5 // pred_check
      %p812 = pneg %p811
    $region46: #{pretrained_model_forward.11} parent=5 // pred_check_branch
      %814 = sbr.rel (%p812) target = $region48
    $region47: #{pretrained_model_forward.11} parent=5 // pred_region
      %s815 = ssub.s32 %s9, 2
      // Predicated region
      $region49: #{pretrained_model_forward.11} parent=47 // pred_check
        %p816 = pneg %p136
      $region50: #{pretrained_model_forward.11} parent=47 // pred_check_branch
        %818 = sbr.rel (%p816) target = $region52
      $region51: #{pretrained_model_forward.11} parent=47 // pred_region
        %s819 = smul.u32 32, %s23
        %p820 = scmp.lt.s32.totalorder %s22, 1
        %s821 = scalar_select %p820, %s22, 1
        %p822 = scmp.lt.s32.totalorder %s819, 31
        %s823 = scalar_select %p822, %s819, 31
        %s824 = smul.addr %s821, 32
        %s825 = sadd.s32 %s823, %s824
        %s826 = smul.addr %s825, 4
        %s827 = scalar_lea.vmem %s3, %s826
      $region52: #{pretrained_model_forward.11} parent=47 // pred_fallthru
        _
    $region48: #{pretrained_model_forward.11} parent=5 // pred_fallthru
      _
  $region6: #{pretrained_model_forward.11} parent=0 // loop_footer
    %s13 = sadd.s32 1, %s9
  $region7: #{pretrained_model_forward.11} parent=0 // loop_footer_branch
    %8 = sbr.rel target = $region3
  $region8: #{pretrained_model_forward.11} parent=0 // loop_exit
    _

</llo_original>
